<compile_context>
chip_gen: v6e
topology: v6e:2x2x1
jax: 0.10.0
libtpu: 0.0.40
codegen_flags: <defaults>
</compile_context>

<pallas_src>
import numpy as np
import jax
import jax.numpy as jnp
from jax.experimental import pallas as pl
from jax.experimental.pallas import tpu as pltpu


def _round_up(x, m):
    return (x + m - 1) // m * m


def _tile_bytes(rows, cols, itemsize):
    """(sublane, lane)-padded VMEM footprint of a 2-D block."""
    sublane = 32 // itemsize            # f32 -> 8, bf16 -> 16
    return _round_up(rows, sublane) * _round_up(cols, 128) * itemsize


def _tpu_generation():
    """Best-effort TPU generation tag: 'v5', 'v6', 'v7' or ''."""
    try:
        kind = jax.devices()[0].device_kind.lower()
    except Exception:
        return ""
    if "v7" in kind or "7x" in kind:
        return "v7"
    if "v6" in kind:
        return "v6"
    if "v5" in kind:
        return "v5"
    return ""


# ---------------------------------------------------------------------------
# Pallas kernel: fused  [Wd;Wc] @ relu(W1 @ x_t + b1) + [bd;bc]  -> dino, clip
# (everything channels-first: channels on sublanes, pixels on lanes)
# ---------------------------------------------------------------------------
def _skip_feat_decoder_kernel(x_ref, w1_ref, b1_ref, w2_ref, b2_ref,
                              dino_ref, clip_ref):
    # x_ref:    (c_in,  tile_m) f32        w1_ref: (hid, c_in) f32
    # b1_ref:   (hid, 1) f32               w2_ref: (c_total, hid) f32|bf16
    # b2_ref:   (c_total, 1) f32
    # dino_ref: (c_dino, tile_m)           clip_ref: (c_clip, tile_m)
    h = jnp.dot(w1_ref[...], x_ref[...], preferred_element_type=jnp.float32)
    h = jnp.maximum(h + b1_ref[...], 0.0)                       # (hid, tile_m)

    r = jnp.dot(w2_ref[...], h.astype(w2_ref.dtype),
                preferred_element_type=jnp.float32) + b2_ref[...]

    nd = dino_ref.shape[0]                # 384 — sublane-aligned split point
    dino_ref[...] = r[:nd].astype(dino_ref.dtype)
    clip_ref[...] = r[nd:].astype(clip_ref.dtype)


def skip_feat_decoder_pallas(x_cf, w1, b1, w2, b2, c_dino, *,
                             tile_m=None, out_dtype=jnp.float32):
    """x_cf: (N, c_in, M) channels-first pixels (f32).

    w1: (hid, c_in) f32, b1: (hid, 1) f32
    w2: (c_dino + c_clip, hid) f32 or bf16   ([Wd; Wc] stacked)
    b2: (c_dino + c_clip, 1) f32             ([bd; bc] stacked)
    Returns (dino (N, c_dino, M), clip (N, c_clip, M)) in out_dtype.
    """
    n, c_in, m = x_cf.shape
    hid = w1.shape[0]                      # 256
    c_total = w2.shape[0]                  # 384 + 768 = 1152
    c_clip = c_total - c_dino
    out_isz = np.dtype(out_dtype).itemsize
    w2_isz = np.dtype(w2.dtype).itemsize

    gen = _tpu_generation()
    if tile_m is None:
        # v5e/v6e: 128 MiB physical VMEM -> big tiles amortise per-step cost.
        # v7x (and unknown): only 64 MiB / TC -> cap at 2048 rows.
        tile_m = 4096 if gen in ("v5", "v6") else 2048
    tile_m = max(256, _round_up(tile_m, 256))
    tile_m = min(tile_m, _round_up(m, 256))
    # Guarantee >= 2 grid steps so megacore / dual-TC sharding and the
    # software pipeline have work even for small inputs.
    while n * pl.cdiv(m, tile_m) < 2 and tile_m > 256:
        tile_m = max(256, _round_up(tile_m // 2, 256))

    def vmem_est(t):
        return (2 * _tile_bytes(c_in, t, 4)                        # x (2 bufs)
                + _tile_bytes(hid, c_in, 4) + _tile_bytes(hid, 1, 4)   # W1, b1
                + _tile_bytes(c_total, hid, w2_isz)                    # W2
                + _tile_bytes(c_total, 1, 4)                           # b2
                + 2 * _tile_bytes(c_dino, t, out_isz)              # dino (2 bufs)
                + 2 * _tile_bytes(c_clip, t, out_isz)              # clip (2 bufs)
                + _tile_bytes(hid, t, 4) + _tile_bytes(hid, t, w2_isz)  # h (+cast)
                + _tile_bytes(c_total, t, 4))                      # r temp

    budget = (100 << 20) if gen in ("v5", "v6") else (48 << 20)
    while tile_m > 256 and int(vmem_est(tile_m) * 1.25) + (2 << 20) > budget:
        tile_m = max(256, _round_up(tile_m // 2, 256))
    vmem_limit = min(budget,
                     max(int(vmem_est(tile_m) * 1.25) + (2 << 20), 32 << 20))

    m_pad = _round_up(m, tile_m)
    if m_pad != m:
        x_cf = jnp.pad(x_cf, ((0, 0), (0, 0), (0, m_pad - m)))
    grid = (n, m_pad // tile_m)

    const = lambda b, i: (0, 0)
    single = pl.Buffered(1)        # constants: drop the 2nd pipeline buffer

    cost = pl.CostEstimate(
        flops=2 * n * m_pad * (c_in * hid + hid * c_total),
        transcendentals=0,
        bytes_accessed=(n * m_pad * c_in * 4
                        + n * m_pad * c_total * out_isz
                        + hid * (c_in + 1) * 4
                        + c_total * hid * w2_isz + c_total * 4),
    )

    dino, clip = pl.pallas_call(
        _skip_feat_decoder_kernel,
        out_shape=(
            jax.ShapeDtypeStruct((n, c_dino, m_pad), out_dtype),
            jax.ShapeDtypeStruct((n, c_clip, m_pad), out_dtype),
        ),
        grid_spec=pltpu.PrefetchScalarGridSpec(
            num_scalar_prefetch=0,
            grid=grid,
            in_specs=[
                pl.BlockSpec((None, c_in, tile_m), lambda b, i: (b, 0, i)),
                pl.BlockSpec((hid, c_in), const, pipeline_mode=single),     # W1
                pl.BlockSpec((hid, 1), const, pipeline_mode=single),        # b1
                pl.BlockSpec((c_total, hid), const, pipeline_mode=single),  # [Wd;Wc]
                pl.BlockSpec((c_total, 1), const, pipeline_mode=single),    # [bd;bc]
            ],
            out_specs=[
                pl.BlockSpec((None, c_dino, tile_m), lambda b, i: (b, 0, i)),
                pl.BlockSpec((None, c_clip, tile_m), lambda b, i: (b, 0, i)),
            ],
        ),
        compiler_params=pltpu.CompilerParams(
            dimension_semantics=("parallel", "parallel"),
            vmem_limit_bytes=vmem_limit,
        ),
        cost_estimate=cost,
    )(x_cf, w1, b1, w2, b2)

    if m_pad != m:
        dino = dino[:, :, :m]
        clip = clip[:, :, :m]
    return dino, clip


# ---------------------------------------------------------------------------
# Parameter setup (weight_norm) + NCHW wrapper — plain JAX glue.
# ---------------------------------------------------------------------------
def make_weight_norm_params(key, c_in, c_out):
    """Effective (C_out, C_in) weight and (C_out,) bias of a weight-normed
    1x1 Conv2d with normally-initialized g, v, bias (PyTorch dim=0 norm)."""
    kv, kg, kb = jax.random.split(key, 3)
    v = jax.random.normal(kv, (c_out, c_in), dtype=jnp.float32)
    g = jax.random.normal(kg, (c_out,), dtype=jnp.float32)
    b = jax.random.normal(kb, (c_out,), dtype=jnp.float32)
    norm = jnp.maximum(jnp.sqrt(jnp.sum(v * v, axis=1, keepdims=True)), 1e-12)
    return g[:, None] * v / norm, b


def prepare_params(raw, w2_dtype=None):
    """Stack the two output projections; pick the layer-2 MXU dtype."""
    if w2_dtype is None:
        # bf16 on v5e (f32 MXU is slow there); f32 on v6e/v7x where the extra
        # MXU passes hide under the output HBM writes -> tighter numerics.
        w2_dtype = jnp.bfloat16 if _tpu_generation() == "v5" else jnp.float32
    w2 = jnp.concatenate([raw["wd"], raw["wc"]], axis=0).astype(w2_dtype)
    b2 = jnp.concatenate([raw["bd"], raw["bc"]], axis=0)[:, None]
    return dict(w1=raw["w1"], b1=raw["b1"][:, None], w2=w2, b2=b2,
                c_dino=int(raw["wd"].shape[0]))


def skip_feat_decoder_forward(x_nchw, params, *, tile_m=None,
                              out_dtype=jnp.float32):
    """x_nchw: (N, C_in, H, W) -> (dino (N,384,H,W), clip (N,768,H,W)).

    out_dtype=jnp.bfloat16 halves the dominant HBM write stream when the
    consumer accepts it; the float32 default matches the PyTorch module.
    """
    n, c, h, w = x_nchw.shape
    x_flat = x_nchw.reshape(n, c, h * w)   # free: NCHW is already channels-first
    dino, clip = skip_feat_decoder_pallas(
        x_flat, params["w1"], params["b1"], params["w2"], params["b2"],
        params["c_dino"], tile_m=tile_m, out_dtype=out_dtype)
    return dino.reshape(n, -1, h, w), clip.reshape(n, -1, h, w)
    # TODO(synk): part_level=True branch (part_conv1) not wired; default ctor uses part_level=False.


def reference_forward(x_nchw, raw):
    """Pure-JAX f32 reference of the same math for a sanity check."""
    n, c, h, w = x_nchw.shape
    xf = x_nchw.reshape(n, c, h * w)
    hm = jnp.maximum(jnp.einsum('oi,nis->nos', raw["w1"], xf)
                     + raw["b1"][None, :, None], 0.0)
    d = jnp.einsum('oi,nis->nos', raw["wd"], hm) + raw["bd"][None, :, None]
    cl = jnp.einsum('oi,nis->nos', raw["wc"], hm) + raw["bc"][None, :, None]
    return d.reshape(n, -1, h, w), cl.reshape(n, -1, h, w)


if __name__ == "__main__":
    key = jax.random.PRNGKey(0)
    k_x, k1, k2, k3 = jax.random.split(key, 4)

    # Small shapes: batch=2, input_dim=4, spatial 16x16  -> M = 2*16*16 = 512
    input_dim = 4
    x = jax.random.normal(k_x, (2, input_dim, 16, 16), dtype=jnp.float32)

    w1, b1 = make_weight_norm_params(k1, input_dim, 256)     # conv1
    wd, bd = make_weight_norm_params(k2, 256, 384)            # dino_conv
    wc, bc = make_weight_norm_params(k3, 256, 768)            # clip_conv1
    raw = dict(w1=w1, b1=b1, wd=wd, bd=bd, wc=wc, bc=bc)
    params = prepare_params(raw)

    # Default path: f32 outputs (module-parity dtype).
    dino, clip = skip_feat_decoder_forward(x, params)
    jax.block_until_ready((dino, clip))
    assert dino.shape == (2, 384, 16, 16) and clip.shape == (2, 768, 16, 16)
    assert dino.dtype == jnp.float32 and clip.dtype == jnp.float32

    dino_ref, clip_ref = reference_forward(x, raw)

    def check(a, b):
        # scale-relative tolerance: layer 2 may run in bf16 on the MXU (v5e)
        scale = float(jnp.max(jnp.abs(b)))
        err = float(jnp.max(jnp.abs(a.astype(jnp.float32) - b)))
        assert err <= 3e-2 * scale + 1e-2, (err, scale)

    check(dino, dino_ref)
    check(clip, clip_ref)

    # bf16-output path: the biggest HBM-write lever when downstream takes bf16.
    dino16, clip16 = skip_feat_decoder_forward(x, params, out_dtype=jnp.bfloat16)
    jax.block_until_ready((dino16, clip16))
    assert dino16.dtype == jnp.bfloat16 and clip16.dtype == jnp.bfloat16
    check(dino16, dino_ref)
    check(clip16, clip_ref)

    print("KERNEL_OK")
</pallas_src>

<mosaic_0001>
module attributes {stable_mosaic.version = 11 : i64} {
  func.func @_skip_feat_decoder_kernel(%arg0: i32, %arg1: i32, %arg2: memref<1x4x256xf32, #tpu.memory_space<vmem>>, %arg3: memref<256x4xf32, #tpu.memory_space<vmem>>, %arg4: memref<256x1xf32, #tpu.memory_space<vmem>>, %arg5: memref<1152x256xf32, #tpu.memory_space<vmem>>, %arg6: memref<1152x1xf32, #tpu.memory_space<vmem>>, %arg7: memref<1x384x256xf32, #tpu.memory_space<vmem>>, %arg8: memref<1x768x256xf32, #tpu.memory_space<vmem>>) attributes {dimension_semantics = [#tpu.dimension_semantics<parallel>, #tpu.dimension_semantics<parallel>], iteration_bounds = array<i64: 2, 1>, scalar_prefetch = 0 : i64, scratch_operands = 0 : i64, tpu.core_type = #tpu.core_type<tc>, window_params = [{transform_indices = @transform_0, window_bounds = array<i64: 1, 4, 256>}, {pipeline_mode = #tpu.pipeline_mode<synchronous>, transform_indices = @transform_1, window_bounds = array<i64: 256, 4>}, {pipeline_mode = #tpu.pipeline_mode<synchronous>, transform_indices = @transform_2, window_bounds = array<i64: 256, 1>}, {pipeline_mode = #tpu.pipeline_mode<synchronous>, transform_indices = @transform_3, window_bounds = array<i64: 1152, 256>}, {pipeline_mode = #tpu.pipeline_mode<synchronous>, transform_indices = @transform_4, window_bounds = array<i64: 1152, 1>}, {transform_indices = @transform_5, window_bounds = array<i64: 1, 384, 256>}, {transform_indices = @transform_6, window_bounds = array<i64: 1, 768, 256>}]} {
    %c0 = arith.constant 0 : index
    %c0_0 = arith.constant 0 : index
    %0 = vector.load %arg3[%c0, %c0_0] : memref<256x4xf32, #tpu.memory_space<vmem>>, vector<256x4xf32>
    %c0_1 = arith.constant 0 : index
    %c0_2 = arith.constant 0 : index
    %c0_3 = arith.constant 0 : index
    %1 = vector.load %arg2[%c0_1, %c0_2, %c0_3] : memref<1x4x256xf32, #tpu.memory_space<vmem>>, vector<1x4x256xf32>
    %2 = vector.shape_cast %1 : vector<1x4x256xf32> to vector<4x256xf32>
    %cst = arith.constant dense<0.000000e+00> : vector<256x256xf32>
    %3 = tpu.matmul %0, %2, %cst {dimension_numbers = #tpu.dot_dimension_numbers<[1], [0], [0], [1], [0, 0, 1, 1], [], []>} : vector<256x4xf32>, vector<4x256xf32>, vector<256x256xf32> -> vector<256x256xf32>
    %c0_4 = arith.constant 0 : index
    %c0_5 = arith.constant 0 : index
    %4 = vector.load %arg4[%c0_4, %c0_5] : memref<256x1xf32, #tpu.memory_space<vmem>>, vector<256x1xf32>
    %5 = vector.broadcast %4 : vector<256x1xf32> to vector<256x256xf32>
    %6 = arith.addf %3, %5 : vector<256x256xf32>
    %cst_6 = arith.constant 0.000000e+00 : f32
    %7 = vector.broadcast %cst_6 : f32 to vector<256x256xf32>
    %8 = arith.maximumf %6, %7 : vector<256x256xf32>
    %c0_7 = arith.constant 0 : index
    %c0_8 = arith.constant 0 : index
    %9 = vector.load %arg5[%c0_7, %c0_8] : memref<1152x256xf32, #tpu.memory_space<vmem>>, vector<1152x256xf32>
    %cst_9 = arith.constant dense<0.000000e+00> : vector<1152x256xf32>
    %10 = tpu.matmul %9, %8, %cst_9 {dimension_numbers = #tpu.dot_dimension_numbers<[1], [0], [0], [1], [0, 0, 1, 1], [], []>} : vector<1152x256xf32>, vector<256x256xf32>, vector<1152x256xf32> -> vector<1152x256xf32>
    %c0_10 = arith.constant 0 : index
    %c0_11 = arith.constant 0 : index
    %11 = vector.load %arg6[%c0_10, %c0_11] : memref<1152x1xf32, #tpu.memory_space<vmem>>, vector<1152x1xf32>
    %12 = vector.broadcast %11 : vector<1152x1xf32> to vector<1152x256xf32>
    %13 = arith.addf %10, %12 : vector<1152x256xf32>
    %14 = vector.extract_strided_slice %13 {offsets = [0, 0], sizes = [384, 256], strides = [1, 1]} : vector<1152x256xf32> to vector<384x256xf32>
    %c0_12 = arith.constant 0 : index
    %c0_13 = arith.constant 0 : index
    %c0_14 = arith.constant 0 : index
    %15 = vector.load %arg7[%c0_12, %c0_13, %c0_14] : memref<1x384x256xf32, #tpu.memory_space<vmem>>, vector<1x384x256xf32>
    %16 = vector.shape_cast %15 : vector<1x384x256xf32> to vector<384x256xf32>
    %17 = vector.shape_cast %14 : vector<384x256xf32> to vector<1x384x256xf32>
    tpu.vector_store %arg7[%c0_12, %c0_13, %c0_14], %17 {strides = array<i32>} : memref<1x384x256xf32, #tpu.memory_space<vmem>>, vector<1x384x256xf32>,
    %18 = vector.extract_strided_slice %13 {offsets = [384, 0], sizes = [768, 256], strides = [1, 1]} : vector<1152x256xf32> to vector<768x256xf32>
    %c0_15 = arith.constant 0 : index
    %c0_16 = arith.constant 0 : index
    %c0_17 = arith.constant 0 : index
    %19 = vector.load %arg8[%c0_15, %c0_16, %c0_17] : memref<1x768x256xf32, #tpu.memory_space<vmem>>, vector<1x768x256xf32>
    %20 = vector.shape_cast %19 : vector<1x768x256xf32> to vector<768x256xf32>
    %21 = vector.shape_cast %18 : vector<768x256xf32> to vector<1x768x256xf32>
    tpu.vector_store %arg8[%c0_15, %c0_16, %c0_17], %21 {strides = array<i32>} : memref<1x768x256xf32, #tpu.memory_space<vmem>>, vector<1x768x256xf32>,
    return
  }
  func.func @transform_0(%arg0: i32, %arg1: i32) -> (i32, i32, i32) {
    %c0_i32 = arith.constant 0 : i32
    %c0_i32_0 = arith.constant 0 : i32
    return %arg0, %c0_i32, %arg1 : i32, i32, i32
  }
  func.func @transform_1(%arg0: i32, %arg1: i32) -> (i32, i32) {
    %c0_i32 = arith.constant 0 : i32
    %c0_i32_0 = arith.constant 0 : i32
    %c0_i32_1 = arith.constant 0 : i32
    return %c0_i32, %c0_i32_0 : i32, i32
  }
  func.func @transform_2(%arg0: i32, %arg1: i32) -> (i32, i32) {
    %c0_i32 = arith.constant 0 : i32
    %c0_i32_0 = arith.constant 0 : i32
    %c0_i32_1 = arith.constant 0 : i32
    return %c0_i32, %c0_i32_0 : i32, i32
  }
  func.func @transform_3(%arg0: i32, %arg1: i32) -> (i32, i32) {
    %c0_i32 = arith.constant 0 : i32
    %c0_i32_0 = arith.constant 0 : i32
    %c0_i32_1 = arith.constant 0 : i32
    return %c0_i32, %c0_i32_0 : i32, i32
  }
  func.func @transform_4(%arg0: i32, %arg1: i32) -> (i32, i32) {
    %c0_i32 = arith.constant 0 : i32
    %c0_i32_0 = arith.constant 0 : i32
    %c0_i32_1 = arith.constant 0 : i32
    return %c0_i32, %c0_i32_0 : i32, i32
  }
  func.func @transform_5(%arg0: i32, %arg1: i32) -> (i32, i32, i32) {
    %c0_i32 = arith.constant 0 : i32
    %c0_i32_0 = arith.constant 0 : i32
    return %arg0, %c0_i32, %arg1 : i32, i32, i32
  }
  func.func @transform_6(%arg0: i32, %arg1: i32) -> (i32, i32, i32) {
    %c0_i32 = arith.constant 0 : i32
    %c0_i32_0 = arith.constant 0 : i32
    return %arg0, %c0_i32, %arg1 : i32, i32, i32
  }
}

</mosaic_0001>

<llo_original>
// kernel: tpu_custom_call.1
$region0: #{tpu_custom_call.1}
  #allocation0 [shape = 'u32[]', space=smem, size = 0x4, offset = 0x4, fixed_abs, tag = 'smem constant byte address 0x4 - core index']
  #allocation1 [shape = 'u32[144,128]{1,0:T(1,128)}', space=vmem, size = 0x12000, scoped, tag = 'internal scratch']
  %s0 = inlined_call_operand.hbm [shape: f32[2,4,256], index: 0, kind: input, shape index: {}]
  %s1 = inlined_call_operand.vmem [shape: f32[256,4], index: 1, kind: input, shape index: {}]
  %s2 = inlined_call_operand.vmem [shape: f32[256,1], index: 2, kind: input, shape index: {}]
  %s3 = inlined_call_operand.hbm [shape: f32[1152,256], index: 3, kind: input, shape index: {}]
  %s4 = inlined_call_operand.vmem [shape: f32[1152,1], index: 4, kind: input, shape index: {}]
  %s5 = inlined_call_operand.hbm [shape: f32[2,384,256], index: 5, kind: output, shape index: {0}]
  %s6 = inlined_call_operand.hbm [shape: f32[2,768,256], index: 6, kind: output, shape index: {1}]
  %7 = xla_tuple %s5, %s6
  %s8 = sld [smem:[#allocation0]]
  $region69: #{tpu_custom_call.1} parent=0
    _
  %s10 = ssub.s32 1, %s8
  %s11 = scalar_select 0, %s10, %s8
  $region1: #{tpu_custom_call.1} parent=0
    #allocation2 [shape = 'u8[8192]{0}', space=vmem, size = 0x2000, scoped, tag = 'input window, operand 0']
    #allocation3 [shape = 's32[2]{0}', space=sflag, size = 0x8, scoped, tag = 'scoped memory for tpu_custom_call.1']
    #allocation4 [shape = 's32[2]{0}', space=sflag, size = 0x8, scoped, tag = 'scoped memory for tpu_custom_call.1']
    #allocation5 [shape = 'u8[1179648]{0}', space=vmem, size = 0x120000, scoped, tag = 'input window, operand 3, single buffered']
    #allocation6 [shape = 's32[1]{0}', space=sflag, size = 0x4, scoped, tag = 'scoped memory for tpu_custom_call.1']
    #allocation7 [shape = 'u8[786432]{0}', space=vmem, size = 0xc0000, scoped, tag = 'output window, operand 0']
    #allocation8 [shape = 'u8[1572864]{0}', space=vmem, size = 0x180000, scoped, tag = 'output window, operand 1']
    #allocation9 [shape = 's32[2]{0}', space=sflag, size = 0x8, scoped, tag = 'scoped memory for tpu_custom_call.1']
    %12 = vsyncpa [#allocation3], 0
    %s13 = scalar_lea.sflag [#allocation3], 1
    %14 = vsyncpa %s13, 0
    %15 = vsyncpa [#allocation6], 0
    %16 = vsyncpa [#allocation4], 0
    %s17 = scalar_lea.sflag [#allocation4], 1
    %18 = vsyncpa %s17, 0
    %19 = vsyncpa [#allocation9], 0
    %s20 = scalar_lea.sflag [#allocation9], 1
    %21 = vsyncpa %s20, 0
    loop: start=0, step=1, limit=4
    $region2: #{tpu_custom_call.1} parent=1 // loop_pre_header
      _
    $region3: #{tpu_custom_call.1} parent=1 // loop_header
      %s23 = sphi 0, %s27
      %p24 = scmp.ge.s32.totalorder %s23, 4
      %s30 = sphi 0, %s42
      %s31 = sphi 0, %s38
      %s32 = sphi 0, %s30
      %s33 = sphi 0, %s31
      %s34 = sphi 0, %s32
      %s35 = sphi 0, %s33
      %s47 = sphi 0, %s49
      %s50 = sphi 0, %s47
      %s51 = sphi 0, %s50
      %s67 = sphi 0, %s51
      %s71 = sphi 0, %s71
      %s73 = sphi 0, %s71
      %s74 = sphi 0, %s73
      %s88 = sphi 0, %s74
      %s92 = sphi 0, %s92
      %s94 = sphi 0, %s92
      %s95 = sphi 0, %s94
      %s109 = sphi 0, %s95
      %s113 = sphi 0, %s113
      %s115 = sphi 0, %s113
      %s116 = sphi 0, %s115
      %s130 = sphi 0, %s116
      %s134 = sphi 0, %s134
      %s136 = sphi 0, %s134
      %s137 = sphi 0, %s136
      %s151 = sphi 0, %s137
      %s159 = sphi 0, %s161
      %s162 = sphi 0, %s159
      %s163 = sphi 0, %s162
      %s179 = sphi 0, %s163
      %s187 = sphi 0, %s189
      %s190 = sphi 0, %s187
      %s191 = sphi 0, %s190
      %s207 = sphi 0, %s191
    $region4: #{tpu_custom_call.1} parent=1 // loop_header_branch
      %26 = sbr.rel (%p24) target = $region8
    $region5: #{tpu_custom_call.1} parent=1 // loop_body
      %s28 = ssub.s32 %s23, 1
      %s29 = ssub.s32 %s23, 2
      %s36 = sadd.s32 1, %s31
      %p37 = scmp.ge.s32.totalorder %s36, 1
      %s38 = scalar_select %p37, 0, %s36
      %s39 = sadd.s32 1, %s30
      %s40 = scalar_select %p37, %s39, %s30
      %p41 = scmp.ge.s32.totalorder %s40, 2
      %s42 = scalar_select %p41, 0, %s40
      %s43 = ssub.s32 %s30, %s42
      %s44 = ssub.s32 %s31, %s38
      %s45 = sor.u32 %s43, %s44
      %p46 = scmp.eq.s32.totalorder %s45, 0
      %s48 = sadd.s32 %s47, 1
      %s49 = scalar_select %p46, %s47, %s48
      %p52 = pneg %p46
      %p53 = scmp.eq.s32.totalorder %s23, 1
      %p54 = por %p52, %p53
      %p55 = scmp.ne.s32.totalorder %s47, %s50
      %p56 = scmp.eq.s32.totalorder %s23, 0
      %p57 = por %p55, %p56
      %p58 = scmp.ne.s32.totalorder %s47, %s50
      %p59 = scmp.eq.s32.totalorder %s28, 1
      %p60 = por %p58, %p59
      %p61 = scmp.ne.s32.totalorder %s50, %s51
      %p62 = scmp.eq.s32.totalorder %s28, 0
      %p63 = por %p61, %p62
      %p64 = scmp.ne.s32.totalorder %s50, %s51
      %p65 = scmp.eq.s32.totalorder %s29, 1
      %p66 = por %p64, %p65
      %p68 = scmp.ne.s32.totalorder %s51, %s67
      %p69 = scmp.eq.s32.totalorder %s29, 0
      %p70 = por %p68, %p69
      %s72 = sadd.s32 %s71, 1
      %p75 = scmp.eq.s32.totalorder %s23, 1
      %p76 = scmp.ne.s32.totalorder %s71, %s73
      %p77 = scmp.eq.s32.totalorder %s23, 0
      %p78 = por %p76, %p77
      %p79 = scmp.ne.s32.totalorder %s71, %s73
      %p80 = scmp.eq.s32.totalorder %s28, 1
      %p81 = por %p79, %p80
      %p82 = scmp.ne.s32.totalorder %s73, %s74
      %p83 = scmp.eq.s32.totalorder %s28, 0
      %p84 = por %p82, %p83
      %p85 = scmp.ne.s32.totalorder %s73, %s74
      %p86 = scmp.eq.s32.totalorder %s29, 1
      %p87 = por %p85, %p86
      %p89 = scmp.ne.s32.totalorder %s74, %s88
      %p90 = scmp.eq.s32.totalorder %s29, 0
      %p91 = por %p89, %p90
      %s93 = sadd.s32 %s92, 1
      %p96 = scmp.eq.s32.totalorder %s23, 1
      %p97 = scmp.ne.s32.totalorder %s92, %s94
      %p98 = scmp.eq.s32.totalorder %s23, 0
      %p99 = por %p97, %p98
      %p100 = scmp.ne.s32.totalorder %s92, %s94
      %p101 = scmp.eq.s32.totalorder %s28, 1
      %p102 = por %p100, %p101
      %p103 = scmp.ne.s32.totalorder %s94, %s95
      %p104 = scmp.eq.s32.totalorder %s28, 0
      %p105 = por %p103, %p104
      %p106 = scmp.ne.s32.totalorder %s94, %s95
      %p107 = scmp.eq.s32.totalorder %s29, 1
      %p108 = por %p106, %p107
      %p110 = scmp.ne.s32.totalorder %s95, %s109
      %p111 = scmp.eq.s32.totalorder %s29, 0
      %p112 = por %p110, %p111
      %s114 = sadd.s32 %s113, 1
      %p117 = scmp.eq.s32.totalorder %s23, 1
      %p118 = scmp.ne.s32.totalorder %s113, %s115
      %p119 = scmp.eq.s32.totalorder %s23, 0
      %p120 = por %p118, %p119
      %p121 = scmp.ne.s32.totalorder %s113, %s115
      %p122 = scmp.eq.s32.totalorder %s28, 1
      %p123 = por %p121, %p122
      %p124 = scmp.ne.s32.totalorder %s115, %s116
      %p125 = scmp.eq.s32.totalorder %s28, 0
      %p126 = por %p124, %p125
      %p127 = scmp.ne.s32.totalorder %s115, %s116
      %p128 = scmp.eq.s32.totalorder %s29, 1
      %p129 = por %p127, %p128
      %p131 = scmp.ne.s32.totalorder %s116, %s130
      %p132 = scmp.eq.s32.totalorder %s29, 0
      %p133 = por %p131, %p132
      %s135 = sadd.s32 %s134, 1
      %p138 = scmp.eq.s32.totalorder %s23, 1
      %p139 = scmp.ne.s32.totalorder %s134, %s136
      %p140 = scmp.eq.s32.totalorder %s23, 0
      %p141 = por %p139, %p140
      %p142 = scmp.ne.s32.totalorder %s134, %s136
      %p143 = scmp.eq.s32.totalorder %s28, 1
      %p144 = por %p142, %p143
      %p145 = scmp.ne.s32.totalorder %s136, %s137
      %p146 = scmp.eq.s32.totalorder %s28, 0
      %p147 = por %p145, %p146
      %p148 = scmp.ne.s32.totalorder %s136, %s137
      %p149 = scmp.eq.s32.totalorder %s29, 1
      %p150 = por %p148, %p149
      %p152 = scmp.ne.s32.totalorder %s137, %s151
      %p153 = scmp.eq.s32.totalorder %s29, 0
      %p154 = por %p152, %p153
      %s155 = ssub.s32 %s30, %s42
      %s156 = ssub.s32 %s31, %s38
      %s157 = sor.u32 %s155, %s156
      %p158 = scmp.eq.s32.totalorder %s157, 0
      %s160 = sadd.s32 %s159, 1
      %s161 = scalar_select %p158, %s159, %s160
      %p164 = pneg %p158
      %p165 = scmp.eq.s32.totalorder %s23, 1
      %p166 = por %p164, %p165
      %p167 = scmp.ne.s32.totalorder %s159, %s162
      %p168 = scmp.eq.s32.totalorder %s23, 0
      %p169 = por %p167, %p168
      %p170 = scmp.ne.s32.totalorder %s159, %s162
      %p171 = scmp.eq.s32.totalorder %s28, 1
      %p172 = por %p170, %p171
      %p173 = scmp.ne.s32.totalorder %s162, %s163
      %p174 = scmp.eq.s32.totalorder %s28, 0
      %p175 = por %p173, %p174
      %p176 = scmp.ne.s32.totalorder %s162, %s163
      %p177 = scmp.eq.s32.totalorder %s29, 1
      %p178 = por %p176, %p177
      %p180 = scmp.ne.s32.totalorder %s163, %s179
      %p181 = scmp.eq.s32.totalorder %s29, 0
      %p182 = por %p180, %p181
      %s183 = ssub.s32 %s30, %s42
      %s184 = ssub.s32 %s31, %s38
      %s185 = sor.u32 %s183, %s184
      %p186 = scmp.eq.s32.totalorder %s185, 0
      %s188 = sadd.s32 %s187, 1
      %s189 = scalar_select %p186, %s187, %s188
      %p192 = pneg %p186
      %p193 = scmp.eq.s32.totalorder %s23, 1
      %p194 = por %p192, %p193
      %p195 = scmp.ne.s32.totalorder %s187, %s190
      %p196 = scmp.eq.s32.totalorder %s23, 0
      %p197 = por %p195, %p196
      %p198 = scmp.ne.s32.totalorder %s187, %s190
      %p199 = scmp.eq.s32.totalorder %s28, 1
      %p200 = por %p198, %p199
      %p201 = scmp.ne.s32.totalorder %s190, %s191
      %p202 = scmp.eq.s32.totalorder %s28, 0
      %p203 = por %p201, %p202
      %p204 = scmp.ne.s32.totalorder %s190, %s191
      %p205 = scmp.eq.s32.totalorder %s29, 1
      %p206 = por %p204, %p205
      %p208 = scmp.ne.s32.totalorder %s191, %s207
      %p209 = scmp.eq.s32.totalorder %s29, 0
      %p210 = por %p208, %p209
      %p211 = scmp.le.s32.totalorder 1, %s23
      %p212 = scmp.lt.s32.totalorder %s23, 3
      %p213 = pnand %p211, %p212
      %p214 = pneg %p213
      // Predicated region
      $region9: #{tpu_custom_call.1} parent=5 // pred_check
        _
      $region10: #{tpu_custom_call.1} parent=5 // pred_check_branch
        %216 = sbr.rel (%p213) target = $region12
      $region11: #{tpu_custom_call.1} parent=5 // pred_region
        %s217 = ssub.s32 %s23, 1
        // Predicated region
        $region13: #{tpu_custom_call.1} parent=11 // pred_check
          %p218 = pneg %p84
        $region14: #{tpu_custom_call.1} parent=11 // pred_check_branch
          %220 = sbr.rel (%p218) target = $region16
        $region15: #{tpu_custom_call.1} parent=11 // pred_region
          _
        $region16: #{tpu_custom_call.1} parent=11 // pred_fallthru
          _
        // Predicated region
        $region17: #{tpu_custom_call.1} parent=11 // pred_check
          %p221 = pneg %p105
        $region18: #{tpu_custom_call.1} parent=11 // pred_check_branch
          %223 = sbr.rel (%p221) target = $region20
        $region19: #{tpu_custom_call.1} parent=11 // pred_region
          _
        $region20: #{tpu_custom_call.1} parent=11 // pred_fallthru
          _
        // Predicated region
        $region21: #{tpu_custom_call.1} parent=11 // pred_check
          %p224 = pneg %p126
        $region22: #{tpu_custom_call.1} parent=11 // pred_check_branch
          %226 = sbr.rel (%p224) target = $region24
        $region23: #{tpu_custom_call.1} parent=11 // pred_region
          %s228 = ssub.s32 36864, 36864
          %229 = vsyncadd [#allocation6], %s228
          %s230 = sshll.u32 [#allocation5], 4
          %s231 = int_to_ptr.vmem [resolvable:$true] %s230
          %236 = dma.hbm_to_vmem [thread:$0]  %s3, 36864, %s231, [#allocation6], 256, 256, 16
        $region24: #{tpu_custom_call.1} parent=11 // pred_fallthru
          _
        // Predicated region
        $region25: #{tpu_custom_call.1} parent=11 // pred_check
          %p237 = pneg %p147
        $region26: #{tpu_custom_call.1} parent=11 // pred_check_branch
          %239 = sbr.rel (%p237) target = $region28
        $region27: #{tpu_custom_call.1} parent=11 // pred_region
          _
        $region28: #{tpu_custom_call.1} parent=11 // pred_fallthru
          _
      $region12: #{tpu_custom_call.1} parent=5 // pred_fallthru
        _
      %p240 = scmp.lt.s32.totalorder %s23, 2
      // Predicated region
      $region29: #{tpu_custom_call.1} parent=5 // pred_check
        %p241 = pneg %p240
      $region30: #{tpu_custom_call.1} parent=5 // pred_check_branch
        %243 = sbr.rel (%p241) target = $region32
      $region31: #{tpu_custom_call.1} parent=5 // pred_region
        // Predicated region
        $region33: #{tpu_custom_call.1} parent=31 // pred_check
          %p244 = pneg %p57
        $region34: #{tpu_custom_call.1} parent=31 // pred_check_branch
          %246 = sbr.rel (%p244) target = $region36
        $region35: #{tpu_custom_call.1} parent=31 // pred_region
          %s247 = sand.u32 %s47, 1
          %s248 = scalar_lea.sflag [#allocation3], %s247
          %s249 = sand.u32 %s47, 1
          %s250 = smul.addr %s249, 8
          %s251 = scalar_lea.vmem [#allocation2], %s250
          %s252 = smul.u32 2, %s31
          %s254 = ssub.s32 128, 128
          %255 = vsyncadd %s248, %s254
          %s256 = smul.addr %s30, 2
          %s257 = sadd.s32 %s252, %s256
          %s258 = smul.addr %s257, 64
          %s259 = scalar_lea.hbm %s0, %s258
          %s261 = sshll.u32 %s251, 4
          %s262 = int_to_ptr.vmem [resolvable:$true] %s261
          %264 = dma.hbm_to_vmem [thread:$0]  %s259, 128, %s262, %s248
        $region36: #{tpu_custom_call.1} parent=31 // pred_fallthru
          _
      $region32: #{tpu_custom_call.1} parent=5 // pred_fallthru
        _
      %p265 = scmp.le.s32.totalorder 1, %s23
      %p266 = scmp.lt.s32.totalorder %s23, 3
      %p267 = pnand %p265, %p266
      %p268 = pneg %p267
      // Predicated region
      $region37: #{tpu_custom_call.1} parent=5 // pred_check
        _
      $region38: #{tpu_custom_call.1} parent=5 // pred_check_branch
        %270 = sbr.rel (%p267) target = $region40
      $region39: #{tpu_custom_call.1} parent=5 // pred_region
        %s271 = ssub.s32 %s23, 1
        %s272 = sand.u32 %s50, 1
        %s273 = scalar_lea.sflag [#allocation3], %s272
        %s274 = sand.u32 %s50, 1
        %s275 = smul.addr %s274, 8
        %s276 = scalar_lea.vmem [#allocation2], %s275
        // Predicated region
        $region41: #{tpu_custom_call.1} parent=39 // pred_check
          %p277 = pneg %p63
        $region42: #{tpu_custom_call.1} parent=39 // pred_check_branch
          %279 = sbr.rel (%p277) target = $region44
        $region43: #{tpu_custom_call.1} parent=39 // pred_region
          %280 = dma.done %s273, 128
        $region44: #{tpu_custom_call.1} parent=39 // pred_fallthru
          _
        // Predicated region
        $region45: #{tpu_custom_call.1} parent=39 // pred_check
          %p281 = pneg %p126
        $region46: #{tpu_custom_call.1} parent=39 // pred_check_branch
          %283 = sbr.rel (%p281) target = $region48
        $region47: #{tpu_custom_call.1} parent=39 // pred_region
          %284 = dma.done [#allocation6], 36864
        $region48: #{tpu_custom_call.1} parent=39 // pred_fallthru
          _
        %s285 = sand.u32 %s50, 1
        %s286 = scalar_lea.sflag [#allocation3], %s285
        %s287 = sand.u32 %s50, 1
        %s288 = smul.addr %s287, 8
        %s289 = scalar_lea.vmem [#allocation2], %s288
        %p290 = pneg %p63
        %p291 = pneg %p60
        %p292 = pneg %p84
        %p293 = pneg %p81
        %p294 = pneg %p105
        %p295 = pneg %p102
        %p296 = pneg %p126
        %p297 = pneg %p123
        %p298 = pneg %p147
        %p299 = pneg %p144
        %p300 = pneg %p175
        %p301 = pneg %p172
        %s302 = sand.u32 %s162, 1
        %s303 = scalar_lea.sflag [#allocation4], %s302
        %s304 = sand.u32 %s162, 1
        %s305 = smul.addr %s304, 768
        %s306 = scalar_lea.vmem [#allocation7], %s305
        %p307 = pneg %p203
        %p308 = pneg %p200
        %s309 = sand.u32 %s190, 1
        %s310 = scalar_lea.sflag [#allocation9], %s309
        %s311 = sand.u32 %s190, 1
        %s312 = smul.addr %s311, 1536
        %s313 = scalar_lea.vmem [#allocation8], %s312
        %s314 = smul.u32 2, %s33
        %s315 = smul.u32 2, %s33
        %s316 = smul.u32 2, %s33
        %v317 = vld [vmem:[%s1] sm:$0xff]
        %v318 = vld [vmem:[%s1 + $0x8] sm:$0xff]
        %v319 = vld [vmem:[%s1 + $0x10] sm:$0xff]
        %v320 = vld [vmem:[%s1 + $0x18] sm:$0xff]
        %v321 = vld [vmem:[%s1 + $0x20] sm:$0xff]
        %v322 = vld [vmem:[%s1 + $0x28] sm:$0xff]
        %v323 = vld [vmem:[%s1 + $0x30] sm:$0xff]
        %v324 = vld [vmem:[%s1 + $0x38] sm:$0xff]
        %v325 = vld [vmem:[%s1 + $0x40] sm:$0xff]
        %v326 = vld [vmem:[%s1 + $0x48] sm:$0xff]
        %v327 = vld [vmem:[%s1 + $0x50] sm:$0xff]
        %v328 = vld [vmem:[%s1 + $0x58] sm:$0xff]
        %v329 = vld [vmem:[%s1 + $0x60] sm:$0xff]
        %v330 = vld [vmem:[%s1 + $0x68] sm:$0xff]
        %v331 = vld [vmem:[%s1 + $0x70] sm:$0xff]
        %v332 = vld [vmem:[%s1 + $0x78] sm:$0xff]
        %v333 = vld [vmem:[%s1 + $0x80] sm:$0xff]
        %v334 = vld [vmem:[%s1 + $0x88] sm:$0xff]
        %v335 = vld [vmem:[%s1 + $0x90] sm:$0xff]
        %v336 = vld [vmem:[%s1 + $0x98] sm:$0xff]
        %v337 = vld [vmem:[%s1 + $0xa0] sm:$0xff]
        %v338 = vld [vmem:[%s1 + $0xa8] sm:$0xff]
        %v339 = vld [vmem:[%s1 + $0xb0] sm:$0xff]
        %v340 = vld [vmem:[%s1 + $0xb8] sm:$0xff]
        %v341 = vld [vmem:[%s1 + $0xc0] sm:$0xff]
        %v342 = vld [vmem:[%s1 + $0xc8] sm:$0xff]
        %v343 = vld [vmem:[%s1 + $0xd0] sm:$0xff]
        %v344 = vld [vmem:[%s1 + $0xd8] sm:$0xff]
        %v345 = vld [vmem:[%s1 + $0xe0] sm:$0xff]
        %v346 = vld [vmem:[%s1 + $0xe8] sm:$0xff]
        %v347 = vld [vmem:[%s1 + $0xf0] sm:$0xff]
        %v348 = vld [vmem:[%s1 + $0xf8] sm:$0xff]
        %v349 = vld [vmem:[%s276] sm:$0xff]
        %v350 = vld [vmem:[%s2] sm:$0xff]
        %v351 = vld [vmem:[%s2 + $0x8] sm:$0xff]
        %v352 = vld [vmem:[%s2 + $0x10] sm:$0xff]
        %v353 = vld [vmem:[%s2 + $0x18] sm:$0xff]
        %v354 = vld [vmem:[%s2 + $0x20] sm:$0xff]
        %v355 = vld [vmem:[%s2 + $0x28] sm:$0xff]
        %v356 = vld [vmem:[%s2 + $0x30] sm:$0xff]
        %v357 = vld [vmem:[%s2 + $0x38] sm:$0xff]
        %v358 = vld [vmem:[%s2 + $0x40] sm:$0xff]
        %v359 = vld [vmem:[%s2 + $0x48] sm:$0xff]
        %v360 = vld [vmem:[%s2 + $0x50] sm:$0xff]
        %v361 = vld [vmem:[%s2 + $0x58] sm:$0xff]
        %v362 = vld [vmem:[%s2 + $0x60] sm:$0xff]
        %v363 = vld [vmem:[%s2 + $0x68] sm:$0xff]
        %v364 = vld [vmem:[%s2 + $0x70] sm:$0xff]
        %v365 = vld [vmem:[%s2 + $0x78] sm:$0xff]
        %v366 = vld [vmem:[%s2 + $0x80] sm:$0xff]
        %v367 = vld [vmem:[%s2 + $0x88] sm:$0xff]
        %v368 = vld [vmem:[%s2 + $0x90] sm:$0xff]
        %v369 = vld [vmem:[%s2 + $0x98] sm:$0xff]
        %v370 = vld [vmem:[%s2 + $0xa0] sm:$0xff]
        %v371 = vld [vmem:[%s2 + $0xa8] sm:$0xff]
        %v372 = vld [vmem:[%s2 + $0xb0] sm:$0xff]
        %v373 = vld [vmem:[%s2 + $0xb8] sm:$0xff]
        %v374 = vld [vmem:[%s2 + $0xc0] sm:$0xff]
        %v375 = vld [vmem:[%s2 + $0xc8] sm:$0xff]
        %v376 = vld [vmem:[%s2 + $0xd0] sm:$0xff]
        %v377 = vld [vmem:[%s2 + $0xd8] sm:$0xff]
        %v378 = vld [vmem:[%s2 + $0xe0] sm:$0xff]
        %v379 = vld [vmem:[%s2 + $0xe8] sm:$0xff]
        %v380 = vld [vmem:[%s2 + $0xf0] sm:$0xff]
        %v381 = vld [vmem:[%s2 + $0xf8] sm:$0xff]
        %383 = vset.pattern.permute.xlu0 0
        %384 = vperm.xlu0 %383, %v350
        %v385 = vpop.permute.xlu0 %384
        %388 = vset.pattern.permute.xlu0 0
        %389 = vperm.xlu0 %388, %v351
        %v390 = vpop.permute.xlu0 %389
        %393 = vset.pattern.permute.xlu0 0
        %394 = vperm.xlu0 %393, %v352
        %v395 = vpop.permute.xlu0 %394
        %398 = vset.pattern.permute.xlu0 0
        %399 = vperm.xlu0 %398, %v353
        %v400 = vpop.permute.xlu0 %399
        %403 = vset.pattern.permute.xlu0 0
        %404 = vperm.xlu0 %403, %v354
        %v405 = vpop.permute.xlu0 %404
        %408 = vset.pattern.permute.xlu0 0
        %409 = vperm.xlu0 %408, %v355
        %v410 = vpop.permute.xlu0 %409
        %413 = vset.pattern.permute.xlu0 0
        %414 = vperm.xlu0 %413, %v356
        %v415 = vpop.permute.xlu0 %414
        %418 = vset.pattern.permute.xlu0 0
        %419 = vperm.xlu0 %418, %v357
        %v420 = vpop.permute.xlu0 %419
        %423 = vset.pattern.permute.xlu0 0
        %424 = vperm.xlu0 %423, %v358
        %v425 = vpop.permute.xlu0 %424
        %428 = vset.pattern.permute.xlu0 0
        %429 = vperm.xlu0 %428, %v359
        %v430 = vpop.permute.xlu0 %429
        %433 = vset.pattern.permute.xlu0 0
        %434 = vperm.xlu0 %433, %v360
        %v435 = vpop.permute.xlu0 %434
        %438 = vset.pattern.permute.xlu0 0
        %439 = vperm.xlu0 %438, %v361
        %v440 = vpop.permute.xlu0 %439
        %443 = vset.pattern.permute.xlu0 0
        %444 = vperm.xlu0 %443, %v362
        %v445 = vpop.permute.xlu0 %444
        %448 = vset.pattern.permute.xlu0 0
        %449 = vperm.xlu0 %448, %v363
        %v450 = vpop.permute.xlu0 %449
        %453 = vset.pattern.permute.xlu0 0
        %454 = vperm.xlu0 %453, %v364
        %v455 = vpop.permute.xlu0 %454
        %458 = vset.pattern.permute.xlu0 0
        %459 = vperm.xlu0 %458, %v365
        %v460 = vpop.permute.xlu0 %459
        %463 = vset.pattern.permute.xlu0 0
        %464 = vperm.xlu0 %463, %v366
        %v465 = vpop.permute.xlu0 %464
        %468 = vset.pattern.permute.xlu0 0
        %469 = vperm.xlu0 %468, %v367
        %v470 = vpop.permute.xlu0 %469
        %473 = vset.pattern.permute.xlu0 0
        %474 = vperm.xlu0 %473, %v368
        %v475 = vpop.permute.xlu0 %474
        %478 = vset.pattern.permute.xlu0 0
        %479 = vperm.xlu0 %478, %v369
        %v480 = vpop.permute.xlu0 %479
        %483 = vset.pattern.permute.xlu0 0
        %484 = vperm.xlu0 %483, %v370
        %v485 = vpop.permute.xlu0 %484
        %488 = vset.pattern.permute.xlu0 0
        %489 = vperm.xlu0 %488, %v371
        %v490 = vpop.permute.xlu0 %489
        %493 = vset.pattern.permute.xlu0 0
        %494 = vperm.xlu0 %493, %v372
        %v495 = vpop.permute.xlu0 %494
        %498 = vset.pattern.permute.xlu0 0
        %499 = vperm.xlu0 %498, %v373
        %v500 = vpop.permute.xlu0 %499
        %503 = vset.pattern.permute.xlu0 0
        %504 = vperm.xlu0 %503, %v374
        %v505 = vpop.permute.xlu0 %504
        %508 = vset.pattern.permute.xlu0 0
        %509 = vperm.xlu0 %508, %v375
        %v510 = vpop.permute.xlu0 %509
        %513 = vset.pattern.permute.xlu0 0
        %514 = vperm.xlu0 %513, %v376
        %v515 = vpop.permute.xlu0 %514
        %518 = vset.pattern.permute.xlu0 0
        %519 = vperm.xlu0 %518, %v377
        %v520 = vpop.permute.xlu0 %519
        %523 = vset.pattern.permute.xlu0 0
        %524 = vperm.xlu0 %523, %v378
        %v525 = vpop.permute.xlu0 %524
        %528 = vset.pattern.permute.xlu0 0
        %529 = vperm.xlu0 %528, %v379
        %v530 = vpop.permute.xlu0 %529
        %533 = vset.pattern.permute.xlu0 0
        %534 = vperm.xlu0 %533, %v380
        %v535 = vpop.permute.xlu0 %534
        %538 = vset.pattern.permute.xlu0 0
        %539 = vperm.xlu0 %538, %v381
        %v540 = vpop.permute.xlu0 %539
        %v543 = vcombine.high %v349, %v349
        %vm544 = vcmask 31744
        %v546 = vsel %vm544, %v317, 0
        %v549 = vsel %vm544, %v318, 0
        %v552 = vsel %vm544, %v319, 0
        %v555 = vsel %vm544, %v320, 0
        %v558 = vsel %vm544, %v321, 0
        %v561 = vsel %vm544, %v322, 0
        %v564 = vsel %vm544, %v323, 0
        %v567 = vsel %vm544, %v324, 0
        %v570 = vsel %vm544, %v325, 0
        %v573 = vsel %vm544, %v326, 0
        %v576 = vsel %vm544, %v327, 0
        %v579 = vsel %vm544, %v328, 0
        %v582 = vsel %vm544, %v329, 0
        %v585 = vsel %vm544, %v330, 0
        %v588 = vsel %vm544, %v331, 0
        %v591 = vsel %vm544, %v332, 0
        %v594 = vsel %vm544, %v333, 0
        %v597 = vsel %vm544, %v334, 0
        %v600 = vsel %vm544, %v335, 0
        %v603 = vsel %vm544, %v336, 0
        %v606 = vsel %vm544, %v337, 0
        %v609 = vsel %vm544, %v338, 0
        %v612 = vsel %vm544, %v339, 0
        %v615 = vsel %vm544, %v340, 0
        %v618 = vsel %vm544, %v341, 0
        %v621 = vsel %vm544, %v342, 0
        %v624 = vsel %vm544, %v343, 0
        %v627 = vsel %vm544, %v344, 0
        %v630 = vsel %vm544, %v345, 0
        %v633 = vsel %vm544, %v346, 0
        %v636 = vsel %vm544, %v347, 0
        %v639 = vsel %vm544, %v348, 0
        %vm641 = vcmask 1043456
        %v642 = vsel %vm641, %v349, 0
        %v644 = vsel %vm641, %v543, 0
        %646 = vmatprep.subr.mxu0 0.0
        %647 = vmatpush1.msra.mxu0 0.0
        %648 = vmatprep.subr.mxu0 0.0
        %649 = vmatpush1.msra.mxu0 0.0
        %650 = vmatprep.subr.mxu0 0.0
        %651 = vmatpush1.msra.mxu0 0.0
        %652 = vmatprep.subr.mxu0 0.0
        %653 = vmatpush1.msra.mxu0 0.0
        %654 = vmatprep.subr.mxu0 0.0
        %655 = vmatpush1.msra.mxu0 0.0
        %656 = vmatprep.subr.mxu0 0.0
        %657 = vmatpush1.msra.mxu0 0.0
        %658 = vmatprep.subr.mxu0 0.0
        %659 = vmatpush1.msra.mxu0 0.0
        %660 = vmatprep.subr.mxu0 0.0
        %661 = vmatpush1.msra.mxu0 0.0
        %662 = vmatprep.subr.mxu0 0.0
        %663 = vmatpush1.msra.mxu0 0.0
        %664 = vmatprep.subr.mxu0 0.0
        %665 = vmatpush1.msra.mxu0 0.0
        %666 = vmatprep.subr.mxu0 0.0
        %667 = vmatpush1.msra.mxu0 0.0
        %668 = vmatprep.subr.mxu0 0.0
        %669 = vmatpush1.msra.mxu0 0.0
        %670 = vmatprep.subr.mxu0 0.0
        %671 = vmatpush1.msra.mxu0 0.0
        %672 = vmatprep.subr.mxu0 0.0
        %673 = vmatpush1.msra.mxu0 0.0
        %674 = vmatprep.subr.mxu0 0.0
        %675 = vmatpush1.msra.mxu0 0.0
        %676 = vmatprep.subr.mxu0 %v644
        %677 = vmatpush1.msra.mxu0 %v642
        %678 = vmatprep.subr.mxu0 0.0
        %679 = vmatpush2.msra.mxu0 0.0
        %680 = vmatprep.subr.mxu0 0.0
        %681 = vmatpush2.msra.mxu0 0.0
        %682 = vmatprep.subr.mxu0 0.0
        %683 = vmatpush2.msra.mxu0 0.0
        %684 = vmatprep.subr.mxu0 0.0
        %685 = vmatpush2.msra.mxu0 0.0
        %686 = vmatprep.subr.mxu0 0.0
        %687 = vmatpush2.msra.mxu0 0.0
        %688 = vmatprep.subr.mxu0 0.0
        %689 = vmatpush2.msra.mxu0 0.0
        %690 = vmatprep.subr.mxu0 0.0
        %691 = vmatpush2.msra.mxu0 0.0
        %692 = vmatprep.subr.mxu0 0.0
        %693 = vmatpush2.msra.mxu0 0.0
        %694 = vmatprep.subr.mxu0 0.0
        %695 = vmatpush2.msra.mxu0 0.0
        %696 = vmatprep.subr.mxu0 0.0
        %697 = vmatpush2.msra.mxu0 0.0
        %698 = vmatprep.subr.mxu0 0.0
        %699 = vmatpush2.msra.mxu0 0.0
        %700 = vmatprep.subr.mxu0 0.0
        %701 = vmatpush2.msra.mxu0 0.0
        %702 = vmatprep.subr.mxu0 0.0
        %703 = vmatpush2.msra.mxu0 0.0
        %704 = vmatprep.subr.mxu0 0.0
        %705 = vmatpush2.msra.mxu0 0.0
        %706 = vmatprep.subr.mxu0 0.0
        %707 = vmatpush2.msra.mxu0 0.0
        %708 = vmatprep.subr.mxu0 0.0
        %709 = vmatpush2.msra.mxu0 0.0
        %710 = vmatprep.mubr.f32.mxu0 0.0
        %711 = vmatmul.mubr.f32.gmra.mxu0 %v546
        %v712 = vpop.f32.mrf.mxu0
        %v713 = vadd.f32 %v385, %v712
        %v714 = vpop.f32.mrf.mxu0
        %v715 = vadd.f32 %v385, %v714
        %716 = vmatprep.mubr.f32.mxu0 0.0
        %717 = vmatmul.mubr.f32.gmra.mxu0 %v549
        %v718 = vpop.f32.mrf.mxu0
        %v719 = vadd.f32 %v390, %v718
        %v720 = vpop.f32.mrf.mxu0
        %v721 = vadd.f32 %v390, %v720
        %722 = vmatprep.mubr.f32.mxu0 0.0
        %723 = vmatmul.mubr.f32.gmra.mxu0 %v552
        %v724 = vpop.f32.mrf.mxu0
        %v725 = vadd.f32 %v395, %v724
        %v726 = vpop.f32.mrf.mxu0
        %v727 = vadd.f32 %v395, %v726
        %728 = vmatprep.mubr.f32.mxu0 0.0
        %729 = vmatmul.mubr.f32.gmra.mxu0 %v555
        %v730 = vpop.f32.mrf.mxu0
        %v731 = vadd.f32 %v400, %v730
        %v732 = vpop.f32.mrf.mxu0
        %v733 = vadd.f32 %v400, %v732
        %734 = vmatprep.mubr.f32.mxu0 0.0
        %735 = vmatmul.mubr.f32.gmra.mxu0 %v558
        %v736 = vpop.f32.mrf.mxu0
        %v737 = vadd.f32 %v405, %v736
        %v738 = vpop.f32.mrf.mxu0
        %v739 = vadd.f32 %v405, %v738
        %740 = vmatprep.mubr.f32.mxu0 0.0
        %741 = vmatmul.mubr.f32.gmra.mxu0 %v561
        %v742 = vpop.f32.mrf.mxu0
        %v743 = vadd.f32 %v410, %v742
        %v744 = vpop.f32.mrf.mxu0
        %v745 = vadd.f32 %v410, %v744
        %746 = vmatprep.mubr.f32.mxu0 0.0
        %747 = vmatmul.mubr.f32.gmra.mxu0 %v564
        %v748 = vpop.f32.mrf.mxu0
        %v749 = vadd.f32 %v415, %v748
        %v750 = vpop.f32.mrf.mxu0
        %v751 = vadd.f32 %v415, %v750
        %752 = vmatprep.mubr.f32.mxu0 0.0
        %753 = vmatmul.mubr.f32.gmra.mxu0 %v567
        %v754 = vpop.f32.mrf.mxu0
        %v755 = vadd.f32 %v420, %v754
        %v756 = vpop.f32.mrf.mxu0
        %v757 = vadd.f32 %v420, %v756
        %758 = vmatprep.mubr.f32.mxu0 0.0
        %759 = vmatmul.mubr.f32.gmra.mxu0 %v570
        %v760 = vpop.f32.mrf.mxu0
        %v761 = vadd.f32 %v425, %v760
        %v762 = vpop.f32.mrf.mxu0
        %v763 = vadd.f32 %v425, %v762
        %764 = vmatprep.mubr.f32.mxu0 0.0
        %765 = vmatmul.mubr.f32.gmra.mxu0 %v573
        %v766 = vpop.f32.mrf.mxu0
        %v767 = vadd.f32 %v430, %v766
        %v768 = vpop.f32.mrf.mxu0
        %v769 = vadd.f32 %v430, %v768
        %770 = vmatprep.mubr.f32.mxu0 0.0
        %771 = vmatmul.mubr.f32.gmra.mxu0 %v576
        %v772 = vpop.f32.mrf.mxu0
        %v773 = vadd.f32 %v435, %v772
        %v774 = vpop.f32.mrf.mxu0
        %v775 = vadd.f32 %v435, %v774
        %776 = vmatprep.mubr.f32.mxu0 0.0
        %777 = vmatmul.mubr.f32.gmra.mxu0 %v579
        %v778 = vpop.f32.mrf.mxu0
        %v779 = vadd.f32 %v440, %v778
        %v780 = vpop.f32.mrf.mxu0
        %v781 = vadd.f32 %v440, %v780
        %782 = vmatprep.mubr.f32.mxu0 0.0
        %783 = vmatmul.mubr.f32.gmra.mxu0 %v582
        %v784 = vpop.f32.mrf.mxu0
        %v785 = vadd.f32 %v445, %v784
        %v786 = vpop.f32.mrf.mxu0
        %v787 = vadd.f32 %v445, %v786
        %788 = vmatprep.mubr.f32.mxu0 0.0
        %789 = vmatmul.mubr.f32.gmra.mxu0 %v585
        %v790 = vpop.f32.mrf.mxu0
        %v791 = vadd.f32 %v450, %v790
        %v792 = vpop.f32.mrf.mxu0
        %v793 = vadd.f32 %v450, %v792
        %794 = vmatprep.mubr.f32.mxu0 0.0
        %795 = vmatmul.mubr.f32.gmra.mxu0 %v588
        %v796 = vpop.f32.mrf.mxu0
        %v797 = vadd.f32 %v455, %v796
        %v798 = vpop.f32.mrf.mxu0
        %v799 = vadd.f32 %v455, %v798
        %800 = vmatprep.mubr.f32.mxu0 0.0
        %801 = vmatmul.mubr.f32.gmra.mxu0 %v591
        %v802 = vpop.f32.mrf.mxu0
        %v803 = vadd.f32 %v460, %v802
        %v804 = vpop.f32.mrf.mxu0
        %v805 = vadd.f32 %v460, %v804
        %806 = vmatprep.mubr.f32.mxu0 0.0
        %807 = vmatmul.mubr.f32.gmra.mxu0 %v594
        %v808 = vpop.f32.mrf.mxu0
        %v809 = vadd.f32 %v465, %v808
        %v810 = vpop.f32.mrf.mxu0
        %v811 = vadd.f32 %v465, %v810
        %812 = vmatprep.mubr.f32.mxu0 0.0
        %813 = vmatmul.mubr.f32.gmra.mxu0 %v597
        %v814 = vpop.f32.mrf.mxu0
        %v815 = vadd.f32 %v470, %v814
        %v816 = vpop.f32.mrf.mxu0
        %v817 = vadd.f32 %v470, %v816
        %818 = vmatprep.mubr.f32.mxu0 0.0
        %819 = vmatmul.mubr.f32.gmra.mxu0 %v600
        %v820 = vpop.f32.mrf.mxu0
        %v821 = vadd.f32 %v475, %v820
        %v822 = vpop.f32.mrf.mxu0
        %v823 = vadd.f32 %v475, %v822
        %824 = vmatprep.mubr.f32.mxu0 0.0
        %825 = vmatmul.mubr.f32.gmra.mxu0 %v603
        %v826 = vpop.f32.mrf.mxu0
        %v827 = vadd.f32 %v480, %v826
        %v828 = vpop.f32.mrf.mxu0
        %v829 = vadd.f32 %v480, %v828
        %830 = vmatprep.mubr.f32.mxu0 0.0
        %831 = vmatmul.mubr.f32.gmra.mxu0 %v606
        %v832 = vpop.f32.mrf.mxu0
        %v833 = vadd.f32 %v485, %v832
        %v834 = vpop.f32.mrf.mxu0
        %v835 = vadd.f32 %v485, %v834
        %836 = vmatprep.mubr.f32.mxu0 0.0
        %837 = vmatmul.mubr.f32.gmra.mxu0 %v609
        %v838 = vpop.f32.mrf.mxu0
        %v839 = vadd.f32 %v490, %v838
        %v840 = vpop.f32.mrf.mxu0
        %v841 = vadd.f32 %v490, %v840
        %842 = vmatprep.mubr.f32.mxu0 0.0
        %843 = vmatmul.mubr.f32.gmra.mxu0 %v612
        %v844 = vpop.f32.mrf.mxu0
        %v845 = vadd.f32 %v495, %v844
        %v846 = vpop.f32.mrf.mxu0
        %v847 = vadd.f32 %v495, %v846
        %848 = vmatprep.mubr.f32.mxu0 0.0
        %849 = vmatmul.mubr.f32.gmra.mxu0 %v615
        %v850 = vpop.f32.mrf.mxu0
        %v851 = vadd.f32 %v500, %v850
        %v852 = vpop.f32.mrf.mxu0
        %v853 = vadd.f32 %v500, %v852
        %854 = vmatprep.mubr.f32.mxu0 0.0
        %855 = vmatmul.mubr.f32.gmra.mxu0 %v618
        %v856 = vpop.f32.mrf.mxu0
        %v857 = vadd.f32 %v505, %v856
        %v858 = vpop.f32.mrf.mxu0
        %v859 = vadd.f32 %v505, %v858
        %860 = vmatprep.mubr.f32.mxu0 0.0
        %861 = vmatmul.mubr.f32.gmra.mxu0 %v621
        %v862 = vpop.f32.mrf.mxu0
        %v863 = vadd.f32 %v510, %v862
        %v864 = vpop.f32.mrf.mxu0
        %v865 = vadd.f32 %v510, %v864
        %866 = vmatprep.mubr.f32.mxu0 0.0
        %867 = vmatmul.mubr.f32.gmra.mxu0 %v624
        %v868 = vpop.f32.mrf.mxu0
        %v869 = vadd.f32 %v515, %v868
        %v870 = vpop.f32.mrf.mxu0
        %v871 = vadd.f32 %v515, %v870
        %872 = vmatprep.mubr.f32.mxu0 0.0
        %873 = vmatmul.mubr.f32.gmra.mxu0 %v627
        %v874 = vpop.f32.mrf.mxu0
        %v875 = vadd.f32 %v520, %v874
        %v876 = vpop.f32.mrf.mxu0
        %v877 = vadd.f32 %v520, %v876
        %878 = vmatprep.mubr.f32.mxu0 0.0
        %879 = vmatmul.mubr.f32.gmra.mxu0 %v630
        %v880 = vpop.f32.mrf.mxu0
        %v881 = vadd.f32 %v525, %v880
        %v882 = vpop.f32.mrf.mxu0
        %v883 = vadd.f32 %v525, %v882
        %884 = vmatprep.mubr.f32.mxu0 0.0
        %885 = vmatmul.mubr.f32.gmra.mxu0 %v633
        %v886 = vpop.f32.mrf.mxu0
        %v887 = vadd.f32 %v530, %v886
        %v888 = vpop.f32.mrf.mxu0
        %v889 = vadd.f32 %v530, %v888
        %890 = vmatprep.mubr.f32.mxu0 0.0
        %891 = vmatmul.mubr.f32.gmra.mxu0 %v636
        %v892 = vpop.f32.mrf.mxu0
        %v893 = vadd.f32 %v535, %v892
        %v894 = vpop.f32.mrf.mxu0
        %v895 = vadd.f32 %v535, %v894
        %896 = vmatprep.mubr.f32.mxu0 0.0
        %897 = vmatmul.mubr.f32.gmra.mxu0 %v639
        %v898 = vpop.f32.mrf.mxu0
        %v899 = vadd.f32 %v540, %v898
        %v900 = vpop.f32.mrf.mxu0
        %v901 = vadd.f32 %v540, %v900
        %902 = vdwg.mxu0
        %v903 = vmax.f32 %v713, 0.0
        %v904 = vmax.f32 %v715, 0.0
        %v905 = vmax.f32 %v719, 0.0
        %v906 = vmax.f32 %v721, 0.0
        %v907 = vmax.f32 %v725, 0.0
        %v908 = vmax.f32 %v727, 0.0
        %v909 = vmax.f32 %v731, 0.0
        %v910 = vmax.f32 %v733, 0.0
        %v911 = vmax.f32 %v737, 0.0
        %v912 = vmax.f32 %v739, 0.0
        %v913 = vmax.f32 %v743, 0.0
        %v914 = vmax.f32 %v745, 0.0
        %v915 = vmax.f32 %v749, 0.0
        %v916 = vmax.f32 %v751, 0.0
        %v917 = vmax.f32 %v755, 0.0
        %v918 = vmax.f32 %v757, 0.0
        %v919 = vmax.f32 %v761, 0.0
        %v920 = vmax.f32 %v763, 0.0
        %v921 = vmax.f32 %v767, 0.0
        %v922 = vmax.f32 %v769, 0.0
        %v923 = vmax.f32 %v773, 0.0
        %v924 = vmax.f32 %v775, 0.0
        %v925 = vmax.f32 %v779, 0.0
        %v926 = vmax.f32 %v781, 0.0
        %v927 = vmax.f32 %v785, 0.0
        %v928 = vmax.f32 %v787, 0.0
        %v929 = vmax.f32 %v791, 0.0
        %v930 = vmax.f32 %v793, 0.0
        %v931 = vmax.f32 %v797, 0.0
        %v932 = vmax.f32 %v799, 0.0
        %v933 = vmax.f32 %v803, 0.0
        %v934 = vmax.f32 %v805, 0.0
        %v935 = vmax.f32 %v809, 0.0
        %v936 = vmax.f32 %v811, 0.0
        %v937 = vmax.f32 %v815, 0.0
        %v938 = vmax.f32 %v817, 0.0
        %v939 = vmax.f32 %v821, 0.0
        %v940 = vmax.f32 %v823, 0.0
        %v941 = vmax.f32 %v827, 0.0
        %v942 = vmax.f32 %v829, 0.0
        %v943 = vmax.f32 %v833, 0.0
        %v944 = vmax.f32 %v835, 0.0
        %v945 = vmax.f32 %v839, 0.0
        %v946 = vmax.f32 %v841, 0.0
        %v947 = vmax.f32 %v845, 0.0
        %v948 = vmax.f32 %v847, 0.0
        %v949 = vmax.f32 %v851, 0.0
        %v950 = vmax.f32 %v853, 0.0
        %v951 = vmax.f32 %v857, 0.0
        %v952 = vmax.f32 %v859, 0.0
        %v953 = vmax.f32 %v863, 0.0
        %v954 = vmax.f32 %v865, 0.0
        %v955 = vmax.f32 %v869, 0.0
        %v956 = vmax.f32 %v871, 0.0
        %v957 = vmax.f32 %v875, 0.0
        %v958 = vmax.f32 %v877, 0.0
        %v959 = vmax.f32 %v881, 0.0
        %v960 = vmax.f32 %v883, 0.0
        %v961 = vmax.f32 %v887, 0.0
        %v962 = vmax.f32 %v889, 0.0
        %v963 = vmax.f32 %v893, 0.0
        %v964 = vmax.f32 %v895, 0.0
        %v965 = vmax.f32 %v899, 0.0
        %v966 = vmax.f32 %v901, 0.0
        %v967 = vld [vmem:[#allocation5] sm:$0xff]
        %v968 = vld [vmem:[#allocation5 + $0x8] sm:$0xff]
        %v969 = vld [vmem:[#allocation5 + $0x10] sm:$0xff]
        %v970 = vld [vmem:[#allocation5 + $0x18] sm:$0xff]
        %v971 = vld [vmem:[#allocation5 + $0x20] sm:$0xff]
        %v972 = vld [vmem:[#allocation5 + $0x28] sm:$0xff]
        %v973 = vld [vmem:[#allocation5 + $0x30] sm:$0xff]
        %v974 = vld [vmem:[#allocation5 + $0x38] sm:$0xff]
        %v975 = vld [vmem:[#allocation5 + $0x40] sm:$0xff]
        %v976 = vld [vmem:[#allocation5 + $0x48] sm:$0xff]
        %v977 = vld [vmem:[#allocation5 + $0x50] sm:$0xff]
        %v978 = vld [vmem:[#allocation5 + $0x58] sm:$0xff]
        %v979 = vld [vmem:[#allocation5 + $0x60] sm:$0xff]
        %v980 = vld [vmem:[#allocation5 + $0x68] sm:$0xff]
        %v981 = vld [vmem:[#allocation5 + $0x70] sm:$0xff]
        %v982 = vld [vmem:[#allocation5 + $0x78] sm:$0xff]
        %v983 = vld [vmem:[#allocation5 + $0x80] sm:$0xff]
        %v984 = vld [vmem:[#allocation5 + $0x88] sm:$0xff]
        %v985 = vld [vmem:[#allocation5 + $0x90] sm:$0xff]
        %v986 = vld [vmem:[#allocation5 + $0x98] sm:$0xff]
        %v987 = vld [vmem:[#allocation5 + $0xa0] sm:$0xff]
        %v988 = vld [vmem:[#allocation5 + $0xa8] sm:$0xff]
        %v989 = vld [vmem:[#allocation5 + $0xb0] sm:$0xff]
        %v990 = vld [vmem:[#allocation5 + $0xb8] sm:$0xff]
        %v991 = vld [vmem:[#allocation5 + $0xc0] sm:$0xff]
        %v992 = vld [vmem:[#allocation5 + $0xc8] sm:$0xff]
        %v993 = vld [vmem:[#allocation5 + $0xd0] sm:$0xff]
        %v994 = vld [vmem:[#allocation5 + $0xd8] sm:$0xff]
        %v995 = vld [vmem:[#allocation5 + $0xe0] sm:$0xff]
        %v996 = vld [vmem:[#allocation5 + $0xe8] sm:$0xff]
        %v997 = vld [vmem:[#allocation5 + $0xf0] sm:$0xff]
        %v998 = vld [vmem:[#allocation5 + $0xf8] sm:$0xff]
        %v999 = vld [vmem:[#allocation5 + $0x100] sm:$0xff]
        %v1000 = vld [vmem:[#allocation5 + $0x108] sm:$0xff]
        %v1001 = vld [vmem:[#allocation5 + $0x110] sm:$0xff]
        %v1002 = vld [vmem:[#allocation5 + $0x118] sm:$0xff]
        %v1003 = vld [vmem:[#allocation5 + $0x120] sm:$0xff]
        %v1004 = vld [vmem:[#allocation5 + $0x128] sm:$0xff]
        %v1005 = vld [vmem:[#allocation5 + $0x130] sm:$0xff]
        %v1006 = vld [vmem:[#allocation5 + $0x138] sm:$0xff]
        %v1007 = vld [vmem:[#allocation5 + $0x140] sm:$0xff]
        %v1008 = vld [vmem:[#allocation5 + $0x148] sm:$0xff]
        %v1009 = vld [vmem:[#allocation5 + $0x150] sm:$0xff]
        %v1010 = vld [vmem:[#allocation5 + $0x158] sm:$0xff]
        %v1011 = vld [vmem:[#allocation5 + $0x160] sm:$0xff]
        %v1012 = vld [vmem:[#allocation5 + $0x168] sm:$0xff]
        %v1013 = vld [vmem:[#allocation5 + $0x170] sm:$0xff]
        %v1014 = vld [vmem:[#allocation5 + $0x178] sm:$0xff]
        %v1015 = vld [vmem:[#allocation5 + $0x180] sm:$0xff]
        %v1016 = vld [vmem:[#allocation5 + $0x188] sm:$0xff]
        %v1017 = vld [vmem:[#allocation5 + $0x190] sm:$0xff]
        %v1018 = vld [vmem:[#allocation5 + $0x198] sm:$0xff]
        %v1019 = vld [vmem:[#allocation5 + $0x1a0] sm:$0xff]
        %v1020 = vld [vmem:[#allocation5 + $0x1a8] sm:$0xff]
        %v1021 = vld [vmem:[#allocation5 + $0x1b0] sm:$0xff]
        %v1022 = vld [vmem:[#allocation5 + $0x1b8] sm:$0xff]
        %v1023 = vld [vmem:[#allocation5 + $0x1c0] sm:$0xff]
        %v1024 = vld [vmem:[#allocation5 + $0x1c8] sm:$0xff]
        %v1025 = vld [vmem:[#allocation5 + $0x1d0] sm:$0xff]
        %v1026 = vld [vmem:[#allocation5 + $0x1d8] sm:$0xff]
        %v1027 = vld [vmem:[#allocation5 + $0x1e0] sm:$0xff]
        %v1028 = vld [vmem:[#allocation5 + $0x1e8] sm:$0xff]
        %v1029 = vld [vmem:[#allocation5 + $0x1f0] sm:$0xff]
        %v1030 = vld [vmem:[#allocation5 + $0x1f8] sm:$0xff]
        %v1031 = vld [vmem:[#allocation5 + $0x200] sm:$0xff]
        %v1032 = vld [vmem:[#allocation5 + $0x208] sm:$0xff]
        %v1033 = vld [vmem:[#allocation5 + $0x210] sm:$0xff]
        %v1034 = vld [vmem:[#allocation5 + $0x218] sm:$0xff]
        %v1035 = vld [vmem:[#allocation5 + $0x220] sm:$0xff]
        %v1036 = vld [vmem:[#allocation5 + $0x228] sm:$0xff]
        %v1037 = vld [vmem:[#allocation5 + $0x230] sm:$0xff]
        %v1038 = vld [vmem:[#allocation5 + $0x238] sm:$0xff]
        %v1039 = vld [vmem:[#allocation5 + $0x240] sm:$0xff]
        %v1040 = vld [vmem:[#allocation5 + $0x248] sm:$0xff]
        %v1041 = vld [vmem:[#allocation5 + $0x250] sm:$0xff]
        %v1042 = vld [vmem:[#allocation5 + $0x258] sm:$0xff]
        %v1043 = vld [vmem:[#allocation5 + $0x260] sm:$0xff]
        %v1044 = vld [vmem:[#allocation5 + $0x268] sm:$0xff]
        %v1045 = vld [vmem:[#allocation5 + $0x270] sm:$0xff]
        %v1046 = vld [vmem:[#allocation5 + $0x278] sm:$0xff]
        %v1047 = vld [vmem:[#allocation5 + $0x280] sm:$0xff]
        %v1048 = vld [vmem:[#allocation5 + $0x288] sm:$0xff]
        %v1049 = vld [vmem:[#allocation5 + $0x290] sm:$0xff]
        %v1050 = vld [vmem:[#allocation5 + $0x298] sm:$0xff]
        %v1051 = vld [vmem:[#allocation5 + $0x2a0] sm:$0xff]
        %v1052 = vld [vmem:[#allocation5 + $0x2a8] sm:$0xff]
        %v1053 = vld [vmem:[#allocation5 + $0x2b0] sm:$0xff]
        %v1054 = vld [vmem:[#allocation5 + $0x2b8] sm:$0xff]
        %v1055 = vld [vmem:[#allocation5 + $0x2c0] sm:$0xff]
        %v1056 = vld [vmem:[#allocation5 + $0x2c8] sm:$0xff]
        %v1057 = vld [vmem:[#allocation5 + $0x2d0] sm:$0xff]
        %v1058 = vld [vmem:[#allocation5 + $0x2d8] sm:$0xff]
        %v1059 = vld [vmem:[#allocation5 + $0x2e0] sm:$0xff]
        %v1060 = vld [vmem:[#allocation5 + $0x2e8] sm:$0xff]
        %v1061 = vld [vmem:[#allocation5 + $0x2f0] sm:$0xff]
        %v1062 = vld [vmem:[#allocation5 + $0x2f8] sm:$0xff]
        %v1063 = vld [vmem:[#allocation5 + $0x300] sm:$0xff]
        %v1064 = vld [vmem:[#allocation5 + $0x308] sm:$0xff]
        %v1065 = vld [vmem:[#allocation5 + $0x310] sm:$0xff]
        %v1066 = vld [vmem:[#allocation5 + $0x318] sm:$0xff]
        %v1067 = vld [vmem:[#allocation5 + $0x320] sm:$0xff]
        %v1068 = vld [vmem:[#allocation5 + $0x328] sm:$0xff]
        %v1069 = vld [vmem:[#allocation5 + $0x330] sm:$0xff]
        %v1070 = vld [vmem:[#allocation5 + $0x338] sm:$0xff]
        %v1071 = vld [vmem:[#allocation5 + $0x340] sm:$0xff]
        %v1072 = vld [vmem:[#allocation5 + $0x348] sm:$0xff]
        %v1073 = vld [vmem:[#allocation5 + $0x350] sm:$0xff]
        %v1074 = vld [vmem:[#allocation5 + $0x358] sm:$0xff]
        %v1075 = vld [vmem:[#allocation5 + $0x360] sm:$0xff]
        %v1076 = vld [vmem:[#allocation5 + $0x368] sm:$0xff]
        %v1077 = vld [vmem:[#allocation5 + $0x370] sm:$0xff]
        %v1078 = vld [vmem:[#allocation5 + $0x378] sm:$0xff]
        %v1079 = vld [vmem:[#allocation5 + $0x380] sm:$0xff]
        %v1080 = vld [vmem:[#allocation5 + $0x388] sm:$0xff]
        %v1081 = vld [vmem:[#allocation5 + $0x390] sm:$0xff]
        %v1082 = vld [vmem:[#allocation5 + $0x398] sm:$0xff]
        %v1083 = vld [vmem:[#allocation5 + $0x3a0] sm:$0xff]
        %v1084 = vld [vmem:[#allocation5 + $0x3a8] sm:$0xff]
        %v1085 = vld [vmem:[#allocation5 + $0x3b0] sm:$0xff]
        %v1086 = vld [vmem:[#allocation5 + $0x3b8] sm:$0xff]
        %v1087 = vld [vmem:[#allocation5 + $0x3c0] sm:$0xff]
        %v1088 = vld [vmem:[#allocation5 + $0x3c8] sm:$0xff]
        %v1089 = vld [vmem:[#allocation5 + $0x3d0] sm:$0xff]
        %v1090 = vld [vmem:[#allocation5 + $0x3d8] sm:$0xff]
        %v1091 = vld [vmem:[#allocation5 + $0x3e0] sm:$0xff]
        %v1092 = vld [vmem:[#allocation5 + $0x3e8] sm:$0xff]
        %v1093 = vld [vmem:[#allocation5 + $0x3f0] sm:$0xff]
        %v1094 = vld [vmem:[#allocation5 + $0x3f8] sm:$0xff]
        %v1095 = vld [vmem:[#allocation5 + $0x400] sm:$0xff]
        %v1096 = vld [vmem:[#allocation5 + $0x408] sm:$0xff]
        %v1097 = vld [vmem:[#allocation5 + $0x410] sm:$0xff]
        %v1098 = vld [vmem:[#allocation5 + $0x418] sm:$0xff]
        %v1099 = vld [vmem:[#allocation5 + $0x420] sm:$0xff]
        %v1100 = vld [vmem:[#allocation5 + $0x428] sm:$0xff]
        %v1101 = vld [vmem:[#allocation5 + $0x430] sm:$0xff]
        %v1102 = vld [vmem:[#allocation5 + $0x438] sm:$0xff]
        %v1103 = vld [vmem:[#allocation5 + $0x440] sm:$0xff]
        %v1104 = vld [vmem:[#allocation5 + $0x448] sm:$0xff]
        %v1105 = vld [vmem:[#allocation5 + $0x450] sm:$0xff]
        %v1106 = vld [vmem:[#allocation5 + $0x458] sm:$0xff]
        %v1107 = vld [vmem:[#allocation5 + $0x460] sm:$0xff]
        %v1108 = vld [vmem:[#allocation5 + $0x468] sm:$0xff]
        %v1109 = vld [vmem:[#allocation5 + $0x470] sm:$0xff]
        %v1110 = vld [vmem:[#allocation5 + $0x478] sm:$0xff]
        %v1111 = vld [vmem:[#allocation5 + $0x480] sm:$0xff]
        %v1112 = vld [vmem:[#allocation5 + $0x488] sm:$0xff]
        %v1113 = vld [vmem:[#allocation5 + $0x490] sm:$0xff]
        %v1114 = vld [vmem:[#allocation5 + $0x498] sm:$0xff]
        %v1115 = vld [vmem:[#allocation5 + $0x4a0] sm:$0xff]
        %v1116 = vld [vmem:[#allocation5 + $0x4a8] sm:$0xff]
        %v1117 = vld [vmem:[#allocation5 + $0x4b0] sm:$0xff]
        %v1118 = vld [vmem:[#allocation5 + $0x4b8] sm:$0xff]
        %v1119 = vld [vmem:[#allocation5 + $0x4c0] sm:$0xff]
        %v1120 = vld [vmem:[#allocation5 + $0x4c8] sm:$0xff]
        %v1121 = vld [vmem:[#allocation5 + $0x4d0] sm:$0xff]
        %v1122 = vld [vmem:[#allocation5 + $0x4d8] sm:$0xff]
        %v1123 = vld [vmem:[#allocation5 + $0x4e0] sm:$0xff]
        %v1124 = vld [vmem:[#allocation5 + $0x4e8] sm:$0xff]
        %v1125 = vld [vmem:[#allocation5 + $0x4f0] sm:$0xff]
        %v1126 = vld [vmem:[#allocation5 + $0x4f8] sm:$0xff]
        %v1127 = vld [vmem:[#allocation5 + $0x500] sm:$0xff]
        %v1128 = vld [vmem:[#allocation5 + $0x508] sm:$0xff]
        %v1129 = vld [vmem:[#allocation5 + $0x510] sm:$0xff]
        %v1130 = vld [vmem:[#allocation5 + $0x518] sm:$0xff]
        %v1131 = vld [vmem:[#allocation5 + $0x520] sm:$0xff]
        %v1132 = vld [vmem:[#allocation5 + $0x528] sm:$0xff]
        %v1133 = vld [vmem:[#allocation5 + $0x530] sm:$0xff]
        %v1134 = vld [vmem:[#allocation5 + $0x538] sm:$0xff]
        %v1135 = vld [vmem:[#allocation5 + $0x540] sm:$0xff]
        %v1136 = vld [vmem:[#allocation5 + $0x548] sm:$0xff]
        %v1137 = vld [vmem:[#allocation5 + $0x550] sm:$0xff]
        %v1138 = vld [vmem:[#allocation5 + $0x558] sm:$0xff]
        %v1139 = vld [vmem:[#allocation5 + $0x560] sm:$0xff]
        %v1140 = vld [vmem:[#allocation5 + $0x568] sm:$0xff]
        %v1141 = vld [vmem:[#allocation5 + $0x570] sm:$0xff]
        %v1142 = vld [vmem:[#allocation5 + $0x578] sm:$0xff]
        %v1143 = vld [vmem:[#allocation5 + $0x580] sm:$0xff]
        %v1144 = vld [vmem:[#allocation5 + $0x588] sm:$0xff]
        %v1145 = vld [vmem:[#allocation5 + $0x590] sm:$0xff]
        %v1146 = vld [vmem:[#allocation5 + $0x598] sm:$0xff]
        %v1147 = vld [vmem:[#allocation5 + $0x5a0] sm:$0xff]
        %v1148 = vld [vmem:[#allocation5 + $0x5a8] sm:$0xff]
        %v1149 = vld [vmem:[#allocation5 + $0x5b0] sm:$0xff]
        %v1150 = vld [vmem:[#allocation5 + $0x5b8] sm:$0xff]
        %v1151 = vld [vmem:[#allocation5 + $0x5c0] sm:$0xff]
        %v1152 = vld [vmem:[#allocation5 + $0x5c8] sm:$0xff]
        %v1153 = vld [vmem:[#allocation5 + $0x5d0] sm:$0xff]
        %v1154 = vld [vmem:[#allocation5 + $0x5d8] sm:$0xff]
        %v1155 = vld [vmem:[#allocation5 + $0x5e0] sm:$0xff]
        %v1156 = vld [vmem:[#allocation5 + $0x5e8] sm:$0xff]
        %v1157 = vld [vmem:[#allocation5 + $0x5f0] sm:$0xff]
        %v1158 = vld [vmem:[#allocation5 + $0x5f8] sm:$0xff]
        %v1159 = vld [vmem:[#allocation5 + $0x600] sm:$0xff]
        %v1160 = vld [vmem:[#allocation5 + $0x608] sm:$0xff]
        %v1161 = vld [vmem:[#allocation5 + $0x610] sm:$0xff]
        %v1162 = vld [vmem:[#allocation5 + $0x618] sm:$0xff]
        %v1163 = vld [vmem:[#allocation5 + $0x620] sm:$0xff]
        %v1164 = vld [vmem:[#allocation5 + $0x628] sm:$0xff]
        %v1165 = vld [vmem:[#allocation5 + $0x630] sm:$0xff]
        %v1166 = vld [vmem:[#allocation5 + $0x638] sm:$0xff]
        %v1167 = vld [vmem:[#allocation5 + $0x640] sm:$0xff]
        %v1168 = vld [vmem:[#allocation5 + $0x648] sm:$0xff]
        %v1169 = vld [vmem:[#allocation5 + $0x650] sm:$0xff]
        %v1170 = vld [vmem:[#allocation5 + $0x658] sm:$0xff]
        %v1171 = vld [vmem:[#allocation5 + $0x660] sm:$0xff]
        %v1172 = vld [vmem:[#allocation5 + $0x668] sm:$0xff]
        %v1173 = vld [vmem:[#allocation5 + $0x670] sm:$0xff]
        %v1174 = vld [vmem:[#allocation5 + $0x678] sm:$0xff]
        %v1175 = vld [vmem:[#allocation5 + $0x680] sm:$0xff]
        %v1176 = vld [vmem:[#allocation5 + $0x688] sm:$0xff]
        %v1177 = vld [vmem:[#allocation5 + $0x690] sm:$0xff]
        %v1178 = vld [vmem:[#allocation5 + $0x698] sm:$0xff]
        %v1179 = vld [vmem:[#allocation5 + $0x6a0] sm:$0xff]
        %v1180 = vld [vmem:[#allocation5 + $0x6a8] sm:$0xff]
        %v1181 = vld [vmem:[#allocation5 + $0x6b0] sm:$0xff]
        %v1182 = vld [vmem:[#allocation5 + $0x6b8] sm:$0xff]
        %v1183 = vld [vmem:[#allocation5 + $0x6c0] sm:$0xff]
        %v1184 = vld [vmem:[#allocation5 + $0x6c8] sm:$0xff]
        %v1185 = vld [vmem:[#allocation5 + $0x6d0] sm:$0xff]
        %v1186 = vld [vmem:[#allocation5 + $0x6d8] sm:$0xff]
        %v1187 = vld [vmem:[#allocation5 + $0x6e0] sm:$0xff]
        %v1188 = vld [vmem:[#allocation5 + $0x6e8] sm:$0xff]
        %v1189 = vld [vmem:[#allocation5 + $0x6f0] sm:$0xff]
        %v1190 = vld [vmem:[#allocation5 + $0x6f8] sm:$0xff]
        %v1191 = vld [vmem:[#allocation5 + $0x700] sm:$0xff]
        %v1192 = vld [vmem:[#allocation5 + $0x708] sm:$0xff]
        %v1193 = vld [vmem:[#allocation5 + $0x710] sm:$0xff]
        %v1194 = vld [vmem:[#allocation5 + $0x718] sm:$0xff]
        %v1195 = vld [vmem:[#allocation5 + $0x720] sm:$0xff]
        %v1196 = vld [vmem:[#allocation5 + $0x728] sm:$0xff]
        %v1197 = vld [vmem:[#allocation5 + $0x730] sm:$0xff]
        %v1198 = vld [vmem:[#allocation5 + $0x738] sm:$0xff]
        %v1199 = vld [vmem:[#allocation5 + $0x740] sm:$0xff]
        %v1200 = vld [vmem:[#allocation5 + $0x748] sm:$0xff]
        %v1201 = vld [vmem:[#allocation5 + $0x750] sm:$0xff]
        %v1202 = vld [vmem:[#allocation5 + $0x758] sm:$0xff]
        %v1203 = vld [vmem:[#allocation5 + $0x760] sm:$0xff]
        %v1204 = vld [vmem:[#allocation5 + $0x768] sm:$0xff]
        %v1205 = vld [vmem:[#allocation5 + $0x770] sm:$0xff]
        %v1206 = vld [vmem:[#allocation5 + $0x778] sm:$0xff]
        %v1207 = vld [vmem:[#allocation5 + $0x780] sm:$0xff]
        %v1208 = vld [vmem:[#allocation5 + $0x788] sm:$0xff]
        %v1209 = vld [vmem:[#allocation5 + $0x790] sm:$0xff]
        %v1210 = vld [vmem:[#allocation5 + $0x798] sm:$0xff]
        %v1211 = vld [vmem:[#allocation5 + $0x7a0] sm:$0xff]
        %v1212 = vld [vmem:[#allocation5 + $0x7a8] sm:$0xff]
        %v1213 = vld [vmem:[#allocation5 + $0x7b0] sm:$0xff]
        %v1214 = vld [vmem:[#allocation5 + $0x7b8] sm:$0xff]
        %v1215 = vld [vmem:[#allocation5 + $0x7c0] sm:$0xff]
        %v1216 = vld [vmem:[#allocation5 + $0x7c8] sm:$0xff]
        %v1217 = vld [vmem:[#allocation5 + $0x7d0] sm:$0xff]
        %v1218 = vld [vmem:[#allocation5 + $0x7d8] sm:$0xff]
        %v1219 = vld [vmem:[#allocation5 + $0x7e0] sm:$0xff]
        %v1220 = vld [vmem:[#allocation5 + $0x7e8] sm:$0xff]
        %v1221 = vld [vmem:[#allocation5 + $0x7f0] sm:$0xff]
        %v1222 = vld [vmem:[#allocation5 + $0x7f8] sm:$0xff]
        %v1223 = vld [vmem:[#allocation5 + $0x800] sm:$0xff]
        %v1224 = vld [vmem:[#allocation5 + $0x808] sm:$0xff]
        %v1225 = vld [vmem:[#allocation5 + $0x810] sm:$0xff]
        %v1226 = vld [vmem:[#allocation5 + $0x818] sm:$0xff]
        %v1227 = vld [vmem:[#allocation5 + $0x820] sm:$0xff]
        %v1228 = vld [vmem:[#allocation5 + $0x828] sm:$0xff]
        %v1229 = vld [vmem:[#allocation5 + $0x830] sm:$0xff]
        %v1230 = vld [vmem:[#allocation5 + $0x838] sm:$0xff]
        %v1231 = vld [vmem:[#allocation5 + $0x840] sm:$0xff]
        %v1232 = vld [vmem:[#allocation5 + $0x848] sm:$0xff]
        %v1233 = vld [vmem:[#allocation5 + $0x850] sm:$0xff]
        %v1234 = vld [vmem:[#allocation5 + $0x858] sm:$0xff]
        %v1235 = vld [vmem:[#allocation5 + $0x860] sm:$0xff]
        %v1236 = vld [vmem:[#allocation5 + $0x868] sm:$0xff]
        %v1237 = vld [vmem:[#allocation5 + $0x870] sm:$0xff]
        %v1238 = vld [vmem:[#allocation5 + $0x878] sm:$0xff]
        %v1239 = vld [vmem:[#allocation5 + $0x880] sm:$0xff]
        %v1240 = vld [vmem:[#allocation5 + $0x888] sm:$0xff]
        %v1241 = vld [vmem:[#allocation5 + $0x890] sm:$0xff]
        %v1242 = vld [vmem:[#allocation5 + $0x898] sm:$0xff]
        %v1243 = vld [vmem:[#allocation5 + $0x8a0] sm:$0xff]
        %v1244 = vld [vmem:[#allocation5 + $0x8a8] sm:$0xff]
        %v1245 = vld [vmem:[#allocation5 + $0x8b0] sm:$0xff]
        %v1246 = vld [vmem:[#allocation5 + $0x8b8] sm:$0xff]
        %v1247 = vld [vmem:[#allocation5 + $0x8c0] sm:$0xff]
        %v1248 = vld [vmem:[#allocation5 + $0x8c8] sm:$0xff]
        %v1249 = vld [vmem:[#allocation5 + $0x8d0] sm:$0xff]
        %v1250 = vld [vmem:[#allocation5 + $0x8d8] sm:$0xff]
        %v1251 = vld [vmem:[#allocation5 + $0x8e0] sm:$0xff]
        %v1252 = vld [vmem:[#allocation5 + $0x8e8] sm:$0xff]
        %v1253 = vld [vmem:[#allocation5 + $0x8f0] sm:$0xff]
        %v1254 = vld [vmem:[#allocation5 + $0x8f8] sm:$0xff]
        %v1255 = vld [vmem:[%s4] sm:$0xff]
        %v1256 = vld [vmem:[%s4 + $0x8] sm:$0xff]
        %v1257 = vld [vmem:[%s4 + $0x10] sm:$0xff]
        %v1258 = vld [vmem:[%s4 + $0x18] sm:$0xff]
        %v1259 = vld [vmem:[%s4 + $0x20] sm:$0xff]
        %v1260 = vld [vmem:[%s4 + $0x28] sm:$0xff]
        %v1261 = vld [vmem:[%s4 + $0x30] sm:$0xff]
        %v1262 = vld [vmem:[%s4 + $0x38] sm:$0xff]
        %v1263 = vld [vmem:[%s4 + $0x40] sm:$0xff]
        %v1264 = vld [vmem:[%s4 + $0x48] sm:$0xff]
        %v1265 = vld [vmem:[%s4 + $0x50] sm:$0xff]
        %v1266 = vld [vmem:[%s4 + $0x58] sm:$0xff]
        %v1267 = vld [vmem:[%s4 + $0x60] sm:$0xff]
        %v1268 = vld [vmem:[%s4 + $0x68] sm:$0xff]
        %v1269 = vld [vmem:[%s4 + $0x70] sm:$0xff]
        %v1270 = vld [vmem:[%s4 + $0x78] sm:$0xff]
        %v1271 = vld [vmem:[%s4 + $0x80] sm:$0xff]
        %v1272 = vld [vmem:[%s4 + $0x88] sm:$0xff]
        %v1273 = vld [vmem:[%s4 + $0x90] sm:$0xff]
        %v1274 = vld [vmem:[%s4 + $0x98] sm:$0xff]
        %v1275 = vld [vmem:[%s4 + $0xa0] sm:$0xff]
        %v1276 = vld [vmem:[%s4 + $0xa8] sm:$0xff]
        %v1277 = vld [vmem:[%s4 + $0xb0] sm:$0xff]
        %v1278 = vld [vmem:[%s4 + $0xb8] sm:$0xff]
        %v1279 = vld [vmem:[%s4 + $0xc0] sm:$0xff]
        %v1280 = vld [vmem:[%s4 + $0xc8] sm:$0xff]
        %v1281 = vld [vmem:[%s4 + $0xd0] sm:$0xff]
        %v1282 = vld [vmem:[%s4 + $0xd8] sm:$0xff]
        %v1283 = vld [vmem:[%s4 + $0xe0] sm:$0xff]
        %v1284 = vld [vmem:[%s4 + $0xe8] sm:$0xff]
        %v1285 = vld [vmem:[%s4 + $0xf0] sm:$0xff]
        %v1286 = vld [vmem:[%s4 + $0xf8] sm:$0xff]
        %v1287 = vld [vmem:[%s4 + $0x100] sm:$0xff]
        %v1288 = vld [vmem:[%s4 + $0x108] sm:$0xff]
        %v1289 = vld [vmem:[%s4 + $0x110] sm:$0xff]
        %v1290 = vld [vmem:[%s4 + $0x118] sm:$0xff]
        %v1291 = vld [vmem:[%s4 + $0x120] sm:$0xff]
        %v1292 = vld [vmem:[%s4 + $0x128] sm:$0xff]
        %v1293 = vld [vmem:[%s4 + $0x130] sm:$0xff]
        %v1294 = vld [vmem:[%s4 + $0x138] sm:$0xff]
        %v1295 = vld [vmem:[%s4 + $0x140] sm:$0xff]
        %v1296 = vld [vmem:[%s4 + $0x148] sm:$0xff]
        %v1297 = vld [vmem:[%s4 + $0x150] sm:$0xff]
        %v1298 = vld [vmem:[%s4 + $0x158] sm:$0xff]
        %v1299 = vld [vmem:[%s4 + $0x160] sm:$0xff]
        %v1300 = vld [vmem:[%s4 + $0x168] sm:$0xff]
        %v1301 = vld [vmem:[%s4 + $0x170] sm:$0xff]
        %v1302 = vld [vmem:[%s4 + $0x178] sm:$0xff]
        %v1303 = vld [vmem:[%s4 + $0x180] sm:$0xff]
        %v1304 = vld [vmem:[%s4 + $0x188] sm:$0xff]
        %v1305 = vld [vmem:[%s4 + $0x190] sm:$0xff]
        %v1306 = vld [vmem:[%s4 + $0x198] sm:$0xff]
        %v1307 = vld [vmem:[%s4 + $0x1a0] sm:$0xff]
        %v1308 = vld [vmem:[%s4 + $0x1a8] sm:$0xff]
        %v1309 = vld [vmem:[%s4 + $0x1b0] sm:$0xff]
        %v1310 = vld [vmem:[%s4 + $0x1b8] sm:$0xff]
        %v1311 = vld [vmem:[%s4 + $0x1c0] sm:$0xff]
        %v1312 = vld [vmem:[%s4 + $0x1c8] sm:$0xff]
        %v1313 = vld [vmem:[%s4 + $0x1d0] sm:$0xff]
        %v1314 = vld [vmem:[%s4 + $0x1d8] sm:$0xff]
        %v1315 = vld [vmem:[%s4 + $0x1e0] sm:$0xff]
        %v1316 = vld [vmem:[%s4 + $0x1e8] sm:$0xff]
        %v1317 = vld [vmem:[%s4 + $0x1f0] sm:$0xff]
        %v1318 = vld [vmem:[%s4 + $0x1f8] sm:$0xff]
        %v1319 = vld [vmem:[%s4 + $0x200] sm:$0xff]
        %v1320 = vld [vmem:[%s4 + $0x208] sm:$0xff]
        %v1321 = vld [vmem:[%s4 + $0x210] sm:$0xff]
        %v1322 = vld [vmem:[%s4 + $0x218] sm:$0xff]
        %v1323 = vld [vmem:[%s4 + $0x220] sm:$0xff]
        %v1324 = vld [vmem:[%s4 + $0x228] sm:$0xff]
        %v1325 = vld [vmem:[%s4 + $0x230] sm:$0xff]
        %v1326 = vld [vmem:[%s4 + $0x238] sm:$0xff]
        %v1327 = vld [vmem:[%s4 + $0x240] sm:$0xff]
        %v1328 = vld [vmem:[%s4 + $0x248] sm:$0xff]
        %v1329 = vld [vmem:[%s4 + $0x250] sm:$0xff]
        %v1330 = vld [vmem:[%s4 + $0x258] sm:$0xff]
        %v1331 = vld [vmem:[%s4 + $0x260] sm:$0xff]
        %v1332 = vld [vmem:[%s4 + $0x268] sm:$0xff]
        %v1333 = vld [vmem:[%s4 + $0x270] sm:$0xff]
        %v1334 = vld [vmem:[%s4 + $0x278] sm:$0xff]
        %v1335 = vld [vmem:[%s4 + $0x280] sm:$0xff]
        %v1336 = vld [vmem:[%s4 + $0x288] sm:$0xff]
        %v1337 = vld [vmem:[%s4 + $0x290] sm:$0xff]
        %v1338 = vld [vmem:[%s4 + $0x298] sm:$0xff]
        %v1339 = vld [vmem:[%s4 + $0x2a0] sm:$0xff]
        %v1340 = vld [vmem:[%s4 + $0x2a8] sm:$0xff]
        %v1341 = vld [vmem:[%s4 + $0x2b0] sm:$0xff]
        %v1342 = vld [vmem:[%s4 + $0x2b8] sm:$0xff]
        %v1343 = vld [vmem:[%s4 + $0x2c0] sm:$0xff]
        %v1344 = vld [vmem:[%s4 + $0x2c8] sm:$0xff]
        %v1345 = vld [vmem:[%s4 + $0x2d0] sm:$0xff]
        %v1346 = vld [vmem:[%s4 + $0x2d8] sm:$0xff]
        %v1347 = vld [vmem:[%s4 + $0x2e0] sm:$0xff]
        %v1348 = vld [vmem:[%s4 + $0x2e8] sm:$0xff]
        %v1349 = vld [vmem:[%s4 + $0x2f0] sm:$0xff]
        %v1350 = vld [vmem:[%s4 + $0x2f8] sm:$0xff]
        %v1351 = vld [vmem:[%s4 + $0x300] sm:$0xff]
        %v1352 = vld [vmem:[%s4 + $0x308] sm:$0xff]
        %v1353 = vld [vmem:[%s4 + $0x310] sm:$0xff]
        %v1354 = vld [vmem:[%s4 + $0x318] sm:$0xff]
        %v1355 = vld [vmem:[%s4 + $0x320] sm:$0xff]
        %v1356 = vld [vmem:[%s4 + $0x328] sm:$0xff]
        %v1357 = vld [vmem:[%s4 + $0x330] sm:$0xff]
        %v1358 = vld [vmem:[%s4 + $0x338] sm:$0xff]
        %v1359 = vld [vmem:[%s4 + $0x340] sm:$0xff]
        %v1360 = vld [vmem:[%s4 + $0x348] sm:$0xff]
        %v1361 = vld [vmem:[%s4 + $0x350] sm:$0xff]
        %v1362 = vld [vmem:[%s4 + $0x358] sm:$0xff]
        %v1363 = vld [vmem:[%s4 + $0x360] sm:$0xff]
        %v1364 = vld [vmem:[%s4 + $0x368] sm:$0xff]
        %v1365 = vld [vmem:[%s4 + $0x370] sm:$0xff]
        %v1366 = vld [vmem:[%s4 + $0x378] sm:$0xff]
        %v1367 = vld [vmem:[%s4 + $0x380] sm:$0xff]
        %v1368 = vld [vmem:[%s4 + $0x388] sm:$0xff]
        %v1369 = vld [vmem:[%s4 + $0x390] sm:$0xff]
        %v1370 = vld [vmem:[%s4 + $0x398] sm:$0xff]
        %v1371 = vld [vmem:[%s4 + $0x3a0] sm:$0xff]
        %v1372 = vld [vmem:[%s4 + $0x3a8] sm:$0xff]
        %v1373 = vld [vmem:[%s4 + $0x3b0] sm:$0xff]
        %v1374 = vld [vmem:[%s4 + $0x3b8] sm:$0xff]
        %v1375 = vld [vmem:[%s4 + $0x3c0] sm:$0xff]
        %v1376 = vld [vmem:[%s4 + $0x3c8] sm:$0xff]
        %v1377 = vld [vmem:[%s4 + $0x3d0] sm:$0xff]
        %v1378 = vld [vmem:[%s4 + $0x3d8] sm:$0xff]
        %v1379 = vld [vmem:[%s4 + $0x3e0] sm:$0xff]
        %v1380 = vld [vmem:[%s4 + $0x3e8] sm:$0xff]
        %v1381 = vld [vmem:[%s4 + $0x3f0] sm:$0xff]
        %v1382 = vld [vmem:[%s4 + $0x3f8] sm:$0xff]
        %v1383 = vld [vmem:[%s4 + $0x400] sm:$0xff]
        %v1384 = vld [vmem:[%s4 + $0x408] sm:$0xff]
        %v1385 = vld [vmem:[%s4 + $0x410] sm:$0xff]
        %v1386 = vld [vmem:[%s4 + $0x418] sm:$0xff]
        %v1387 = vld [vmem:[%s4 + $0x420] sm:$0xff]
        %v1388 = vld [vmem:[%s4 + $0x428] sm:$0xff]
        %v1389 = vld [vmem:[%s4 + $0x430] sm:$0xff]
        %v1390 = vld [vmem:[%s4 + $0x438] sm:$0xff]
        %v1391 = vld [vmem:[%s4 + $0x440] sm:$0xff]
        %v1392 = vld [vmem:[%s4 + $0x448] sm:$0xff]
        %v1393 = vld [vmem:[%s4 + $0x450] sm:$0xff]
        %v1394 = vld [vmem:[%s4 + $0x458] sm:$0xff]
        %v1395 = vld [vmem:[%s4 + $0x460] sm:$0xff]
        %v1396 = vld [vmem:[%s4 + $0x468] sm:$0xff]
        %v1397 = vld [vmem:[%s4 + $0x470] sm:$0xff]
        %v1398 = vld [vmem:[%s4 + $0x478] sm:$0xff]
        %1400 = vset.pattern.permute.xlu0 0
        %1401 = vperm.xlu0 %1400, %v1255
        %v1402 = vpop.permute.xlu0 %1401
        %1405 = vset.pattern.permute.xlu0 0
        %1406 = vperm.xlu0 %1405, %v1256
        %v1407 = vpop.permute.xlu0 %1406
        %1410 = vset.pattern.permute.xlu0 0
        %1411 = vperm.xlu0 %1410, %v1257
        %v1412 = vpop.permute.xlu0 %1411
        %1415 = vset.pattern.permute.xlu0 0
        %1416 = vperm.xlu0 %1415, %v1258
        %v1417 = vpop.permute.xlu0 %1416
        %1420 = vset.pattern.permute.xlu0 0
        %1421 = vperm.xlu0 %1420, %v1259
        %v1422 = vpop.permute.xlu0 %1421
        %1425 = vset.pattern.permute.xlu0 0
        %1426 = vperm.xlu0 %1425, %v1260
        %v1427 = vpop.permute.xlu0 %1426
        %1430 = vset.pattern.permute.xlu0 0
        %1431 = vperm.xlu0 %1430, %v1261
        %v1432 = vpop.permute.xlu0 %1431
        %1435 = vset.pattern.permute.xlu0 0
        %1436 = vperm.xlu0 %1435, %v1262
        %v1437 = vpop.permute.xlu0 %1436
        %1440 = vset.pattern.permute.xlu0 0
        %1441 = vperm.xlu0 %1440, %v1263
        %v1442 = vpop.permute.xlu0 %1441
        %1445 = vset.pattern.permute.xlu0 0
        %1446 = vperm.xlu0 %1445, %v1264
        %v1447 = vpop.permute.xlu0 %1446
        %1450 = vset.pattern.permute.xlu0 0
        %1451 = vperm.xlu0 %1450, %v1265
        %v1452 = vpop.permute.xlu0 %1451
        %1455 = vset.pattern.permute.xlu0 0
        %1456 = vperm.xlu0 %1455, %v1266
        %v1457 = vpop.permute.xlu0 %1456
        %1460 = vset.pattern.permute.xlu0 0
        %1461 = vperm.xlu0 %1460, %v1267
        %v1462 = vpop.permute.xlu0 %1461
        %1465 = vset.pattern.permute.xlu0 0
        %1466 = vperm.xlu0 %1465, %v1268
        %v1467 = vpop.permute.xlu0 %1466
        %1470 = vset.pattern.permute.xlu0 0
        %1471 = vperm.xlu0 %1470, %v1269
        %v1472 = vpop.permute.xlu0 %1471
        %1475 = vset.pattern.permute.xlu0 0
        %1476 = vperm.xlu0 %1475, %v1270
        %v1477 = vpop.permute.xlu0 %1476
        %1480 = vset.pattern.permute.xlu0 0
        %1481 = vperm.xlu0 %1480, %v1271
        %v1482 = vpop.permute.xlu0 %1481
        %1485 = vset.pattern.permute.xlu0 0
        %1486 = vperm.xlu0 %1485, %v1272
        %v1487 = vpop.permute.xlu0 %1486
        %1490 = vset.pattern.permute.xlu0 0
        %1491 = vperm.xlu0 %1490, %v1273
        %v1492 = vpop.permute.xlu0 %1491
        %1495 = vset.pattern.permute.xlu0 0
        %1496 = vperm.xlu0 %1495, %v1274
        %v1497 = vpop.permute.xlu0 %1496
        %1500 = vset.pattern.permute.xlu0 0
        %1501 = vperm.xlu0 %1500, %v1275
        %v1502 = vpop.permute.xlu0 %1501
        %1505 = vset.pattern.permute.xlu0 0
        %1506 = vperm.xlu0 %1505, %v1276
        %v1507 = vpop.permute.xlu0 %1506
        %1510 = vset.pattern.permute.xlu0 0
        %1511 = vperm.xlu0 %1510, %v1277
        %v1512 = vpop.permute.xlu0 %1511
        %1515 = vset.pattern.permute.xlu0 0
        %1516 = vperm.xlu0 %1515, %v1278
        %v1517 = vpop.permute.xlu0 %1516
        %1520 = vset.pattern.permute.xlu0 0
        %1521 = vperm.xlu0 %1520, %v1279
        %v1522 = vpop.permute.xlu0 %1521
        %1525 = vset.pattern.permute.xlu0 0
        %1526 = vperm.xlu0 %1525, %v1280
        %v1527 = vpop.permute.xlu0 %1526
        %1530 = vset.pattern.permute.xlu0 0
        %1531 = vperm.xlu0 %1530, %v1281
        %v1532 = vpop.permute.xlu0 %1531
        %1535 = vset.pattern.permute.xlu0 0
        %1536 = vperm.xlu0 %1535, %v1282
        %v1537 = vpop.permute.xlu0 %1536
        %1540 = vset.pattern.permute.xlu0 0
        %1541 = vperm.xlu0 %1540, %v1283
        %v1542 = vpop.permute.xlu0 %1541
        %1545 = vset.pattern.permute.xlu0 0
        %1546 = vperm.xlu0 %1545, %v1284
        %v1547 = vpop.permute.xlu0 %1546
        %1550 = vset.pattern.permute.xlu0 0
        %1551 = vperm.xlu0 %1550, %v1285
        %v1552 = vpop.permute.xlu0 %1551
        %1555 = vset.pattern.permute.xlu0 0
        %1556 = vperm.xlu0 %1555, %v1286
        %v1557 = vpop.permute.xlu0 %1556
        %1560 = vset.pattern.permute.xlu0 0
        %1561 = vperm.xlu0 %1560, %v1287
        %v1562 = vpop.permute.xlu0 %1561
        %1565 = vset.pattern.permute.xlu0 0
        %1566 = vperm.xlu0 %1565, %v1288
        %v1567 = vpop.permute.xlu0 %1566
        %1570 = vset.pattern.permute.xlu0 0
        %1571 = vperm.xlu0 %1570, %v1289
        %v1572 = vpop.permute.xlu0 %1571
        %1575 = vset.pattern.permute.xlu0 0
        %1576 = vperm.xlu0 %1575, %v1290
        %v1577 = vpop.permute.xlu0 %1576
        %1580 = vset.pattern.permute.xlu0 0
        %1581 = vperm.xlu0 %1580, %v1291
        %v1582 = vpop.permute.xlu0 %1581
        %1585 = vset.pattern.permute.xlu0 0
        %1586 = vperm.xlu0 %1585, %v1292
        %v1587 = vpop.permute.xlu0 %1586
        %1590 = vset.pattern.permute.xlu0 0
        %1591 = vperm.xlu0 %1590, %v1293
        %v1592 = vpop.permute.xlu0 %1591
        %1595 = vset.pattern.permute.xlu0 0
        %1596 = vperm.xlu0 %1595, %v1294
        %v1597 = vpop.permute.xlu0 %1596
        %1600 = vset.pattern.permute.xlu0 0
        %1601 = vperm.xlu0 %1600, %v1295
        %v1602 = vpop.permute.xlu0 %1601
        %1605 = vset.pattern.permute.xlu0 0
        %1606 = vperm.xlu0 %1605, %v1296
        %v1607 = vpop.permute.xlu0 %1606
        %1610 = vset.pattern.permute.xlu0 0
        %1611 = vperm.xlu0 %1610, %v1297
        %v1612 = vpop.permute.xlu0 %1611
        %1615 = vset.pattern.permute.xlu0 0
        %1616 = vperm.xlu0 %1615, %v1298
        %v1617 = vpop.permute.xlu0 %1616
        %1620 = vset.pattern.permute.xlu0 0
        %1621 = vperm.xlu0 %1620, %v1299
        %v1622 = vpop.permute.xlu0 %1621
        %1625 = vset.pattern.permute.xlu0 0
        %1626 = vperm.xlu0 %1625, %v1300
        %v1627 = vpop.permute.xlu0 %1626
        %1630 = vset.pattern.permute.xlu0 0
        %1631 = vperm.xlu0 %1630, %v1301
        %v1632 = vpop.permute.xlu0 %1631
        %1635 = vset.pattern.permute.xlu0 0
        %1636 = vperm.xlu0 %1635, %v1302
        %v1637 = vpop.permute.xlu0 %1636
        %1640 = vset.pattern.permute.xlu0 0
        %1641 = vperm.xlu0 %1640, %v1303
        %v1642 = vpop.permute.xlu0 %1641
        %1645 = vset.pattern.permute.xlu0 0
        %1646 = vperm.xlu0 %1645, %v1304
        %v1647 = vpop.permute.xlu0 %1646
        %1650 = vset.pattern.permute.xlu0 0
        %1651 = vperm.xlu0 %1650, %v1305
        %v1652 = vpop.permute.xlu0 %1651
        %1655 = vset.pattern.permute.xlu0 0
        %1656 = vperm.xlu0 %1655, %v1306
        %v1657 = vpop.permute.xlu0 %1656
        %1660 = vset.pattern.permute.xlu0 0
        %1661 = vperm.xlu0 %1660, %v1307
        %v1662 = vpop.permute.xlu0 %1661
        %1665 = vset.pattern.permute.xlu0 0
        %1666 = vperm.xlu0 %1665, %v1308
        %v1667 = vpop.permute.xlu0 %1666
        %1670 = vset.pattern.permute.xlu0 0
        %1671 = vperm.xlu0 %1670, %v1309
        %v1672 = vpop.permute.xlu0 %1671
        %1675 = vset.pattern.permute.xlu0 0
        %1676 = vperm.xlu0 %1675, %v1310
        %v1677 = vpop.permute.xlu0 %1676
        %1680 = vset.pattern.permute.xlu0 0
        %1681 = vperm.xlu0 %1680, %v1311
        %v1682 = vpop.permute.xlu0 %1681
        %1685 = vset.pattern.permute.xlu0 0
        %1686 = vperm.xlu0 %1685, %v1312
        %v1687 = vpop.permute.xlu0 %1686
        %1690 = vset.pattern.permute.xlu0 0
        %1691 = vperm.xlu0 %1690, %v1313
        %v1692 = vpop.permute.xlu0 %1691
        %1695 = vset.pattern.permute.xlu0 0
        %1696 = vperm.xlu0 %1695, %v1314
        %v1697 = vpop.permute.xlu0 %1696
        %1700 = vset.pattern.permute.xlu0 0
        %1701 = vperm.xlu0 %1700, %v1315
        %v1702 = vpop.permute.xlu0 %1701
        %1705 = vset.pattern.permute.xlu0 0
        %1706 = vperm.xlu0 %1705, %v1316
        %v1707 = vpop.permute.xlu0 %1706
        %1710 = vset.pattern.permute.xlu0 0
        %1711 = vperm.xlu0 %1710, %v1317
        %v1712 = vpop.permute.xlu0 %1711
        %1715 = vset.pattern.permute.xlu0 0
        %1716 = vperm.xlu0 %1715, %v1318
        %v1717 = vpop.permute.xlu0 %1716
        %1720 = vset.pattern.permute.xlu0 0
        %1721 = vperm.xlu0 %1720, %v1319
        %v1722 = vpop.permute.xlu0 %1721
        %1725 = vset.pattern.permute.xlu0 0
        %1726 = vperm.xlu0 %1725, %v1320
        %v1727 = vpop.permute.xlu0 %1726
        %1730 = vset.pattern.permute.xlu0 0
        %1731 = vperm.xlu0 %1730, %v1321
        %v1732 = vpop.permute.xlu0 %1731
        %1735 = vset.pattern.permute.xlu0 0
        %1736 = vperm.xlu0 %1735, %v1322
        %v1737 = vpop.permute.xlu0 %1736
        %1740 = vset.pattern.permute.xlu0 0
        %1741 = vperm.xlu0 %1740, %v1323
        %v1742 = vpop.permute.xlu0 %1741
        %1745 = vset.pattern.permute.xlu0 0
        %1746 = vperm.xlu0 %1745, %v1324
        %v1747 = vpop.permute.xlu0 %1746
        %1750 = vset.pattern.permute.xlu0 0
        %1751 = vperm.xlu0 %1750, %v1325
        %v1752 = vpop.permute.xlu0 %1751
        %1755 = vset.pattern.permute.xlu0 0
        %1756 = vperm.xlu0 %1755, %v1326
        %v1757 = vpop.permute.xlu0 %1756
        %1760 = vset.pattern.permute.xlu0 0
        %1761 = vperm.xlu0 %1760, %v1327
        %v1762 = vpop.permute.xlu0 %1761
        %1765 = vset.pattern.permute.xlu0 0
        %1766 = vperm.xlu0 %1765, %v1328
        %v1767 = vpop.permute.xlu0 %1766
        %1770 = vset.pattern.permute.xlu0 0
        %1771 = vperm.xlu0 %1770, %v1329
        %v1772 = vpop.permute.xlu0 %1771
        %1775 = vset.pattern.permute.xlu0 0
        %1776 = vperm.xlu0 %1775, %v1330
        %v1777 = vpop.permute.xlu0 %1776
        %1780 = vset.pattern.permute.xlu0 0
        %1781 = vperm.xlu0 %1780, %v1331
        %v1782 = vpop.permute.xlu0 %1781
        %1785 = vset.pattern.permute.xlu0 0
        %1786 = vperm.xlu0 %1785, %v1332
        %v1787 = vpop.permute.xlu0 %1786
        %1790 = vset.pattern.permute.xlu0 0
        %1791 = vperm.xlu0 %1790, %v1333
        %v1792 = vpop.permute.xlu0 %1791
        %1795 = vset.pattern.permute.xlu0 0
        %1796 = vperm.xlu0 %1795, %v1334
        %v1797 = vpop.permute.xlu0 %1796
        %1800 = vset.pattern.permute.xlu0 0
        %1801 = vperm.xlu0 %1800, %v1335
        %v1802 = vpop.permute.xlu0 %1801
        %1805 = vset.pattern.permute.xlu0 0
        %1806 = vperm.xlu0 %1805, %v1336
        %v1807 = vpop.permute.xlu0 %1806
        %1810 = vset.pattern.permute.xlu0 0
        %1811 = vperm.xlu0 %1810, %v1337
        %v1812 = vpop.permute.xlu0 %1811
        %1815 = vset.pattern.permute.xlu0 0
        %1816 = vperm.xlu0 %1815, %v1338
        %v1817 = vpop.permute.xlu0 %1816
        %1820 = vset.pattern.permute.xlu0 0
        %1821 = vperm.xlu0 %1820, %v1339
        %v1822 = vpop.permute.xlu0 %1821
        %1825 = vset.pattern.permute.xlu0 0
        %1826 = vperm.xlu0 %1825, %v1340
        %v1827 = vpop.permute.xlu0 %1826
        %1830 = vset.pattern.permute.xlu0 0
        %1831 = vperm.xlu0 %1830, %v1341
        %v1832 = vpop.permute.xlu0 %1831
        %1835 = vset.pattern.permute.xlu0 0
        %1836 = vperm.xlu0 %1835, %v1342
        %v1837 = vpop.permute.xlu0 %1836
        %1840 = vset.pattern.permute.xlu0 0
        %1841 = vperm.xlu0 %1840, %v1343
        %v1842 = vpop.permute.xlu0 %1841
        %1845 = vset.pattern.permute.xlu0 0
        %1846 = vperm.xlu0 %1845, %v1344
        %v1847 = vpop.permute.xlu0 %1846
        %1850 = vset.pattern.permute.xlu0 0
        %1851 = vperm.xlu0 %1850, %v1345
        %v1852 = vpop.permute.xlu0 %1851
        %1855 = vset.pattern.permute.xlu0 0
        %1856 = vperm.xlu0 %1855, %v1346
        %v1857 = vpop.permute.xlu0 %1856
        %1860 = vset.pattern.permute.xlu0 0
        %1861 = vperm.xlu0 %1860, %v1347
        %v1862 = vpop.permute.xlu0 %1861
        %1865 = vset.pattern.permute.xlu0 0
        %1866 = vperm.xlu0 %1865, %v1348
        %v1867 = vpop.permute.xlu0 %1866
        %1870 = vset.pattern.permute.xlu0 0
        %1871 = vperm.xlu0 %1870, %v1349
        %v1872 = vpop.permute.xlu0 %1871
        %1875 = vset.pattern.permute.xlu0 0
        %1876 = vperm.xlu0 %1875, %v1350
        %v1877 = vpop.permute.xlu0 %1876
        %1880 = vset.pattern.permute.xlu0 0
        %1881 = vperm.xlu0 %1880, %v1351
        %v1882 = vpop.permute.xlu0 %1881
        %1885 = vset.pattern.permute.xlu0 0
        %1886 = vperm.xlu0 %1885, %v1352
        %v1887 = vpop.permute.xlu0 %1886
        %1890 = vset.pattern.permute.xlu0 0
        %1891 = vperm.xlu0 %1890, %v1353
        %v1892 = vpop.permute.xlu0 %1891
        %1895 = vset.pattern.permute.xlu0 0
        %1896 = vperm.xlu0 %1895, %v1354
        %v1897 = vpop.permute.xlu0 %1896
        %1900 = vset.pattern.permute.xlu0 0
        %1901 = vperm.xlu0 %1900, %v1355
        %v1902 = vpop.permute.xlu0 %1901
        %1905 = vset.pattern.permute.xlu0 0
        %1906 = vperm.xlu0 %1905, %v1356
        %v1907 = vpop.permute.xlu0 %1906
        %1910 = vset.pattern.permute.xlu0 0
        %1911 = vperm.xlu0 %1910, %v1357
        %v1912 = vpop.permute.xlu0 %1911
        %1915 = vset.pattern.permute.xlu0 0
        %1916 = vperm.xlu0 %1915, %v1358
        %v1917 = vpop.permute.xlu0 %1916
        %1920 = vset.pattern.permute.xlu0 0
        %1921 = vperm.xlu0 %1920, %v1359
        %v1922 = vpop.permute.xlu0 %1921
        %1925 = vset.pattern.permute.xlu0 0
        %1926 = vperm.xlu0 %1925, %v1360
        %v1927 = vpop.permute.xlu0 %1926
        %1930 = vset.pattern.permute.xlu0 0
        %1931 = vperm.xlu0 %1930, %v1361
        %v1932 = vpop.permute.xlu0 %1931
        %1935 = vset.pattern.permute.xlu0 0
        %1936 = vperm.xlu0 %1935, %v1362
        %v1937 = vpop.permute.xlu0 %1936
        %1940 = vset.pattern.permute.xlu0 0
        %1941 = vperm.xlu0 %1940, %v1363
        %v1942 = vpop.permute.xlu0 %1941
        %1945 = vset.pattern.permute.xlu0 0
        %1946 = vperm.xlu0 %1945, %v1364
        %v1947 = vpop.permute.xlu0 %1946
        %1950 = vset.pattern.permute.xlu0 0
        %1951 = vperm.xlu0 %1950, %v1365
        %v1952 = vpop.permute.xlu0 %1951
        %1955 = vset.pattern.permute.xlu0 0
        %1956 = vperm.xlu0 %1955, %v1366
        %v1957 = vpop.permute.xlu0 %1956
        %1960 = vset.pattern.permute.xlu0 0
        %1961 = vperm.xlu0 %1960, %v1367
        %v1962 = vpop.permute.xlu0 %1961
        %1965 = vset.pattern.permute.xlu0 0
        %1966 = vperm.xlu0 %1965, %v1368
        %v1967 = vpop.permute.xlu0 %1966
        %1970 = vset.pattern.permute.xlu0 0
        %1971 = vperm.xlu0 %1970, %v1369
        %v1972 = vpop.permute.xlu0 %1971
        %1975 = vset.pattern.permute.xlu0 0
        %1976 = vperm.xlu0 %1975, %v1370
        %v1977 = vpop.permute.xlu0 %1976
        %1980 = vset.pattern.permute.xlu0 0
        %1981 = vperm.xlu0 %1980, %v1371
        %v1982 = vpop.permute.xlu0 %1981
        %1985 = vset.pattern.permute.xlu0 0
        %1986 = vperm.xlu0 %1985, %v1372
        %v1987 = vpop.permute.xlu0 %1986
        %1990 = vset.pattern.permute.xlu0 0
        %1991 = vperm.xlu0 %1990, %v1373
        %v1992 = vpop.permute.xlu0 %1991
        %1995 = vset.pattern.permute.xlu0 0
        %1996 = vperm.xlu0 %1995, %v1374
        %v1997 = vpop.permute.xlu0 %1996
        %2000 = vset.pattern.permute.xlu0 0
        %2001 = vperm.xlu0 %2000, %v1375
        %v2002 = vpop.permute.xlu0 %2001
        %2005 = vset.pattern.permute.xlu0 0
        %2006 = vperm.xlu0 %2005, %v1376
        %v2007 = vpop.permute.xlu0 %2006
        %2010 = vset.pattern.permute.xlu0 0
        %2011 = vperm.xlu0 %2010, %v1377
        %v2012 = vpop.permute.xlu0 %2011
        %2015 = vset.pattern.permute.xlu0 0
        %2016 = vperm.xlu0 %2015, %v1378
        %v2017 = vpop.permute.xlu0 %2016
        %2020 = vset.pattern.permute.xlu0 0
        %2021 = vperm.xlu0 %2020, %v1379
        %v2022 = vpop.permute.xlu0 %2021
        %2025 = vset.pattern.permute.xlu0 0
        %2026 = vperm.xlu0 %2025, %v1380
        %v2027 = vpop.permute.xlu0 %2026
        %2030 = vset.pattern.permute.xlu0 0
        %2031 = vperm.xlu0 %2030, %v1381
        %v2032 = vpop.permute.xlu0 %2031
        %2035 = vset.pattern.permute.xlu0 0
        %2036 = vperm.xlu0 %2035, %v1382
        %v2037 = vpop.permute.xlu0 %2036
        %2040 = vset.pattern.permute.xlu0 0
        %2041 = vperm.xlu0 %2040, %v1383
        %v2042 = vpop.permute.xlu0 %2041
        %2045 = vset.pattern.permute.xlu0 0
        %2046 = vperm.xlu0 %2045, %v1384
        %v2047 = vpop.permute.xlu0 %2046
        %2050 = vset.pattern.permute.xlu0 0
        %2051 = vperm.xlu0 %2050, %v1385
        %v2052 = vpop.permute.xlu0 %2051
        %2055 = vset.pattern.permute.xlu0 0
        %2056 = vperm.xlu0 %2055, %v1386
        %v2057 = vpop.permute.xlu0 %2056
        %2060 = vset.pattern.permute.xlu0 0
        %2061 = vperm.xlu0 %2060, %v1387
        %v2062 = vpop.permute.xlu0 %2061
        %2065 = vset.pattern.permute.xlu0 0
        %2066 = vperm.xlu0 %2065, %v1388
        %v2067 = vpop.permute.xlu0 %2066
        %2070 = vset.pattern.permute.xlu0 0
        %2071 = vperm.xlu0 %2070, %v1389
        %v2072 = vpop.permute.xlu0 %2071
        %2075 = vset.pattern.permute.xlu0 0
        %2076 = vperm.xlu0 %2075, %v1390
        %v2077 = vpop.permute.xlu0 %2076
        %2080 = vset.pattern.permute.xlu0 0
        %2081 = vperm.xlu0 %2080, %v1391
        %v2082 = vpop.permute.xlu0 %2081
        %2085 = vset.pattern.permute.xlu0 0
        %2086 = vperm.xlu0 %2085, %v1392
        %v2087 = vpop.permute.xlu0 %2086
        %2090 = vset.pattern.permute.xlu0 0
        %2091 = vperm.xlu0 %2090, %v1393
        %v2092 = vpop.permute.xlu0 %2091
        %2095 = vset.pattern.permute.xlu0 0
        %2096 = vperm.xlu0 %2095, %v1394
        %v2097 = vpop.permute.xlu0 %2096
        %2100 = vset.pattern.permute.xlu0 0
        %2101 = vperm.xlu0 %2100, %v1395
        %v2102 = vpop.permute.xlu0 %2101
        %2105 = vset.pattern.permute.xlu0 0
        %2106 = vperm.xlu0 %2105, %v1396
        %v2107 = vpop.permute.xlu0 %2106
        %2110 = vset.pattern.permute.xlu0 0
        %2111 = vperm.xlu0 %2110, %v1397
        %v2112 = vpop.permute.xlu0 %2111
        %2115 = vset.pattern.permute.xlu0 0
        %2116 = vperm.xlu0 %2115, %v1398
        %v2117 = vpop.permute.xlu0 %2116
        %2119 = vmatprep.subr.mxu0 %v934
        %2120 = vmatpush1.msra.mxu0 %v933
        %2121 = vmatprep.subr.mxu0 %v932
        %2122 = vmatpush1.msra.mxu0 %v931
        %2123 = vmatprep.subr.mxu0 %v930
        %2124 = vmatpush1.msra.mxu0 %v929
        %2125 = vmatprep.subr.mxu0 %v928
        %2126 = vmatpush1.msra.mxu0 %v927
        %2127 = vmatprep.subr.mxu0 %v926
        %2128 = vmatpush1.msra.mxu0 %v925
        %2129 = vmatprep.subr.mxu0 %v924
        %2130 = vmatpush1.msra.mxu0 %v923
        %2131 = vmatprep.subr.mxu0 %v922
        %2132 = vmatpush1.msra.mxu0 %v921
        %2133 = vmatprep.subr.mxu0 %v920
        %2134 = vmatpush1.msra.mxu0 %v919
        %2135 = vmatprep.subr.mxu0 %v918
        %2136 = vmatpush1.msra.mxu0 %v917
        %2137 = vmatprep.subr.mxu0 %v916
        %2138 = vmatpush1.msra.mxu0 %v915
        %2139 = vmatprep.subr.mxu0 %v914
        %2140 = vmatpush1.msra.mxu0 %v913
        %2141 = vmatprep.subr.mxu0 %v912
        %2142 = vmatpush1.msra.mxu0 %v911
        %2143 = vmatprep.subr.mxu0 %v910
        %2144 = vmatpush1.msra.mxu0 %v909
        %2145 = vmatprep.subr.mxu0 %v908
        %2146 = vmatpush1.msra.mxu0 %v907
        %2147 = vmatprep.subr.mxu0 %v906
        %2148 = vmatpush1.msra.mxu0 %v905
        %2149 = vmatprep.subr.mxu0 %v904
        %2150 = vmatpush1.msra.mxu0 %v903
        %2151 = vmatprep.subr.mxu0 %v966
        %2152 = vmatpush2.msra.mxu0 %v965
        %2153 = vmatprep.subr.mxu0 %v964
        %2154 = vmatpush2.msra.mxu0 %v963
        %2155 = vmatprep.subr.mxu0 %v962
        %2156 = vmatpush2.msra.mxu0 %v961
        %2157 = vmatprep.subr.mxu0 %v960
        %2158 = vmatpush2.msra.mxu0 %v959
        %2159 = vmatprep.subr.mxu0 %v958
        %2160 = vmatpush2.msra.mxu0 %v957
        %2161 = vmatprep.subr.mxu0 %v956
        %2162 = vmatpush2.msra.mxu0 %v955
        %2163 = vmatprep.subr.mxu0 %v954
        %2164 = vmatpush2.msra.mxu0 %v953
        %2165 = vmatprep.subr.mxu0 %v952
        %2166 = vmatpush2.msra.mxu0 %v951
        %2167 = vmatprep.subr.mxu0 %v950
        %2168 = vmatpush2.msra.mxu0 %v949
        %2169 = vmatprep.subr.mxu0 %v948
        %2170 = vmatpush2.msra.mxu0 %v947
        %2171 = vmatprep.subr.mxu0 %v946
        %2172 = vmatpush2.msra.mxu0 %v945
        %2173 = vmatprep.subr.mxu0 %v944
        %2174 = vmatpush2.msra.mxu0 %v943
        %2175 = vmatprep.subr.mxu0 %v942
        %2176 = vmatpush2.msra.mxu0 %v941
        %2177 = vmatprep.subr.mxu0 %v940
        %2178 = vmatpush2.msra.mxu0 %v939
        %2179 = vmatprep.subr.mxu0 %v938
        %2180 = vmatpush2.msra.mxu0 %v937
        %2181 = vmatprep.subr.mxu0 %v936
        %2182 = vmatpush2.msra.mxu0 %v935
        %2183 = vmatprep.mubr.f32.mxu0 %v968
        %2184 = vmatmul.mubr.f32.gmra.mxu0 %v967
        %v2185 = vpop.f32.mrf.mxu0
        %v2186 = vadd.f32 %v1402, %v2185
        %v2187 = vpop.f32.mrf.mxu0
        %v2188 = vadd.f32 %v1402, %v2187
        %2189 = vmatprep.mubr.f32.mxu0 %v970
        %2190 = vmatmul.mubr.f32.gmra.mxu0 %v969
        %v2191 = vpop.f32.mrf.mxu0
        %v2192 = vadd.f32 %v1407, %v2191
        %v2193 = vpop.f32.mrf.mxu0
        %v2194 = vadd.f32 %v1407, %v2193
        %2195 = vmatprep.mubr.f32.mxu0 %v972
        %2196 = vmatmul.mubr.f32.gmra.mxu0 %v971
        %v2197 = vpop.f32.mrf.mxu0
        %v2198 = vadd.f32 %v1412, %v2197
        %v2199 = vpop.f32.mrf.mxu0
        %v2200 = vadd.f32 %v1412, %v2199
        %2201 = vmatprep.mubr.f32.mxu0 %v974
        %2202 = vmatmul.mubr.f32.gmra.mxu0 %v973
        %v2203 = vpop.f32.mrf.mxu0
        %v2204 = vadd.f32 %v1417, %v2203
        %v2205 = vpop.f32.mrf.mxu0
        %v2206 = vadd.f32 %v1417, %v2205
        %2207 = vmatprep.mubr.f32.mxu0 %v976
        %2208 = vmatmul.mubr.f32.gmra.mxu0 %v975
        %v2209 = vpop.f32.mrf.mxu0
        %v2210 = vadd.f32 %v1422, %v2209
        %v2211 = vpop.f32.mrf.mxu0
        %v2212 = vadd.f32 %v1422, %v2211
        %2213 = vmatprep.mubr.f32.mxu0 %v978
        %2214 = vmatmul.mubr.f32.gmra.mxu0 %v977
        %v2215 = vpop.f32.mrf.mxu0
        %v2216 = vadd.f32 %v1427, %v2215
        %v2217 = vpop.f32.mrf.mxu0
        %v2218 = vadd.f32 %v1427, %v2217
        %2219 = vmatprep.mubr.f32.mxu0 %v980
        %2220 = vmatmul.mubr.f32.gmra.mxu0 %v979
        %v2221 = vpop.f32.mrf.mxu0
        %v2222 = vadd.f32 %v1432, %v2221
        %v2223 = vpop.f32.mrf.mxu0
        %v2224 = vadd.f32 %v1432, %v2223
        %2225 = vmatprep.mubr.f32.mxu0 %v982
        %2226 = vmatmul.mubr.f32.gmra.mxu0 %v981
        %v2227 = vpop.f32.mrf.mxu0
        %v2228 = vadd.f32 %v1437, %v2227
        %v2229 = vpop.f32.mrf.mxu0
        %v2230 = vadd.f32 %v1437, %v2229
        %2231 = vmatprep.mubr.f32.mxu0 %v984
        %2232 = vmatmul.mubr.f32.gmra.mxu0 %v983
        %v2233 = vpop.f32.mrf.mxu0
        %v2234 = vadd.f32 %v1442, %v2233
        %v2235 = vpop.f32.mrf.mxu0
        %v2236 = vadd.f32 %v1442, %v2235
        %2237 = vmatprep.mubr.f32.mxu0 %v986
        %2238 = vmatmul.mubr.f32.gmra.mxu0 %v985
        %v2239 = vpop.f32.mrf.mxu0
        %v2240 = vadd.f32 %v1447, %v2239
        %v2241 = vpop.f32.mrf.mxu0
        %v2242 = vadd.f32 %v1447, %v2241
        %2243 = vmatprep.mubr.f32.mxu0 %v988
        %2244 = vmatmul.mubr.f32.gmra.mxu0 %v987
        %v2245 = vpop.f32.mrf.mxu0
        %v2246 = vadd.f32 %v1452, %v2245
        %v2247 = vpop.f32.mrf.mxu0
        %v2248 = vadd.f32 %v1452, %v2247
        %2249 = vmatprep.mubr.f32.mxu0 %v990
        %2250 = vmatmul.mubr.f32.gmra.mxu0 %v989
        %v2251 = vpop.f32.mrf.mxu0
        %v2252 = vadd.f32 %v1457, %v2251
        %v2253 = vpop.f32.mrf.mxu0
        %v2254 = vadd.f32 %v1457, %v2253
        %2255 = vmatprep.mubr.f32.mxu0 %v992
        %2256 = vmatmul.mubr.f32.gmra.mxu0 %v991
        %v2257 = vpop.f32.mrf.mxu0
        %v2258 = vadd.f32 %v1462, %v2257
        %v2259 = vpop.f32.mrf.mxu0
        %v2260 = vadd.f32 %v1462, %v2259
        %2261 = vmatprep.mubr.f32.mxu0 %v994
        %2262 = vmatmul.mubr.f32.gmra.mxu0 %v993
        %v2263 = vpop.f32.mrf.mxu0
        %v2264 = vadd.f32 %v1467, %v2263
        %v2265 = vpop.f32.mrf.mxu0
        %v2266 = vadd.f32 %v1467, %v2265
        %2267 = vmatprep.mubr.f32.mxu0 %v996
        %2268 = vmatmul.mubr.f32.gmra.mxu0 %v995
        %v2269 = vpop.f32.mrf.mxu0
        %v2270 = vadd.f32 %v1472, %v2269
        %v2271 = vpop.f32.mrf.mxu0
        %v2272 = vadd.f32 %v1472, %v2271
        %2273 = vmatprep.mubr.f32.mxu0 %v998
        %2274 = vmatmul.mubr.f32.gmra.mxu0 %v997
        %v2275 = vpop.f32.mrf.mxu0
        %v2276 = vadd.f32 %v1477, %v2275
        %v2277 = vpop.f32.mrf.mxu0
        %v2278 = vadd.f32 %v1477, %v2277
        %2279 = vmatprep.mubr.f32.mxu0 %v1000
        %2280 = vmatmul.mubr.f32.gmra.mxu0 %v999
        %v2281 = vpop.f32.mrf.mxu0
        %v2282 = vadd.f32 %v1482, %v2281
        %v2283 = vpop.f32.mrf.mxu0
        %v2284 = vadd.f32 %v1482, %v2283
        %2285 = vmatprep.mubr.f32.mxu0 %v1002
        %2286 = vmatmul.mubr.f32.gmra.mxu0 %v1001
        %v2287 = vpop.f32.mrf.mxu0
        %v2288 = vadd.f32 %v1487, %v2287
        %v2289 = vpop.f32.mrf.mxu0
        %v2290 = vadd.f32 %v1487, %v2289
        %2291 = vmatprep.mubr.f32.mxu0 %v1004
        %2292 = vmatmul.mubr.f32.gmra.mxu0 %v1003
        %v2293 = vpop.f32.mrf.mxu0
        %v2294 = vadd.f32 %v1492, %v2293
        %v2295 = vpop.f32.mrf.mxu0
        %v2296 = vadd.f32 %v1492, %v2295
        %2297 = vmatprep.mubr.f32.mxu0 %v1006
        %2298 = vmatmul.mubr.f32.gmra.mxu0 %v1005
        %v2299 = vpop.f32.mrf.mxu0
        %v2300 = vadd.f32 %v1497, %v2299
        %v2301 = vpop.f32.mrf.mxu0
        %v2302 = vadd.f32 %v1497, %v2301
        %2303 = vmatprep.mubr.f32.mxu0 %v1008
        %2304 = vmatmul.mubr.f32.gmra.mxu0 %v1007
        %v2305 = vpop.f32.mrf.mxu0
        %v2306 = vadd.f32 %v1502, %v2305
        %v2307 = vpop.f32.mrf.mxu0
        %v2308 = vadd.f32 %v1502, %v2307
        %2309 = vmatprep.mubr.f32.mxu0 %v1010
        %2310 = vmatmul.mubr.f32.gmra.mxu0 %v1009
        %v2311 = vpop.f32.mrf.mxu0
        %v2312 = vadd.f32 %v1507, %v2311
        %v2313 = vpop.f32.mrf.mxu0
        %v2314 = vadd.f32 %v1507, %v2313
        %2315 = vmatprep.mubr.f32.mxu0 %v1012
        %2316 = vmatmul.mubr.f32.gmra.mxu0 %v1011
        %v2317 = vpop.f32.mrf.mxu0
        %v2318 = vadd.f32 %v1512, %v2317
        %v2319 = vpop.f32.mrf.mxu0
        %v2320 = vadd.f32 %v1512, %v2319
        %2321 = vmatprep.mubr.f32.mxu0 %v1014
        %2322 = vmatmul.mubr.f32.gmra.mxu0 %v1013
        %v2323 = vpop.f32.mrf.mxu0
        %v2324 = vadd.f32 %v1517, %v2323
        %v2325 = vpop.f32.mrf.mxu0
        %v2326 = vadd.f32 %v1517, %v2325
        %2327 = vmatprep.mubr.f32.mxu0 %v1016
        %2328 = vmatmul.mubr.f32.gmra.mxu0 %v1015
        %v2329 = vpop.f32.mrf.mxu0
        %v2330 = vadd.f32 %v1522, %v2329
        %v2331 = vpop.f32.mrf.mxu0
        %v2332 = vadd.f32 %v1522, %v2331
        %2333 = vmatprep.mubr.f32.mxu0 %v1018
        %2334 = vmatmul.mubr.f32.gmra.mxu0 %v1017
        %v2335 = vpop.f32.mrf.mxu0
        %v2336 = vadd.f32 %v1527, %v2335
        %v2337 = vpop.f32.mrf.mxu0
        %v2338 = vadd.f32 %v1527, %v2337
        %2339 = vmatprep.mubr.f32.mxu0 %v1020
        %2340 = vmatmul.mubr.f32.gmra.mxu0 %v1019
        %v2341 = vpop.f32.mrf.mxu0
        %v2342 = vadd.f32 %v1532, %v2341
        %v2343 = vpop.f32.mrf.mxu0
        %v2344 = vadd.f32 %v1532, %v2343
        %2345 = vmatprep.mubr.f32.mxu0 %v1022
        %2346 = vmatmul.mubr.f32.gmra.mxu0 %v1021
        %v2347 = vpop.f32.mrf.mxu0
        %v2348 = vadd.f32 %v1537, %v2347
        %v2349 = vpop.f32.mrf.mxu0
        %v2350 = vadd.f32 %v1537, %v2349
        %2351 = vmatprep.mubr.f32.mxu0 %v1024
        %2352 = vmatmul.mubr.f32.gmra.mxu0 %v1023
        %v2353 = vpop.f32.mrf.mxu0
        %v2354 = vadd.f32 %v1542, %v2353
        %v2355 = vpop.f32.mrf.mxu0
        %v2356 = vadd.f32 %v1542, %v2355
        %2357 = vmatprep.mubr.f32.mxu0 %v1026
        %2358 = vmatmul.mubr.f32.gmra.mxu0 %v1025
        %v2359 = vpop.f32.mrf.mxu0
        %v2360 = vadd.f32 %v1547, %v2359
        %v2361 = vpop.f32.mrf.mxu0
        %v2362 = vadd.f32 %v1547, %v2361
        %2363 = vmatprep.mubr.f32.mxu0 %v1028
        %2364 = vmatmul.mubr.f32.gmra.mxu0 %v1027
        %v2365 = vpop.f32.mrf.mxu0
        %v2366 = vadd.f32 %v1552, %v2365
        %v2367 = vpop.f32.mrf.mxu0
        %v2368 = vadd.f32 %v1552, %v2367
        %2369 = vmatprep.mubr.f32.mxu0 %v1030
        %2370 = vmatmul.mubr.f32.gmra.mxu0 %v1029
        %v2371 = vpop.f32.mrf.mxu0
        %v2372 = vadd.f32 %v1557, %v2371
        %v2373 = vpop.f32.mrf.mxu0
        %v2374 = vadd.f32 %v1557, %v2373
        %2375 = vmatprep.mubr.f32.mxu0 %v1032
        %2376 = vmatmul.mubr.f32.gmra.mxu0 %v1031
        %v2377 = vpop.f32.mrf.mxu0
        %v2378 = vadd.f32 %v1562, %v2377
        %v2379 = vpop.f32.mrf.mxu0
        %v2380 = vadd.f32 %v1562, %v2379
        %2381 = vmatprep.mubr.f32.mxu0 %v1034
        %2382 = vmatmul.mubr.f32.gmra.mxu0 %v1033
        %v2383 = vpop.f32.mrf.mxu0
        %v2384 = vadd.f32 %v1567, %v2383
        %v2385 = vpop.f32.mrf.mxu0
        %v2386 = vadd.f32 %v1567, %v2385
        %2387 = vmatprep.mubr.f32.mxu0 %v1036
        %2388 = vmatmul.mubr.f32.gmra.mxu0 %v1035
        %v2389 = vpop.f32.mrf.mxu0
        %v2390 = vadd.f32 %v1572, %v2389
        %v2391 = vpop.f32.mrf.mxu0
        %v2392 = vadd.f32 %v1572, %v2391
        %2393 = vmatprep.mubr.f32.mxu0 %v1038
        %2394 = vmatmul.mubr.f32.gmra.mxu0 %v1037
        %v2395 = vpop.f32.mrf.mxu0
        %v2396 = vadd.f32 %v1577, %v2395
        %v2397 = vpop.f32.mrf.mxu0
        %v2398 = vadd.f32 %v1577, %v2397
        %2399 = vmatprep.mubr.f32.mxu0 %v1040
        %2400 = vmatmul.mubr.f32.gmra.mxu0 %v1039
        %v2401 = vpop.f32.mrf.mxu0
        %v2402 = vadd.f32 %v1582, %v2401
        %v2403 = vpop.f32.mrf.mxu0
        %v2404 = vadd.f32 %v1582, %v2403
        %2405 = vmatprep.mubr.f32.mxu0 %v1042
        %2406 = vmatmul.mubr.f32.gmra.mxu0 %v1041
        %v2407 = vpop.f32.mrf.mxu0
        %v2408 = vadd.f32 %v1587, %v2407
        %v2409 = vpop.f32.mrf.mxu0
        %v2410 = vadd.f32 %v1587, %v2409
        %2411 = vmatprep.mubr.f32.mxu0 %v1044
        %2412 = vmatmul.mubr.f32.gmra.mxu0 %v1043
        %v2413 = vpop.f32.mrf.mxu0
        %v2414 = vadd.f32 %v1592, %v2413
        %v2415 = vpop.f32.mrf.mxu0
        %v2416 = vadd.f32 %v1592, %v2415
        %2417 = vmatprep.mubr.f32.mxu0 %v1046
        %2418 = vmatmul.mubr.f32.gmra.mxu0 %v1045
        %v2419 = vpop.f32.mrf.mxu0
        %v2420 = vadd.f32 %v1597, %v2419
        %v2421 = vpop.f32.mrf.mxu0
        %v2422 = vadd.f32 %v1597, %v2421
        %2423 = vmatprep.mubr.f32.mxu0 %v1048
        %2424 = vmatmul.mubr.f32.gmra.mxu0 %v1047
        %v2425 = vpop.f32.mrf.mxu0
        %v2426 = vadd.f32 %v1602, %v2425
        %v2427 = vpop.f32.mrf.mxu0
        %v2428 = vadd.f32 %v1602, %v2427
        %2429 = vmatprep.mubr.f32.mxu0 %v1050
        %2430 = vmatmul.mubr.f32.gmra.mxu0 %v1049
        %v2431 = vpop.f32.mrf.mxu0
        %v2432 = vadd.f32 %v1607, %v2431
        %v2433 = vpop.f32.mrf.mxu0
        %v2434 = vadd.f32 %v1607, %v2433
        %2435 = vmatprep.mubr.f32.mxu0 %v1052
        %2436 = vmatmul.mubr.f32.gmra.mxu0 %v1051
        %v2437 = vpop.f32.mrf.mxu0
        %v2438 = vadd.f32 %v1612, %v2437
        %v2439 = vpop.f32.mrf.mxu0
        %v2440 = vadd.f32 %v1612, %v2439
        %2441 = vmatprep.mubr.f32.mxu0 %v1054
        %2442 = vmatmul.mubr.f32.gmra.mxu0 %v1053
        %v2443 = vpop.f32.mrf.mxu0
        %v2444 = vadd.f32 %v1617, %v2443
        %v2445 = vpop.f32.mrf.mxu0
        %v2446 = vadd.f32 %v1617, %v2445
        %2447 = vmatprep.mubr.f32.mxu0 %v1056
        %2448 = vmatmul.mubr.f32.gmra.mxu0 %v1055
        %v2449 = vpop.f32.mrf.mxu0
        %v2450 = vadd.f32 %v1622, %v2449
        %v2451 = vpop.f32.mrf.mxu0
        %v2452 = vadd.f32 %v1622, %v2451
        %2453 = vmatprep.mubr.f32.mxu0 %v1058
        %2454 = vmatmul.mubr.f32.gmra.mxu0 %v1057
        %v2455 = vpop.f32.mrf.mxu0
        %v2456 = vadd.f32 %v1627, %v2455
        %v2457 = vpop.f32.mrf.mxu0
        %v2458 = vadd.f32 %v1627, %v2457
        %2459 = vmatprep.mubr.f32.mxu0 %v1060
        %2460 = vmatmul.mubr.f32.gmra.mxu0 %v1059
        %v2461 = vpop.f32.mrf.mxu0
        %v2462 = vadd.f32 %v1632, %v2461
        %v2463 = vpop.f32.mrf.mxu0
        %v2464 = vadd.f32 %v1632, %v2463
        %2465 = vmatprep.mubr.f32.mxu0 %v1062
        %2466 = vmatmul.mubr.f32.gmra.mxu0 %v1061
        %v2467 = vpop.f32.mrf.mxu0
        %v2468 = vadd.f32 %v1637, %v2467
        %v2469 = vpop.f32.mrf.mxu0
        %v2470 = vadd.f32 %v1637, %v2469
        %2471 = vmatprep.mubr.f32.mxu0 %v1064
        %2472 = vmatmul.mubr.f32.gmra.mxu0 %v1063
        %v2473 = vpop.f32.mrf.mxu0
        %v2474 = vadd.f32 %v1642, %v2473
        %v2475 = vpop.f32.mrf.mxu0
        %v2476 = vadd.f32 %v1642, %v2475
        %2477 = vmatprep.mubr.f32.mxu0 %v1066
        %2478 = vmatmul.mubr.f32.gmra.mxu0 %v1065
        %v2479 = vpop.f32.mrf.mxu0
        %v2480 = vadd.f32 %v1647, %v2479
        %v2481 = vpop.f32.mrf.mxu0
        %v2482 = vadd.f32 %v1647, %v2481
        %2483 = vmatprep.mubr.f32.mxu0 %v1068
        %2484 = vmatmul.mubr.f32.gmra.mxu0 %v1067
        %v2485 = vpop.f32.mrf.mxu0
        %v2486 = vadd.f32 %v1652, %v2485
        %v2487 = vpop.f32.mrf.mxu0
        %v2488 = vadd.f32 %v1652, %v2487
        %2489 = vmatprep.mubr.f32.mxu0 %v1070
        %2490 = vmatmul.mubr.f32.gmra.mxu0 %v1069
        %v2491 = vpop.f32.mrf.mxu0
        %v2492 = vadd.f32 %v1657, %v2491
        %v2493 = vpop.f32.mrf.mxu0
        %v2494 = vadd.f32 %v1657, %v2493
        %2495 = vmatprep.mubr.f32.mxu0 %v1072
        %2496 = vmatmul.mubr.f32.gmra.mxu0 %v1071
        %v2497 = vpop.f32.mrf.mxu0
        %v2498 = vadd.f32 %v1662, %v2497
        %v2499 = vpop.f32.mrf.mxu0
        %v2500 = vadd.f32 %v1662, %v2499
        %2501 = vmatprep.mubr.f32.mxu0 %v1074
        %2502 = vmatmul.mubr.f32.gmra.mxu0 %v1073
        %v2503 = vpop.f32.mrf.mxu0
        %v2504 = vadd.f32 %v1667, %v2503
        %v2505 = vpop.f32.mrf.mxu0
        %v2506 = vadd.f32 %v1667, %v2505
        %2507 = vmatprep.mubr.f32.mxu0 %v1076
        %2508 = vmatmul.mubr.f32.gmra.mxu0 %v1075
        %v2509 = vpop.f32.mrf.mxu0
        %v2510 = vadd.f32 %v1672, %v2509
        %v2511 = vpop.f32.mrf.mxu0
        %v2512 = vadd.f32 %v1672, %v2511
        %2513 = vmatprep.mubr.f32.mxu0 %v1078
        %2514 = vmatmul.mubr.f32.gmra.mxu0 %v1077
        %v2515 = vpop.f32.mrf.mxu0
        %v2516 = vadd.f32 %v1677, %v2515
        %v2517 = vpop.f32.mrf.mxu0
        %v2518 = vadd.f32 %v1677, %v2517
        %2519 = vmatprep.mubr.f32.mxu0 %v1080
        %2520 = vmatmul.mubr.f32.gmra.mxu0 %v1079
        %v2521 = vpop.f32.mrf.mxu0
        %v2522 = vadd.f32 %v1682, %v2521
        %v2523 = vpop.f32.mrf.mxu0
        %v2524 = vadd.f32 %v1682, %v2523
        %2525 = vmatprep.mubr.f32.mxu0 %v1082
        %2526 = vmatmul.mubr.f32.gmra.mxu0 %v1081
        %v2527 = vpop.f32.mrf.mxu0
        %v2528 = vadd.f32 %v1687, %v2527
        %v2529 = vpop.f32.mrf.mxu0
        %v2530 = vadd.f32 %v1687, %v2529
        %2531 = vmatprep.mubr.f32.mxu0 %v1084
        %2532 = vmatmul.mubr.f32.gmra.mxu0 %v1083
        %v2533 = vpop.f32.mrf.mxu0
        %v2534 = vadd.f32 %v1692, %v2533
        %v2535 = vpop.f32.mrf.mxu0
        %v2536 = vadd.f32 %v1692, %v2535
        %2537 = vmatprep.mubr.f32.mxu0 %v1086
        %2538 = vmatmul.mubr.f32.gmra.mxu0 %v1085
        %v2539 = vpop.f32.mrf.mxu0
        %v2540 = vadd.f32 %v1697, %v2539
        %v2541 = vpop.f32.mrf.mxu0
        %v2542 = vadd.f32 %v1697, %v2541
        %2543 = vmatprep.mubr.f32.mxu0 %v1088
        %2544 = vmatmul.mubr.f32.gmra.mxu0 %v1087
        %v2545 = vpop.f32.mrf.mxu0
        %v2546 = vadd.f32 %v1702, %v2545
        %v2547 = vpop.f32.mrf.mxu0
        %v2548 = vadd.f32 %v1702, %v2547
        %2549 = vmatprep.mubr.f32.mxu0 %v1090
        %2550 = vmatmul.mubr.f32.gmra.mxu0 %v1089
        %v2551 = vpop.f32.mrf.mxu0
        %v2552 = vadd.f32 %v1707, %v2551
        %v2553 = vpop.f32.mrf.mxu0
        %v2554 = vadd.f32 %v1707, %v2553
        %2555 = vmatprep.mubr.f32.mxu0 %v1092
        %2556 = vmatmul.mubr.f32.gmra.mxu0 %v1091
        %v2557 = vpop.f32.mrf.mxu0
        %v2558 = vadd.f32 %v1712, %v2557
        %v2559 = vpop.f32.mrf.mxu0
        %v2560 = vadd.f32 %v1712, %v2559
        %2561 = vmatprep.mubr.f32.mxu0 %v1094
        %2562 = vmatmul.mubr.f32.gmra.mxu0 %v1093
        %v2563 = vpop.f32.mrf.mxu0
        %v2564 = vadd.f32 %v1717, %v2563
        %v2565 = vpop.f32.mrf.mxu0
        %v2566 = vadd.f32 %v1717, %v2565
        %2567 = vmatprep.mubr.f32.mxu0 %v1096
        %2568 = vmatmul.mubr.f32.gmra.mxu0 %v1095
        %v2569 = vpop.f32.mrf.mxu0
        %v2570 = vadd.f32 %v1722, %v2569
        %v2571 = vpop.f32.mrf.mxu0
        %v2572 = vadd.f32 %v1722, %v2571
        %2573 = vmatprep.mubr.f32.mxu0 %v1098
        %2574 = vmatmul.mubr.f32.gmra.mxu0 %v1097
        %v2575 = vpop.f32.mrf.mxu0
        %v2576 = vadd.f32 %v1727, %v2575
        %v2577 = vpop.f32.mrf.mxu0
        %v2578 = vadd.f32 %v1727, %v2577
        %2579 = vmatprep.mubr.f32.mxu0 %v1100
        %2580 = vmatmul.mubr.f32.gmra.mxu0 %v1099
        %v2581 = vpop.f32.mrf.mxu0
        %v2582 = vadd.f32 %v1732, %v2581
        %v2583 = vpop.f32.mrf.mxu0
        %v2584 = vadd.f32 %v1732, %v2583
        %2585 = vmatprep.mubr.f32.mxu0 %v1102
        %2586 = vmatmul.mubr.f32.gmra.mxu0 %v1101
        %v2587 = vpop.f32.mrf.mxu0
        %v2588 = vadd.f32 %v1737, %v2587
        %v2589 = vpop.f32.mrf.mxu0
        %v2590 = vadd.f32 %v1737, %v2589
        %2591 = vmatprep.mubr.f32.mxu0 %v1104
        %2592 = vmatmul.mubr.f32.gmra.mxu0 %v1103
        %v2593 = vpop.f32.mrf.mxu0
        %v2594 = vadd.f32 %v1742, %v2593
        %v2595 = vpop.f32.mrf.mxu0
        %v2596 = vadd.f32 %v1742, %v2595
        %2597 = vmatprep.mubr.f32.mxu0 %v1106
        %2598 = vmatmul.mubr.f32.gmra.mxu0 %v1105
        %v2599 = vpop.f32.mrf.mxu0
        %v2600 = vadd.f32 %v1747, %v2599
        %v2601 = vpop.f32.mrf.mxu0
        %v2602 = vadd.f32 %v1747, %v2601
        %2603 = vmatprep.mubr.f32.mxu0 %v1108
        %2604 = vmatmul.mubr.f32.gmra.mxu0 %v1107
        %v2605 = vpop.f32.mrf.mxu0
        %v2606 = vadd.f32 %v1752, %v2605
        %v2607 = vpop.f32.mrf.mxu0
        %v2608 = vadd.f32 %v1752, %v2607
        %2609 = vmatprep.mubr.f32.mxu0 %v1110
        %2610 = vmatmul.mubr.f32.gmra.mxu0 %v1109
        %v2611 = vpop.f32.mrf.mxu0
        %v2612 = vadd.f32 %v1757, %v2611
        %v2613 = vpop.f32.mrf.mxu0
        %v2614 = vadd.f32 %v1757, %v2613
        %2615 = vmatprep.mubr.f32.mxu0 %v1112
        %2616 = vmatmul.mubr.f32.gmra.mxu0 %v1111
        %v2617 = vpop.f32.mrf.mxu0
        %v2618 = vadd.f32 %v1762, %v2617
        %v2619 = vpop.f32.mrf.mxu0
        %v2620 = vadd.f32 %v1762, %v2619
        %2621 = vmatprep.mubr.f32.mxu0 %v1114
        %2622 = vmatmul.mubr.f32.gmra.mxu0 %v1113
        %v2623 = vpop.f32.mrf.mxu0
        %v2624 = vadd.f32 %v1767, %v2623
        %v2625 = vpop.f32.mrf.mxu0
        %v2626 = vadd.f32 %v1767, %v2625
        %2627 = vmatprep.mubr.f32.mxu0 %v1116
        %2628 = vmatmul.mubr.f32.gmra.mxu0 %v1115
        %v2629 = vpop.f32.mrf.mxu0
        %v2630 = vadd.f32 %v1772, %v2629
        %v2631 = vpop.f32.mrf.mxu0
        %v2632 = vadd.f32 %v1772, %v2631
        %2633 = vmatprep.mubr.f32.mxu0 %v1118
        %2634 = vmatmul.mubr.f32.gmra.mxu0 %v1117
        %v2635 = vpop.f32.mrf.mxu0
        %v2636 = vadd.f32 %v1777, %v2635
        %v2637 = vpop.f32.mrf.mxu0
        %v2638 = vadd.f32 %v1777, %v2637
        %2639 = vmatprep.mubr.f32.mxu0 %v1120
        %2640 = vmatmul.mubr.f32.gmra.mxu0 %v1119
        %v2641 = vpop.f32.mrf.mxu0
        %v2642 = vadd.f32 %v1782, %v2641
        %v2643 = vpop.f32.mrf.mxu0
        %v2644 = vadd.f32 %v1782, %v2643
        %2645 = vmatprep.mubr.f32.mxu0 %v1122
        %2646 = vmatmul.mubr.f32.gmra.mxu0 %v1121
        %v2647 = vpop.f32.mrf.mxu0
        %v2648 = vadd.f32 %v1787, %v2647
        %v2649 = vpop.f32.mrf.mxu0
        %v2650 = vadd.f32 %v1787, %v2649
        %2651 = vmatprep.mubr.f32.mxu0 %v1124
        %2652 = vmatmul.mubr.f32.gmra.mxu0 %v1123
        %v2653 = vpop.f32.mrf.mxu0
        %v2654 = vadd.f32 %v1792, %v2653
        %v2655 = vpop.f32.mrf.mxu0
        %v2656 = vadd.f32 %v1792, %v2655
        %2657 = vmatprep.mubr.f32.mxu0 %v1126
        %2658 = vmatmul.mubr.f32.gmra.mxu0 %v1125
        %v2659 = vpop.f32.mrf.mxu0
        %v2660 = vadd.f32 %v1797, %v2659
        %v2661 = vpop.f32.mrf.mxu0
        %v2662 = vadd.f32 %v1797, %v2661
        %2663 = vmatprep.mubr.f32.mxu0 %v1128
        %2664 = vmatmul.mubr.f32.gmra.mxu0 %v1127
        %v2665 = vpop.f32.mrf.mxu0
        %v2666 = vadd.f32 %v1802, %v2665
        %v2667 = vpop.f32.mrf.mxu0
        %v2668 = vadd.f32 %v1802, %v2667
        %2669 = vmatprep.mubr.f32.mxu0 %v1130
        %2670 = vmatmul.mubr.f32.gmra.mxu0 %v1129
        %v2671 = vpop.f32.mrf.mxu0
        %v2672 = vadd.f32 %v1807, %v2671
        %v2673 = vpop.f32.mrf.mxu0
        %v2674 = vadd.f32 %v1807, %v2673
        %2675 = vmatprep.mubr.f32.mxu0 %v1132
        %2676 = vmatmul.mubr.f32.gmra.mxu0 %v1131
        %v2677 = vpop.f32.mrf.mxu0
        %v2678 = vadd.f32 %v1812, %v2677
        %v2679 = vpop.f32.mrf.mxu0
        %v2680 = vadd.f32 %v1812, %v2679
        %2681 = vmatprep.mubr.f32.mxu0 %v1134
        %2682 = vmatmul.mubr.f32.gmra.mxu0 %v1133
        %v2683 = vpop.f32.mrf.mxu0
        %v2684 = vadd.f32 %v1817, %v2683
        %v2685 = vpop.f32.mrf.mxu0
        %v2686 = vadd.f32 %v1817, %v2685
        %2687 = vmatprep.mubr.f32.mxu0 %v1136
        %2688 = vmatmul.mubr.f32.gmra.mxu0 %v1135
        %v2689 = vpop.f32.mrf.mxu0
        %v2690 = vadd.f32 %v1822, %v2689
        %v2691 = vpop.f32.mrf.mxu0
        %v2692 = vadd.f32 %v1822, %v2691
        %2693 = vmatprep.mubr.f32.mxu0 %v1138
        %2694 = vmatmul.mubr.f32.gmra.mxu0 %v1137
        %v2695 = vpop.f32.mrf.mxu0
        %v2696 = vadd.f32 %v1827, %v2695
        %v2697 = vpop.f32.mrf.mxu0
        %v2698 = vadd.f32 %v1827, %v2697
        %2699 = vmatprep.mubr.f32.mxu0 %v1140
        %2700 = vmatmul.mubr.f32.gmra.mxu0 %v1139
        %v2701 = vpop.f32.mrf.mxu0
        %v2702 = vadd.f32 %v1832, %v2701
        %v2703 = vpop.f32.mrf.mxu0
        %v2704 = vadd.f32 %v1832, %v2703
        %2705 = vmatprep.mubr.f32.mxu0 %v1142
        %2706 = vmatmul.mubr.f32.gmra.mxu0 %v1141
        %v2707 = vpop.f32.mrf.mxu0
        %v2708 = vadd.f32 %v1837, %v2707
        %v2709 = vpop.f32.mrf.mxu0
        %v2710 = vadd.f32 %v1837, %v2709
        %2711 = vmatprep.mubr.f32.mxu0 %v1144
        %2712 = vmatmul.mubr.f32.gmra.mxu0 %v1143
        %v2713 = vpop.f32.mrf.mxu0
        %v2714 = vadd.f32 %v1842, %v2713
        %v2715 = vpop.f32.mrf.mxu0
        %v2716 = vadd.f32 %v1842, %v2715
        %2717 = vmatprep.mubr.f32.mxu0 %v1146
        %2718 = vmatmul.mubr.f32.gmra.mxu0 %v1145
        %v2719 = vpop.f32.mrf.mxu0
        %v2720 = vadd.f32 %v1847, %v2719
        %v2721 = vpop.f32.mrf.mxu0
        %v2722 = vadd.f32 %v1847, %v2721
        %2723 = vmatprep.mubr.f32.mxu0 %v1148
        %2724 = vmatmul.mubr.f32.gmra.mxu0 %v1147
        %v2725 = vpop.f32.mrf.mxu0
        %v2726 = vadd.f32 %v1852, %v2725
        %v2727 = vpop.f32.mrf.mxu0
        %v2728 = vadd.f32 %v1852, %v2727
        %2729 = vmatprep.mubr.f32.mxu0 %v1150
        %2730 = vmatmul.mubr.f32.gmra.mxu0 %v1149
        %v2731 = vpop.f32.mrf.mxu0
        %v2732 = vadd.f32 %v1857, %v2731
        %v2733 = vpop.f32.mrf.mxu0
        %v2734 = vadd.f32 %v1857, %v2733
        %2735 = vmatprep.mubr.f32.mxu0 %v1152
        %2736 = vmatmul.mubr.f32.gmra.mxu0 %v1151
        %v2737 = vpop.f32.mrf.mxu0
        %v2738 = vadd.f32 %v1862, %v2737
        %v2739 = vpop.f32.mrf.mxu0
        %v2740 = vadd.f32 %v1862, %v2739
        %2741 = vmatprep.mubr.f32.mxu0 %v1154
        %2742 = vmatmul.mubr.f32.gmra.mxu0 %v1153
        %v2743 = vpop.f32.mrf.mxu0
        %v2744 = vadd.f32 %v1867, %v2743
        %v2745 = vpop.f32.mrf.mxu0
        %v2746 = vadd.f32 %v1867, %v2745
        %2747 = vmatprep.mubr.f32.mxu0 %v1156
        %2748 = vmatmul.mubr.f32.gmra.mxu0 %v1155
        %v2749 = vpop.f32.mrf.mxu0
        %v2750 = vadd.f32 %v1872, %v2749
        %v2751 = vpop.f32.mrf.mxu0
        %v2752 = vadd.f32 %v1872, %v2751
        %2753 = vmatprep.mubr.f32.mxu0 %v1158
        %2754 = vmatmul.mubr.f32.gmra.mxu0 %v1157
        %v2755 = vpop.f32.mrf.mxu0
        %v2756 = vadd.f32 %v1877, %v2755
        %v2757 = vpop.f32.mrf.mxu0
        %v2758 = vadd.f32 %v1877, %v2757
        %2759 = vmatprep.mubr.f32.mxu0 %v1160
        %2760 = vmatmul.mubr.f32.gmra.mxu0 %v1159
        %v2761 = vpop.f32.mrf.mxu0
        %v2762 = vadd.f32 %v1882, %v2761
        %v2763 = vpop.f32.mrf.mxu0
        %v2764 = vadd.f32 %v1882, %v2763
        %2765 = vmatprep.mubr.f32.mxu0 %v1162
        %2766 = vmatmul.mubr.f32.gmra.mxu0 %v1161
        %v2767 = vpop.f32.mrf.mxu0
        %v2768 = vadd.f32 %v1887, %v2767
        %v2769 = vpop.f32.mrf.mxu0
        %v2770 = vadd.f32 %v1887, %v2769
        %2771 = vmatprep.mubr.f32.mxu0 %v1164
        %2772 = vmatmul.mubr.f32.gmra.mxu0 %v1163
        %v2773 = vpop.f32.mrf.mxu0
        %v2774 = vadd.f32 %v1892, %v2773
        %v2775 = vpop.f32.mrf.mxu0
        %v2776 = vadd.f32 %v1892, %v2775
        %2777 = vmatprep.mubr.f32.mxu0 %v1166
        %2778 = vmatmul.mubr.f32.gmra.mxu0 %v1165
        %v2779 = vpop.f32.mrf.mxu0
        %v2780 = vadd.f32 %v1897, %v2779
        %v2781 = vpop.f32.mrf.mxu0
        %v2782 = vadd.f32 %v1897, %v2781
        %2783 = vmatprep.mubr.f32.mxu0 %v1168
        %2784 = vmatmul.mubr.f32.gmra.mxu0 %v1167
        %v2785 = vpop.f32.mrf.mxu0
        %v2786 = vadd.f32 %v1902, %v2785
        %v2787 = vpop.f32.mrf.mxu0
        %v2788 = vadd.f32 %v1902, %v2787
        %2789 = vmatprep.mubr.f32.mxu0 %v1170
        %2790 = vmatmul.mubr.f32.gmra.mxu0 %v1169
        %v2791 = vpop.f32.mrf.mxu0
        %v2792 = vadd.f32 %v1907, %v2791
        %v2793 = vpop.f32.mrf.mxu0
        %v2794 = vadd.f32 %v1907, %v2793
        %2795 = vmatprep.mubr.f32.mxu0 %v1172
        %2796 = vmatmul.mubr.f32.gmra.mxu0 %v1171
        %v2797 = vpop.f32.mrf.mxu0
        %v2798 = vadd.f32 %v1912, %v2797
        %v2799 = vpop.f32.mrf.mxu0
        %v2800 = vadd.f32 %v1912, %v2799
        %2801 = vmatprep.mubr.f32.mxu0 %v1174
        %2802 = vmatmul.mubr.f32.gmra.mxu0 %v1173
        %v2803 = vpop.f32.mrf.mxu0
        %v2804 = vadd.f32 %v1917, %v2803
        %v2805 = vpop.f32.mrf.mxu0
        %v2806 = vadd.f32 %v1917, %v2805
        %2807 = vmatprep.mubr.f32.mxu0 %v1176
        %2808 = vmatmul.mubr.f32.gmra.mxu0 %v1175
        %v2809 = vpop.f32.mrf.mxu0
        %v2810 = vadd.f32 %v1922, %v2809
        %v2811 = vpop.f32.mrf.mxu0
        %v2812 = vadd.f32 %v1922, %v2811
        %2813 = vmatprep.mubr.f32.mxu0 %v1178
        %2814 = vmatmul.mubr.f32.gmra.mxu0 %v1177
        %v2815 = vpop.f32.mrf.mxu0
        %v2816 = vadd.f32 %v1927, %v2815
        %v2817 = vpop.f32.mrf.mxu0
        %v2818 = vadd.f32 %v1927, %v2817
        %2819 = vmatprep.mubr.f32.mxu0 %v1180
        %2820 = vmatmul.mubr.f32.gmra.mxu0 %v1179
        %v2821 = vpop.f32.mrf.mxu0
        %v2822 = vadd.f32 %v1932, %v2821
        %v2823 = vpop.f32.mrf.mxu0
        %v2824 = vadd.f32 %v1932, %v2823
        %2825 = vmatprep.mubr.f32.mxu0 %v1182
        %2826 = vmatmul.mubr.f32.gmra.mxu0 %v1181
        %v2827 = vpop.f32.mrf.mxu0
        %v2828 = vadd.f32 %v1937, %v2827
        %v2829 = vpop.f32.mrf.mxu0
        %v2830 = vadd.f32 %v1937, %v2829
        %2831 = vmatprep.mubr.f32.mxu0 %v1184
        %2832 = vmatmul.mubr.f32.gmra.mxu0 %v1183
        %v2833 = vpop.f32.mrf.mxu0
        %v2834 = vadd.f32 %v1942, %v2833
        %v2835 = vpop.f32.mrf.mxu0
        %v2836 = vadd.f32 %v1942, %v2835
        %2837 = vmatprep.mubr.f32.mxu0 %v1186
        %2838 = vmatmul.mubr.f32.gmra.mxu0 %v1185
        %v2839 = vpop.f32.mrf.mxu0
        %v2840 = vadd.f32 %v1947, %v2839
        %v2841 = vpop.f32.mrf.mxu0
        %v2842 = vadd.f32 %v1947, %v2841
        %2843 = vmatprep.mubr.f32.mxu0 %v1188
        %2844 = vmatmul.mubr.f32.gmra.mxu0 %v1187
        %v2845 = vpop.f32.mrf.mxu0
        %v2846 = vadd.f32 %v1952, %v2845
        %v2847 = vpop.f32.mrf.mxu0
        %v2848 = vadd.f32 %v1952, %v2847
        %2849 = vmatprep.mubr.f32.mxu0 %v1190
        %2850 = vmatmul.mubr.f32.gmra.mxu0 %v1189
        %v2851 = vpop.f32.mrf.mxu0
        %v2852 = vadd.f32 %v1957, %v2851
        %v2853 = vpop.f32.mrf.mxu0
        %v2854 = vadd.f32 %v1957, %v2853
        %2855 = vmatprep.mubr.f32.mxu0 %v1192
        %2856 = vmatmul.mubr.f32.gmra.mxu0 %v1191
        %v2857 = vpop.f32.mrf.mxu0
        %v2858 = vadd.f32 %v1962, %v2857
        %v2859 = vpop.f32.mrf.mxu0
        %v2860 = vadd.f32 %v1962, %v2859
        %2861 = vmatprep.mubr.f32.mxu0 %v1194
        %2862 = vmatmul.mubr.f32.gmra.mxu0 %v1193
        %v2863 = vpop.f32.mrf.mxu0
        %v2864 = vadd.f32 %v1967, %v2863
        %v2865 = vpop.f32.mrf.mxu0
        %v2866 = vadd.f32 %v1967, %v2865
        %2867 = vmatprep.mubr.f32.mxu0 %v1196
        %2868 = vmatmul.mubr.f32.gmra.mxu0 %v1195
        %v2869 = vpop.f32.mrf.mxu0
        %v2870 = vadd.f32 %v1972, %v2869
        %v2871 = vpop.f32.mrf.mxu0
        %v2872 = vadd.f32 %v1972, %v2871
        %2873 = vmatprep.mubr.f32.mxu0 %v1198
        %2874 = vmatmul.mubr.f32.gmra.mxu0 %v1197
        %v2875 = vpop.f32.mrf.mxu0
        %v2876 = vadd.f32 %v1977, %v2875
        %v2877 = vpop.f32.mrf.mxu0
        %v2878 = vadd.f32 %v1977, %v2877
        %2879 = vmatprep.mubr.f32.mxu0 %v1200
        %2880 = vmatmul.mubr.f32.gmra.mxu0 %v1199
        %v2881 = vpop.f32.mrf.mxu0
        %v2882 = vadd.f32 %v1982, %v2881
        %v2883 = vpop.f32.mrf.mxu0
        %v2884 = vadd.f32 %v1982, %v2883
        %2885 = vmatprep.mubr.f32.mxu0 %v1202
        %2886 = vmatmul.mubr.f32.gmra.mxu0 %v1201
        %v2887 = vpop.f32.mrf.mxu0
        %v2888 = vadd.f32 %v1987, %v2887
        %v2889 = vpop.f32.mrf.mxu0
        %v2890 = vadd.f32 %v1987, %v2889
        %2891 = vmatprep.mubr.f32.mxu0 %v1204
        %2892 = vmatmul.mubr.f32.gmra.mxu0 %v1203
        %v2893 = vpop.f32.mrf.mxu0
        %v2894 = vadd.f32 %v1992, %v2893
        %v2895 = vpop.f32.mrf.mxu0
        %v2896 = vadd.f32 %v1992, %v2895
        %2897 = vmatprep.mubr.f32.mxu0 %v1206
        %2898 = vmatmul.mubr.f32.gmra.mxu0 %v1205
        %v2899 = vpop.f32.mrf.mxu0
        %v2900 = vadd.f32 %v1997, %v2899
        %v2901 = vpop.f32.mrf.mxu0
        %v2902 = vadd.f32 %v1997, %v2901
        %2903 = vmatprep.mubr.f32.mxu0 %v1208
        %2904 = vmatmul.mubr.f32.gmra.mxu0 %v1207
        %v2905 = vpop.f32.mrf.mxu0
        %v2906 = vadd.f32 %v2002, %v2905
        %v2907 = vpop.f32.mrf.mxu0
        %v2908 = vadd.f32 %v2002, %v2907
        %2909 = vmatprep.mubr.f32.mxu0 %v1210
        %2910 = vmatmul.mubr.f32.gmra.mxu0 %v1209
        %v2911 = vpop.f32.mrf.mxu0
        %v2912 = vadd.f32 %v2007, %v2911
        %v2913 = vpop.f32.mrf.mxu0
        %v2914 = vadd.f32 %v2007, %v2913
        %2915 = vmatprep.mubr.f32.mxu0 %v1212
        %2916 = vmatmul.mubr.f32.gmra.mxu0 %v1211
        %v2917 = vpop.f32.mrf.mxu0
        %v2918 = vadd.f32 %v2012, %v2917
        %v2919 = vpop.f32.mrf.mxu0
        %v2920 = vadd.f32 %v2012, %v2919
        %2921 = vmatprep.mubr.f32.mxu0 %v1214
        %2922 = vmatmul.mubr.f32.gmra.mxu0 %v1213
        %v2923 = vpop.f32.mrf.mxu0
        %v2924 = vadd.f32 %v2017, %v2923
        %v2925 = vpop.f32.mrf.mxu0
        %v2926 = vadd.f32 %v2017, %v2925
        %2927 = vmatprep.mubr.f32.mxu0 %v1216
        %2928 = vmatmul.mubr.f32.gmra.mxu0 %v1215
        %v2929 = vpop.f32.mrf.mxu0
        %v2930 = vadd.f32 %v2022, %v2929
        %v2931 = vpop.f32.mrf.mxu0
        %v2932 = vadd.f32 %v2022, %v2931
        %2933 = vmatprep.mubr.f32.mxu0 %v1218
        %2934 = vmatmul.mubr.f32.gmra.mxu0 %v1217
        %v2935 = vpop.f32.mrf.mxu0
        %v2936 = vadd.f32 %v2027, %v2935
        %v2937 = vpop.f32.mrf.mxu0
        %v2938 = vadd.f32 %v2027, %v2937
        %2939 = vmatprep.mubr.f32.mxu0 %v1220
        %2940 = vmatmul.mubr.f32.gmra.mxu0 %v1219
        %v2941 = vpop.f32.mrf.mxu0
        %v2942 = vadd.f32 %v2032, %v2941
        %v2943 = vpop.f32.mrf.mxu0
        %v2944 = vadd.f32 %v2032, %v2943
        %2945 = vmatprep.mubr.f32.mxu0 %v1222
        %2946 = vmatmul.mubr.f32.gmra.mxu0 %v1221
        %v2947 = vpop.f32.mrf.mxu0
        %v2948 = vadd.f32 %v2037, %v2947
        %v2949 = vpop.f32.mrf.mxu0
        %v2950 = vadd.f32 %v2037, %v2949
        %2951 = vmatprep.mubr.f32.mxu0 %v1224
        %2952 = vmatmul.mubr.f32.gmra.mxu0 %v1223
        %v2953 = vpop.f32.mrf.mxu0
        %v2954 = vadd.f32 %v2042, %v2953
        %v2955 = vpop.f32.mrf.mxu0
        %v2956 = vadd.f32 %v2042, %v2955
        %2957 = vmatprep.mubr.f32.mxu0 %v1226
        %2958 = vmatmul.mubr.f32.gmra.mxu0 %v1225
        %v2959 = vpop.f32.mrf.mxu0
        %v2960 = vadd.f32 %v2047, %v2959
        %v2961 = vpop.f32.mrf.mxu0
        %v2962 = vadd.f32 %v2047, %v2961
        %2963 = vmatprep.mubr.f32.mxu0 %v1228
        %2964 = vmatmul.mubr.f32.gmra.mxu0 %v1227
        %v2965 = vpop.f32.mrf.mxu0
        %v2966 = vadd.f32 %v2052, %v2965
        %v2967 = vpop.f32.mrf.mxu0
        %v2968 = vadd.f32 %v2052, %v2967
        %2969 = vmatprep.mubr.f32.mxu0 %v1230
        %2970 = vmatmul.mubr.f32.gmra.mxu0 %v1229
        %v2971 = vpop.f32.mrf.mxu0
        %v2972 = vadd.f32 %v2057, %v2971
        %v2973 = vpop.f32.mrf.mxu0
        %v2974 = vadd.f32 %v2057, %v2973
        %2975 = vmatprep.mubr.f32.mxu0 %v1232
        %2976 = vmatmul.mubr.f32.gmra.mxu0 %v1231
        %v2977 = vpop.f32.mrf.mxu0
        %v2978 = vadd.f32 %v2062, %v2977
        %v2979 = vpop.f32.mrf.mxu0
        %v2980 = vadd.f32 %v2062, %v2979
        %2981 = vmatprep.mubr.f32.mxu0 %v1234
        %2982 = vmatmul.mubr.f32.gmra.mxu0 %v1233
        %v2983 = vpop.f32.mrf.mxu0
        %v2984 = vadd.f32 %v2067, %v2983
        %v2985 = vpop.f32.mrf.mxu0
        %v2986 = vadd.f32 %v2067, %v2985
        %2987 = vmatprep.mubr.f32.mxu0 %v1236
        %2988 = vmatmul.mubr.f32.gmra.mxu0 %v1235
        %v2989 = vpop.f32.mrf.mxu0
        %v2990 = vadd.f32 %v2072, %v2989
        %v2991 = vpop.f32.mrf.mxu0
        %v2992 = vadd.f32 %v2072, %v2991
        %2993 = vmatprep.mubr.f32.mxu0 %v1238
        %2994 = vmatmul.mubr.f32.gmra.mxu0 %v1237
        %v2995 = vpop.f32.mrf.mxu0
        %v2996 = vadd.f32 %v2077, %v2995
        %v2997 = vpop.f32.mrf.mxu0
        %v2998 = vadd.f32 %v2077, %v2997
        %2999 = vmatprep.mubr.f32.mxu0 %v1240
        %3000 = vmatmul.mubr.f32.gmra.mxu0 %v1239
        %v3001 = vpop.f32.mrf.mxu0
        %v3002 = vadd.f32 %v2082, %v3001
        %v3003 = vpop.f32.mrf.mxu0
        %v3004 = vadd.f32 %v2082, %v3003
        %3005 = vmatprep.mubr.f32.mxu0 %v1242
        %3006 = vmatmul.mubr.f32.gmra.mxu0 %v1241
        %v3007 = vpop.f32.mrf.mxu0
        %v3008 = vadd.f32 %v2087, %v3007
        %v3009 = vpop.f32.mrf.mxu0
        %v3010 = vadd.f32 %v2087, %v3009
        %3011 = vmatprep.mubr.f32.mxu0 %v1244
        %3012 = vmatmul.mubr.f32.gmra.mxu0 %v1243
        %v3013 = vpop.f32.mrf.mxu0
        %v3014 = vadd.f32 %v2092, %v3013
        %v3015 = vpop.f32.mrf.mxu0
        %v3016 = vadd.f32 %v2092, %v3015
        %3017 = vmatprep.mubr.f32.mxu0 %v1246
        %3018 = vmatmul.mubr.f32.gmra.mxu0 %v1245
        %v3019 = vpop.f32.mrf.mxu0
        %v3020 = vadd.f32 %v2097, %v3019
        %v3021 = vpop.f32.mrf.mxu0
        %v3022 = vadd.f32 %v2097, %v3021
        %3023 = vmatprep.mubr.f32.mxu0 %v1248
        %3024 = vmatmul.mubr.f32.gmra.mxu0 %v1247
        %v3025 = vpop.f32.mrf.mxu0
        %v3026 = vadd.f32 %v2102, %v3025
        %v3027 = vpop.f32.mrf.mxu0
        %v3028 = vadd.f32 %v2102, %v3027
        %3029 = vmatprep.mubr.f32.mxu0 %v1250
        %3030 = vmatmul.mubr.f32.gmra.mxu0 %v1249
        %v3031 = vpop.f32.mrf.mxu0
        %v3032 = vadd.f32 %v2107, %v3031
        %v3033 = vpop.f32.mrf.mxu0
        %v3034 = vadd.f32 %v2107, %v3033
        %3035 = vmatprep.mubr.f32.mxu0 %v1252
        %3036 = vmatmul.mubr.f32.gmra.mxu0 %v1251
        %v3037 = vpop.f32.mrf.mxu0
        %v3038 = vadd.f32 %v2112, %v3037
        %v3039 = vpop.f32.mrf.mxu0
        %v3040 = vadd.f32 %v2112, %v3039
        %3041 = vmatprep.mubr.f32.mxu0 %v1254
        %3042 = vmatmul.mubr.f32.gmra.mxu0 %v1253
        %v3043 = vpop.f32.mrf.mxu0
        %v3044 = vadd.f32 %v2117, %v3043
        %v3045 = vpop.f32.mrf.mxu0
        %v3046 = vadd.f32 %v2117, %v3045
        %3047 = vdwg.mxu0
        %3048 = vst [vmem:[%s306] sm:$0xff] %v2186
        %3049 = vst [vmem:[%s306 + $0x8] sm:$0xff] %v2188
        %3050 = vst [vmem:[%s306 + $0x10] sm:$0xff] %v2192
        %3051 = vst [vmem:[%s306 + $0x18] sm:$0xff] %v2194
        %3052 = vst [vmem:[%s306 + $0x20] sm:$0xff] %v2198
        %3053 = vst [vmem:[%s306 + $0x28] sm:$0xff] %v2200
        %3054 = vst [vmem:[%s306 + $0x30] sm:$0xff] %v2204
        %3055 = vst [vmem:[%s306 + $0x38] sm:$0xff] %v2206
        %3056 = vst [vmem:[%s306 + $0x40] sm:$0xff] %v2210
        %3057 = vst [vmem:[%s306 + $0x48] sm:$0xff] %v2212
        %3058 = vst [vmem:[%s306 + $0x50] sm:$0xff] %v2216
        %3059 = vst [vmem:[%s306 + $0x58] sm:$0xff] %v2218
        %3060 = vst [vmem:[%s306 + $0x60] sm:$0xff] %v2222
        %3061 = vst [vmem:[%s306 + $0x68] sm:$0xff] %v2224
        %3062 = vst [vmem:[%s306 + $0x70] sm:$0xff] %v2228
        %3063 = vst [vmem:[%s306 + $0x78] sm:$0xff] %v2230
        %3064 = vst [vmem:[%s306 + $0x80] sm:$0xff] %v2234
        %3065 = vst [vmem:[%s306 + $0x88] sm:$0xff] %v2236
        %3066 = vst [vmem:[%s306 + $0x90] sm:$0xff] %v2240
        %3067 = vst [vmem:[%s306 + $0x98] sm:$0xff] %v2242
        %3068 = vst [vmem:[%s306 + $0xa0] sm:$0xff] %v2246
        %3069 = vst [vmem:[%s306 + $0xa8] sm:$0xff] %v2248
        %3070 = vst [vmem:[%s306 + $0xb0] sm:$0xff] %v2252
        %3071 = vst [vmem:[%s306 + $0xb8] sm:$0xff] %v2254
        %3072 = vst [vmem:[%s306 + $0xc0] sm:$0xff] %v2258
        %3073 = vst [vmem:[%s306 + $0xc8] sm:$0xff] %v2260
        %3074 = vst [vmem:[%s306 + $0xd0] sm:$0xff] %v2264
        %3075 = vst [vmem:[%s306 + $0xd8] sm:$0xff] %v2266
        %3076 = vst [vmem:[%s306 + $0xe0] sm:$0xff] %v2270
        %3077 = vst [vmem:[%s306 + $0xe8] sm:$0xff] %v2272
        %3078 = vst [vmem:[%s306 + $0xf0] sm:$0xff] %v2276
        %3079 = vst [vmem:[%s306 + $0xf8] sm:$0xff] %v2278
        %3080 = vst [vmem:[%s306 + $0x100] sm:$0xff] %v2282
        %3081 = vst [vmem:[%s306 + $0x108] sm:$0xff] %v2284
        %3082 = vst [vmem:[%s306 + $0x110] sm:$0xff] %v2288
        %3083 = vst [vmem:[%s306 + $0x118] sm:$0xff] %v2290
        %3084 = vst [vmem:[%s306 + $0x120] sm:$0xff] %v2294
        %3085 = vst [vmem:[%s306 + $0x128] sm:$0xff] %v2296
        %3086 = vst [vmem:[%s306 + $0x130] sm:$0xff] %v2300
        %3087 = vst [vmem:[%s306 + $0x138] sm:$0xff] %v2302
        %3088 = vst [vmem:[%s306 + $0x140] sm:$0xff] %v2306
        %3089 = vst [vmem:[%s306 + $0x148] sm:$0xff] %v2308
        %3090 = vst [vmem:[%s306 + $0x150] sm:$0xff] %v2312
        %3091 = vst [vmem:[%s306 + $0x158] sm:$0xff] %v2314
        %3092 = vst [vmem:[%s306 + $0x160] sm:$0xff] %v2318
        %3093 = vst [vmem:[%s306 + $0x168] sm:$0xff] %v2320
        %3094 = vst [vmem:[%s306 + $0x170] sm:$0xff] %v2324
        %3095 = vst [vmem:[%s306 + $0x178] sm:$0xff] %v2326
        %3096 = vst [vmem:[%s306 + $0x180] sm:$0xff] %v2330
        %3097 = vst [vmem:[%s306 + $0x188] sm:$0xff] %v2332
        %3098 = vst [vmem:[%s306 + $0x190] sm:$0xff] %v2336
        %3099 = vst [vmem:[%s306 + $0x198] sm:$0xff] %v2338
        %3100 = vst [vmem:[%s306 + $0x1a0] sm:$0xff] %v2342
        %3101 = vst [vmem:[%s306 + $0x1a8] sm:$0xff] %v2344
        %3102 = vst [vmem:[%s306 + $0x1b0] sm:$0xff] %v2348
        %3103 = vst [vmem:[%s306 + $0x1b8] sm:$0xff] %v2350
        %3104 = vst [vmem:[%s306 + $0x1c0] sm:$0xff] %v2354
        %3105 = vst [vmem:[%s306 + $0x1c8] sm:$0xff] %v2356
        %3106 = vst [vmem:[%s306 + $0x1d0] sm:$0xff] %v2360
        %3107 = vst [vmem:[%s306 + $0x1d8] sm:$0xff] %v2362
        %3108 = vst [vmem:[%s306 + $0x1e0] sm:$0xff] %v2366
        %3109 = vst [vmem:[%s306 + $0x1e8] sm:$0xff] %v2368
        %3110 = vst [vmem:[%s306 + $0x1f0] sm:$0xff] %v2372
        %3111 = vst [vmem:[%s306 + $0x1f8] sm:$0xff] %v2374
        %3112 = vst [vmem:[%s306 + $0x200] sm:$0xff] %v2378
        %3113 = vst [vmem:[%s306 + $0x208] sm:$0xff] %v2380
        %3114 = vst [vmem:[%s306 + $0x210] sm:$0xff] %v2384
        %3115 = vst [vmem:[%s306 + $0x218] sm:$0xff] %v2386
        %3116 = vst [vmem:[%s306 + $0x220] sm:$0xff] %v2390
        %3117 = vst [vmem:[%s306 + $0x228] sm:$0xff] %v2392
        %3118 = vst [vmem:[%s306 + $0x230] sm:$0xff] %v2396
        %3119 = vst [vmem:[%s306 + $0x238] sm:$0xff] %v2398
        %3120 = vst [vmem:[%s306 + $0x240] sm:$0xff] %v2402
        %3121 = vst [vmem:[%s306 + $0x248] sm:$0xff] %v2404
        %3122 = vst [vmem:[%s306 + $0x250] sm:$0xff] %v2408
        %3123 = vst [vmem:[%s306 + $0x258] sm:$0xff] %v2410
        %3124 = vst [vmem:[%s306 + $0x260] sm:$0xff] %v2414
        %3125 = vst [vmem:[%s306 + $0x268] sm:$0xff] %v2416
        %3126 = vst [vmem:[%s306 + $0x270] sm:$0xff] %v2420
        %3127 = vst [vmem:[%s306 + $0x278] sm:$0xff] %v2422
        %3128 = vst [vmem:[%s306 + $0x280] sm:$0xff] %v2426
        %3129 = vst [vmem:[%s306 + $0x288] sm:$0xff] %v2428
        %3130 = vst [vmem:[%s306 + $0x290] sm:$0xff] %v2432
        %3131 = vst [vmem:[%s306 + $0x298] sm:$0xff] %v2434
        %3132 = vst [vmem:[%s306 + $0x2a0] sm:$0xff] %v2438
        %3133 = vst [vmem:[%s306 + $0x2a8] sm:$0xff] %v2440
        %3134 = vst [vmem:[%s306 + $0x2b0] sm:$0xff] %v2444
        %3135 = vst [vmem:[%s306 + $0x2b8] sm:$0xff] %v2446
        %3136 = vst [vmem:[%s306 + $0x2c0] sm:$0xff] %v2450
        %3137 = vst [vmem:[%s306 + $0x2c8] sm:$0xff] %v2452
        %3138 = vst [vmem:[%s306 + $0x2d0] sm:$0xff] %v2456
        %3139 = vst [vmem:[%s306 + $0x2d8] sm:$0xff] %v2458
        %3140 = vst [vmem:[%s306 + $0x2e0] sm:$0xff] %v2462
        %3141 = vst [vmem:[%s306 + $0x2e8] sm:$0xff] %v2464
        %3142 = vst [vmem:[%s306 + $0x2f0] sm:$0xff] %v2468
        %3143 = vst [vmem:[%s306 + $0x2f8] sm:$0xff] %v2470
        %3144 = vst [vmem:[%s313] sm:$0xff] %v2474
        %3145 = vst [vmem:[%s313 + $0x8] sm:$0xff] %v2476
        %3146 = vst [vmem:[%s313 + $0x10] sm:$0xff] %v2480
        %3147 = vst [vmem:[%s313 + $0x18] sm:$0xff] %v2482
        %3148 = vst [vmem:[%s313 + $0x20] sm:$0xff] %v2486
        %3149 = vst [vmem:[%s313 + $0x28] sm:$0xff] %v2488
        %3150 = vst [vmem:[%s313 + $0x30] sm:$0xff] %v2492
        %3151 = vst [vmem:[%s313 + $0x38] sm:$0xff] %v2494
        %3152 = vst [vmem:[%s313 + $0x40] sm:$0xff] %v2498
        %3153 = vst [vmem:[%s313 + $0x48] sm:$0xff] %v2500
        %3154 = vst [vmem:[%s313 + $0x50] sm:$0xff] %v2504
        %3155 = vst [vmem:[%s313 + $0x58] sm:$0xff] %v2506
        %3156 = vst [vmem:[%s313 + $0x60] sm:$0xff] %v2510
        %3157 = vst [vmem:[%s313 + $0x68] sm:$0xff] %v2512
        %3158 = vst [vmem:[%s313 + $0x70] sm:$0xff] %v2516
        %3159 = vst [vmem:[%s313 + $0x78] sm:$0xff] %v2518
        %3160 = vst [vmem:[%s313 + $0x80] sm:$0xff] %v2522
        %3161 = vst [vmem:[%s313 + $0x88] sm:$0xff] %v2524
        %3162 = vst [vmem:[%s313 + $0x90] sm:$0xff] %v2528
        %3163 = vst [vmem:[%s313 + $0x98] sm:$0xff] %v2530
        %3164 = vst [vmem:[%s313 + $0xa0] sm:$0xff] %v2534
        %3165 = vst [vmem:[%s313 + $0xa8] sm:$0xff] %v2536
        %3166 = vst [vmem:[%s313 + $0xb0] sm:$0xff] %v2540
        %3167 = vst [vmem:[%s313 + $0xb8] sm:$0xff] %v2542
        %3168 = vst [vmem:[%s313 + $0xc0] sm:$0xff] %v2546
        %3169 = vst [vmem:[%s313 + $0xc8] sm:$0xff] %v2548
        %3170 = vst [vmem:[%s313 + $0xd0] sm:$0xff] %v2552
        %3171 = vst [vmem:[%s313 + $0xd8] sm:$0xff] %v2554
        %3172 = vst [vmem:[%s313 + $0xe0] sm:$0xff] %v2558
        %3173 = vst [vmem:[%s313 + $0xe8] sm:$0xff] %v2560
        %3174 = vst [vmem:[%s313 + $0xf0] sm:$0xff] %v2564
        %3175 = vst [vmem:[%s313 + $0xf8] sm:$0xff] %v2566
        %3176 = vst [vmem:[%s313 + $0x100] sm:$0xff] %v2570
        %3177 = vst [vmem:[%s313 + $0x108] sm:$0xff] %v2572
        %3178 = vst [vmem:[%s313 + $0x110] sm:$0xff] %v2576
        %3179 = vst [vmem:[%s313 + $0x118] sm:$0xff] %v2578
        %3180 = vst [vmem:[%s313 + $0x120] sm:$0xff] %v2582
        %3181 = vst [vmem:[%s313 + $0x128] sm:$0xff] %v2584
        %3182 = vst [vmem:[%s313 + $0x130] sm:$0xff] %v2588
        %3183 = vst [vmem:[%s313 + $0x138] sm:$0xff] %v2590
        %3184 = vst [vmem:[%s313 + $0x140] sm:$0xff] %v2594
        %3185 = vst [vmem:[%s313 + $0x148] sm:$0xff] %v2596
        %3186 = vst [vmem:[%s313 + $0x150] sm:$0xff] %v2600
        %3187 = vst [vmem:[%s313 + $0x158] sm:$0xff] %v2602
        %3188 = vst [vmem:[%s313 + $0x160] sm:$0xff] %v2606
        %3189 = vst [vmem:[%s313 + $0x168] sm:$0xff] %v2608
        %3190 = vst [vmem:[%s313 + $0x170] sm:$0xff] %v2612
        %3191 = vst [vmem:[%s313 + $0x178] sm:$0xff] %v2614
        %3192 = vst [vmem:[%s313 + $0x180] sm:$0xff] %v2618
        %3193 = vst [vmem:[%s313 + $0x188] sm:$0xff] %v2620
        %3194 = vst [vmem:[%s313 + $0x190] sm:$0xff] %v2624
        %3195 = vst [vmem:[%s313 + $0x198] sm:$0xff] %v2626
        %3196 = vst [vmem:[%s313 + $0x1a0] sm:$0xff] %v2630
        %3197 = vst [vmem:[%s313 + $0x1a8] sm:$0xff] %v2632
        %3198 = vst [vmem:[%s313 + $0x1b0] sm:$0xff] %v2636
        %3199 = vst [vmem:[%s313 + $0x1b8] sm:$0xff] %v2638
        %3200 = vst [vmem:[%s313 + $0x1c0] sm:$0xff] %v2642
        %3201 = vst [vmem:[%s313 + $0x1c8] sm:$0xff] %v2644
        %3202 = vst [vmem:[%s313 + $0x1d0] sm:$0xff] %v2648
        %3203 = vst [vmem:[%s313 + $0x1d8] sm:$0xff] %v2650
        %3204 = vst [vmem:[%s313 + $0x1e0] sm:$0xff] %v2654
        %3205 = vst [vmem:[%s313 + $0x1e8] sm:$0xff] %v2656
        %3206 = vst [vmem:[%s313 + $0x1f0] sm:$0xff] %v2660
        %3207 = vst [vmem:[%s313 + $0x1f8] sm:$0xff] %v2662
        %3208 = vst [vmem:[%s313 + $0x200] sm:$0xff] %v2666
        %3209 = vst [vmem:[%s313 + $0x208] sm:$0xff] %v2668
        %3210 = vst [vmem:[%s313 + $0x210] sm:$0xff] %v2672
        %3211 = vst [vmem:[%s313 + $0x218] sm:$0xff] %v2674
        %3212 = vst [vmem:[%s313 + $0x220] sm:$0xff] %v2678
        %3213 = vst [vmem:[%s313 + $0x228] sm:$0xff] %v2680
        %3214 = vst [vmem:[%s313 + $0x230] sm:$0xff] %v2684
        %3215 = vst [vmem:[%s313 + $0x238] sm:$0xff] %v2686
        %3216 = vst [vmem:[%s313 + $0x240] sm:$0xff] %v2690
        %3217 = vst [vmem:[%s313 + $0x248] sm:$0xff] %v2692
        %3218 = vst [vmem:[%s313 + $0x250] sm:$0xff] %v2696
        %3219 = vst [vmem:[%s313 + $0x258] sm:$0xff] %v2698
        %3220 = vst [vmem:[%s313 + $0x260] sm:$0xff] %v2702
        %3221 = vst [vmem:[%s313 + $0x268] sm:$0xff] %v2704
        %3222 = vst [vmem:[%s313 + $0x270] sm:$0xff] %v2708
        %3223 = vst [vmem:[%s313 + $0x278] sm:$0xff] %v2710
        %3224 = vst [vmem:[%s313 + $0x280] sm:$0xff] %v2714
        %3225 = vst [vmem:[%s313 + $0x288] sm:$0xff] %v2716
        %3226 = vst [vmem:[%s313 + $0x290] sm:$0xff] %v2720
        %3227 = vst [vmem:[%s313 + $0x298] sm:$0xff] %v2722
        %3228 = vst [vmem:[%s313 + $0x2a0] sm:$0xff] %v2726
        %3229 = vst [vmem:[%s313 + $0x2a8] sm:$0xff] %v2728
        %3230 = vst [vmem:[%s313 + $0x2b0] sm:$0xff] %v2732
        %3231 = vst [vmem:[%s313 + $0x2b8] sm:$0xff] %v2734
        %3232 = vst [vmem:[%s313 + $0x2c0] sm:$0xff] %v2738
        %3233 = vst [vmem:[%s313 + $0x2c8] sm:$0xff] %v2740
        %3234 = vst [vmem:[%s313 + $0x2d0] sm:$0xff] %v2744
        %3235 = vst [vmem:[%s313 + $0x2d8] sm:$0xff] %v2746
        %3236 = vst [vmem:[%s313 + $0x2e0] sm:$0xff] %v2750
        %3237 = vst [vmem:[%s313 + $0x2e8] sm:$0xff] %v2752
        %3238 = vst [vmem:[%s313 + $0x2f0] sm:$0xff] %v2756
        %3239 = vst [vmem:[%s313 + $0x2f8] sm:$0xff] %v2758
        %3240 = vst [vmem:[%s313 + $0x300] sm:$0xff] %v2762
        %3241 = vst [vmem:[%s313 + $0x308] sm:$0xff] %v2764
        %3242 = vst [vmem:[%s313 + $0x310] sm:$0xff] %v2768
        %3243 = vst [vmem:[%s313 + $0x318] sm:$0xff] %v2770
        %3244 = vst [vmem:[%s313 + $0x320] sm:$0xff] %v2774
        %3245 = vst [vmem:[%s313 + $0x328] sm:$0xff] %v2776
        %3246 = vst [vmem:[%s313 + $0x330] sm:$0xff] %v2780
        %3247 = vst [vmem:[%s313 + $0x338] sm:$0xff] %v2782
        %3248 = vst [vmem:[%s313 + $0x340] sm:$0xff] %v2786
        %3249 = vst [vmem:[%s313 + $0x348] sm:$0xff] %v2788
        %3250 = vst [vmem:[%s313 + $0x350] sm:$0xff] %v2792
        %3251 = vst [vmem:[%s313 + $0x358] sm:$0xff] %v2794
        %3252 = vst [vmem:[%s313 + $0x360] sm:$0xff] %v2798
        %3253 = vst [vmem:[%s313 + $0x368] sm:$0xff] %v2800
        %3254 = vst [vmem:[%s313 + $0x370] sm:$0xff] %v2804
        %3255 = vst [vmem:[%s313 + $0x378] sm:$0xff] %v2806
        %3256 = vst [vmem:[%s313 + $0x380] sm:$0xff] %v2810
        %3257 = vst [vmem:[%s313 + $0x388] sm:$0xff] %v2812
        %3258 = vst [vmem:[%s313 + $0x390] sm:$0xff] %v2816
        %3259 = vst [vmem:[%s313 + $0x398] sm:$0xff] %v2818
        %3260 = vst [vmem:[%s313 + $0x3a0] sm:$0xff] %v2822
        %3261 = vst [vmem:[%s313 + $0x3a8] sm:$0xff] %v2824
        %3262 = vst [vmem:[%s313 + $0x3b0] sm:$0xff] %v2828
        %3263 = vst [vmem:[%s313 + $0x3b8] sm:$0xff] %v2830
        %3264 = vst [vmem:[%s313 + $0x3c0] sm:$0xff] %v2834
        %3265 = vst [vmem:[%s313 + $0x3c8] sm:$0xff] %v2836
        %3266 = vst [vmem:[%s313 + $0x3d0] sm:$0xff] %v2840
        %3267 = vst [vmem:[%s313 + $0x3d8] sm:$0xff] %v2842
        %3268 = vst [vmem:[%s313 + $0x3e0] sm:$0xff] %v2846
        %3269 = vst [vmem:[%s313 + $0x3e8] sm:$0xff] %v2848
        %3270 = vst [vmem:[%s313 + $0x3f0] sm:$0xff] %v2852
        %3271 = vst [vmem:[%s313 + $0x3f8] sm:$0xff] %v2854
        %3272 = vst [vmem:[%s313 + $0x400] sm:$0xff] %v2858
        %3273 = vst [vmem:[%s313 + $0x408] sm:$0xff] %v2860
        %3274 = vst [vmem:[%s313 + $0x410] sm:$0xff] %v2864
        %3275 = vst [vmem:[%s313 + $0x418] sm:$0xff] %v2866
        %3276 = vst [vmem:[%s313 + $0x420] sm:$0xff] %v2870
        %3277 = vst [vmem:[%s313 + $0x428] sm:$0xff] %v2872
        %3278 = vst [vmem:[%s313 + $0x430] sm:$0xff] %v2876
        %3279 = vst [vmem:[%s313 + $0x438] sm:$0xff] %v2878
        %3280 = vst [vmem:[%s313 + $0x440] sm:$0xff] %v2882
        %3281 = vst [vmem:[%s313 + $0x448] sm:$0xff] %v2884
        %3282 = vst [vmem:[%s313 + $0x450] sm:$0xff] %v2888
        %3283 = vst [vmem:[%s313 + $0x458] sm:$0xff] %v2890
        %3284 = vst [vmem:[%s313 + $0x460] sm:$0xff] %v2894
        %3285 = vst [vmem:[%s313 + $0x468] sm:$0xff] %v2896
        %3286 = vst [vmem:[%s313 + $0x470] sm:$0xff] %v2900
        %3287 = vst [vmem:[%s313 + $0x478] sm:$0xff] %v2902
        %3288 = vst [vmem:[%s313 + $0x480] sm:$0xff] %v2906
        %3289 = vst [vmem:[%s313 + $0x488] sm:$0xff] %v2908
        %3290 = vst [vmem:[%s313 + $0x490] sm:$0xff] %v2912
        %3291 = vst [vmem:[%s313 + $0x498] sm:$0xff] %v2914
        %3292 = vst [vmem:[%s313 + $0x4a0] sm:$0xff] %v2918
        %3293 = vst [vmem:[%s313 + $0x4a8] sm:$0xff] %v2920
        %3294 = vst [vmem:[%s313 + $0x4b0] sm:$0xff] %v2924
        %3295 = vst [vmem:[%s313 + $0x4b8] sm:$0xff] %v2926
        %3296 = vst [vmem:[%s313 + $0x4c0] sm:$0xff] %v2930
        %3297 = vst [vmem:[%s313 + $0x4c8] sm:$0xff] %v2932
        %3298 = vst [vmem:[%s313 + $0x4d0] sm:$0xff] %v2936
        %3299 = vst [vmem:[%s313 + $0x4d8] sm:$0xff] %v2938
        %3300 = vst [vmem:[%s313 + $0x4e0] sm:$0xff] %v2942
        %3301 = vst [vmem:[%s313 + $0x4e8] sm:$0xff] %v2944
        %3302 = vst [vmem:[%s313 + $0x4f0] sm:$0xff] %v2948
        %3303 = vst [vmem:[%s313 + $0x4f8] sm:$0xff] %v2950
        %3304 = vst [vmem:[%s313 + $0x500] sm:$0xff] %v2954
        %3305 = vst [vmem:[%s313 + $0x508] sm:$0xff] %v2956
        %3306 = vst [vmem:[%s313 + $0x510] sm:$0xff] %v2960
        %3307 = vst [vmem:[%s313 + $0x518] sm:$0xff] %v2962
        %3308 = vst [vmem:[%s313 + $0x520] sm:$0xff] %v2966
        %3309 = vst [vmem:[%s313 + $0x528] sm:$0xff] %v2968
        %3310 = vst [vmem:[%s313 + $0x530] sm:$0xff] %v2972
        %3311 = vst [vmem:[%s313 + $0x538] sm:$0xff] %v2974
        %3312 = vst [vmem:[%s313 + $0x540] sm:$0xff] %v2978
        %3313 = vst [vmem:[%s313 + $0x548] sm:$0xff] %v2980
        %3314 = vst [vmem:[%s313 + $0x550] sm:$0xff] %v2984
        %3315 = vst [vmem:[%s313 + $0x558] sm:$0xff] %v2986
        %3316 = vst [vmem:[%s313 + $0x560] sm:$0xff] %v2990
        %3317 = vst [vmem:[%s313 + $0x568] sm:$0xff] %v2992
        %3318 = vst [vmem:[%s313 + $0x570] sm:$0xff] %v2996
        %3319 = vst [vmem:[%s313 + $0x578] sm:$0xff] %v2998
        %3320 = vst [vmem:[%s313 + $0x580] sm:$0xff] %v3002
        %3321 = vst [vmem:[%s313 + $0x588] sm:$0xff] %v3004
        %3322 = vst [vmem:[%s313 + $0x590] sm:$0xff] %v3008
        %3323 = vst [vmem:[%s313 + $0x598] sm:$0xff] %v3010
        %3324 = vst [vmem:[%s313 + $0x5a0] sm:$0xff] %v3014
        %3325 = vst [vmem:[%s313 + $0x5a8] sm:$0xff] %v3016
        %3326 = vst [vmem:[%s313 + $0x5b0] sm:$0xff] %v3020
        %3327 = vst [vmem:[%s313 + $0x5b8] sm:$0xff] %v3022
        %3328 = vst [vmem:[%s313 + $0x5c0] sm:$0xff] %v3026
        %3329 = vst [vmem:[%s313 + $0x5c8] sm:$0xff] %v3028
        %3330 = vst [vmem:[%s313 + $0x5d0] sm:$0xff] %v3032
        %3331 = vst [vmem:[%s313 + $0x5d8] sm:$0xff] %v3034
        %3332 = vst [vmem:[%s313 + $0x5e0] sm:$0xff] %v3038
        %3333 = vst [vmem:[%s313 + $0x5e8] sm:$0xff] %v3040
        %3334 = vst [vmem:[%s313 + $0x5f0] sm:$0xff] %v3044
        %3335 = vst [vmem:[%s313 + $0x5f8] sm:$0xff] %v3046
        %s3336 = sand.u32 %s162, 1
        %s3337 = scalar_lea.sflag [#allocation4], %s3336
        %s3338 = sand.u32 %s162, 1
        %s3339 = smul.addr %s3338, 768
        %s3340 = scalar_lea.vmem [#allocation7], %s3339
        %s3341 = sand.u32 %s190, 1
        %s3342 = scalar_lea.sflag [#allocation9], %s3341
        %s3343 = sand.u32 %s190, 1
        %s3344 = smul.addr %s3343, 1536
        %s3345 = scalar_lea.vmem [#allocation8], %s3344
        // Predicated region
        $region49: #{tpu_custom_call.1} parent=39 // pred_check
          %p3346 = pneg %p172
        $region50: #{tpu_custom_call.1} parent=39 // pred_check_branch
          %3348 = sbr.rel (%p3346) target = $region52
        $region51: #{tpu_custom_call.1} parent=39 // pred_region
          %s3349 = smul.u32 2, %s33
          %s3351 = ssub.s32 12288, 12288
          %3352 = vsyncadd %s3337, %s3351
          %s3353 = smul.addr %s32, 96
          %s3354 = sadd.s32 %s3349, %s3353
          %s3355 = smul.addr %s3354, 128
          %s3356 = scalar_lea.hbm %s5, %s3355
          %s3357 = sshll.u32 %s3340, 4
          %s3358 = int_to_ptr.vmem [resolvable:$true] %s3357
          %3363 = dma.vmem_to_hbm [thread:$0]  %s3358, 12288, %s3356, %s3337, 256, 256, 16
        $region52: #{tpu_custom_call.1} parent=39 // pred_fallthru
          _
        // Predicated region
        $region53: #{tpu_custom_call.1} parent=39 // pred_check
          %p3364 = pneg %p200
        $region54: #{tpu_custom_call.1} parent=39 // pred_check_branch
          %3366 = sbr.rel (%p3364) target = $region56
        $region55: #{tpu_custom_call.1} parent=39 // pred_region
          %s3367 = smul.u32 2, %s33
          %s3369 = ssub.s32 24576, 24576
          %3370 = vsyncadd %s3342, %s3369
          %s3371 = smul.addr %s32, 192
          %s3372 = sadd.s32 %s3367, %s3371
          %s3373 = smul.addr %s3372, 128
          %s3374 = scalar_lea.hbm %s6, %s3373
          %s3375 = sshll.u32 %s3345, 4
          %s3376 = int_to_ptr.vmem [resolvable:$true] %s3375
          %3381 = dma.vmem_to_hbm [thread:$0]  %s3376, 24576, %s3374, %s3342, 256, 256, 16
        $region56: #{tpu_custom_call.1} parent=39 // pred_fallthru
          _
      $region40: #{tpu_custom_call.1} parent=5 // pred_fallthru
        _
      %p3382 = scmp.le.s32.totalorder 2, %s23
      // Predicated region
      $region57: #{tpu_custom_call.1} parent=5 // pred_check
        %p3383 = pneg %p3382
      $region58: #{tpu_custom_call.1} parent=5 // pred_check_branch
        %3385 = sbr.rel (%p3383) target = $region60
      $region59: #{tpu_custom_call.1} parent=5 // pred_region
        %s3386 = ssub.s32 %s23, 2
        // Predicated region
        $region61: #{tpu_custom_call.1} parent=59 // pred_check
          %p3387 = pneg %p178
        $region62: #{tpu_custom_call.1} parent=59 // pred_check_branch
          %3389 = sbr.rel (%p3387) target = $region64
        $region63: #{tpu_custom_call.1} parent=59 // pred_region
          %s3390 = sand.u32 %s163, 1
          %s3391 = scalar_lea.sflag [#allocation4], %s3390
          %s3392 = sand.u32 %s163, 1
          %s3393 = smul.addr %s3392, 768
          %s3394 = scalar_lea.vmem [#allocation7], %s3393
          %3395 = dma.done %s3391, 12288
        $region64: #{tpu_custom_call.1} parent=59 // pred_fallthru
          _
        // Predicated region
        $region65: #{tpu_custom_call.1} parent=59 // pred_check
          %p3396 = pneg %p206
        $region66: #{tpu_custom_call.1} parent=59 // pred_check_branch
          %3398 = sbr.rel (%p3396) target = $region68
        $region67: #{tpu_custom_call.1} parent=59 // pred_region
          %s3399 = sand.u32 %s191, 1
          %s3400 = scalar_lea.sflag [#allocation9], %s3399
          %s3401 = sand.u32 %s191, 1
          %s3402 = smul.addr %s3401, 1536
          %s3403 = scalar_lea.vmem [#allocation8], %s3402
          %3404 = dma.done %s3400, 24576
        $region68: #{tpu_custom_call.1} parent=59 // pred_fallthru
          _
      $region60: #{tpu_custom_call.1} parent=5 // pred_fallthru
        _
    $region6: #{tpu_custom_call.1} parent=1 // loop_footer
      %s27 = sadd.s32 1, %s23
    $region7: #{tpu_custom_call.1} parent=1 // loop_footer_branch
      %22 = sbr.rel target = $region3
    $region8: #{tpu_custom_call.1} parent=1 // loop_exit
      _
    %3405 = vsyncpa [#allocation3], 1
    %s3406 = scalar_lea.sflag [#allocation3], 1
    %3407 = vsyncpa %s3406, 1
    %3408 = vsyncpa [#allocation6], 1
    %3409 = vsyncpa [#allocation4], 1
    %s3410 = scalar_lea.sflag [#allocation4], 1
    %3411 = vsyncpa %s3410, 1
    %3412 = vsyncpa [#allocation9], 1
    %s3413 = scalar_lea.sflag [#allocation9], 1
    %3414 = vsyncpa %s3413, 1

</llo_original>
